<compile_context>
chip_gen: v7x
topology: tpu7x:2x2x1
jax: 0.10.0
libtpu: 0.0.40
codegen_flags: <defaults>
</compile_context>

<pallas_src>
import functools

import jax
import jax.numpy as jnp
import numpy as np
from jax.experimental import pallas as pl
from jax.experimental.pallas import tpu as pltpu


def _round_up(a, m):
    return (a + m - 1) // m * m


def _vmem_limit_bytes():
    """Generation-aware scoped-VMEM budget: ~70% of physical, capped at 100 MiB."""
    try:
        cap = pltpu.get_tpu_info().vmem_capacity_bytes
    except Exception:               # pragma: no cover - conservative fallback
        cap = 64 * 1024 * 1024      # v7x-sized physical VMEM
    return int(min(cap * 0.7, 100 * 1024 * 1024))


# ----------------------------- Pallas kernel ------------------------------ #

def _basic_block_kernel(*refs, taps1, taps2, rows, slab_off, plane2,
                        sc_plane, sc_off, proj):
    """Fused BasicBlock forward for one image.

    refs (proj=True) : ph1, w1, b1, w2, b2, mask, ws, bs, out, mid, acc1, acc2
    refs (proj=False): ph1, w1, b1, w2, b2, mask,          out, mid, acc1, acc2

      ph1  : (s*s, Hq1*Wq, Cin)  phase-decomposed, zero-padded input (bf16)
      w1   : (9, Cin, Cmid)      conv1 weights, BN1 scale folded (bf16)
      b1   : (1, Cmid)           folded BN1 bias (f32)
      w2   : (9, Cmid, Cout)     conv2 weights, BN2 scale folded (bf16)
      b2   : (1, Cout)           folded BN2 bias (f32)
      mask : (rows, 1)           1.0 on valid output columns, 0.0 on the
                                 flat-wide junk columns (f32)
      ws   : (Cin, Cout)         1x1 projection weights, BN scale folded (bf16)
      bs   : (1, Cout)           projection BN bias (f32)
      out  : (rows, Cout)        final block output, flat-wide layout (f32)
      mid  : (plane2, Cmid)      VMEM scratch: conv2's zero-padded input plane (bf16)
      acc1 : (rows, Cmid) f32    VMEM scratch accumulator for conv1
      acc2 : (rows, Cout) f32    VMEM scratch accumulator for conv2
    """
    if proj:
        ph1, w1, b1, w2, b2, mask, ws, bs, out, mid, acc1, acc2 = refs
    else:
        ph1, w1, b1, w2, b2, mask, out, mid, acc1, acc2 = refs

    # ---- conv1 (3x3, stride s) : sum of per-tap MXU matmuls, f32 accumulation.
    for t, (p, off, wi) in enumerate(taps1):
        xt = ph1[p, pl.ds(off, rows), :]                          # (rows, Cin) bf16
        d = jnp.dot(xt, w1[wi], preferred_element_type=jnp.float32)
        if t == 0:
            acc1[...] = d
        else:
            acc1[...] += d

    # bn1 bias + ReLU, junk columns masked to zero, written straight into
    # conv2's zero-padded flat-wide plane (bf16, VMEM-resident).
    act1 = jnp.maximum(acc1[...] + b1[...], 0.0) * mask[...]
    cmid = mid.shape[1]
    mid[pl.ds(0, slab_off), :] = jnp.zeros((slab_off, cmid), mid.dtype)
    mid[pl.ds(slab_off, rows), :] = act1.astype(mid.dtype)
    tail = plane2 - slab_off - rows
    mid[pl.ds(slab_off + rows, tail), :] = jnp.zeros((tail, cmid), mid.dtype)

    # ---- conv2 (3x3, stride 1) directly from the VMEM-resident plane.
    for t, (off, wi) in enumerate(taps2):
        xt = mid[pl.ds(off, rows), :]                             # (rows, Cmid) bf16
        d = jnp.dot(xt, w2[wi], preferred_element_type=jnp.float32)
        if t == 0:
            acc2[...] = d
        else:
            acc2[...] += d

    # bn2 bias + fused shortcut + ReLU, single expression -> one cast + store.
    res = acc2[...] + b2[...]
    sc = ph1[sc_plane, pl.ds(sc_off, rows), :]                    # shortcut source
    if proj:                                                      # 1x1 proj + BN
        res = res + jnp.dot(sc, ws[...], preferred_element_type=jnp.float32) + bs[...]
    else:                                                         # identity
        res = res + sc.astype(jnp.float32)
    out[...] = jnp.maximum(res, 0.0).astype(out.dtype)


# ------------------------------- JAX glue ---------------------------------- #

def _geometry(H, W, stride):
    """Geometry for a 3x3/pad-1 conv with the shared flat-wide width Wq."""
    Ho = (H + 2 - 3) // stride + 1
    Wo = (W + 2 - 3) // stride + 1
    q = 2 // stride                       # max per-tap shift within a phase plane
    Hq1 = Ho + q + 1                      # conv1 phase-plane height (+1 slack row)
    # Shared flat width: wide enough for conv2's pad-1 plane, multiple of 8
    # so dy*Wq tap offsets are sublane-aligned.
    Wq = _round_up(Wo + 2, 8)
    return Ho, Wo, Hq1, Wq


def phase_decompose(x, s, Hq, Wq):
    """(N,H,W,C) -> (N, s*s, Hq*Wq, C): zero-padded (pad=1) phase planes.

    phase[a*s+b][i*Wq + j] == x_zeropadded[a + i*s, b + j*s], so every 3x3
    tap is a contiguous, statically-offset row slice of one plane.
    """
    N, H, W, C = x.shape
    Hn, Wn = s * Hq, s * Wq
    xp = jnp.pad(x, ((0, 0), (1, Hn - H - 1), (1, Wn - W - 1), (0, 0)))
    ph = xp.reshape(N, Hq, s, Wq, s, C)
    ph = jnp.transpose(ph, (0, 2, 4, 1, 3, 5)).reshape(N, s * s, Hq * Wq, C)
    return ph


def fold_bn(gamma, beta, mean, var, eps=1e-5):
    scale = gamma / jnp.sqrt(var + eps)
    bias = beta - mean * scale
    return scale, bias


def basic_block_forward(x_nchw, params, stride):
    # Cast to bf16 BEFORE the layout passes so pad/transpose move half the bytes.
    x = jnp.transpose(x_nchw.astype(jnp.bfloat16), (0, 2, 3, 1))   # NCHW -> NHWC
    N, H, W, Cin = x.shape
    Cmid = params["w1"].shape[-1]
    Cout = Cmid
    s = stride

    s1, b1 = fold_bn(*params["bn1"])
    s2, b2 = fold_bn(*params["bn2"])
    w1 = (params["w1"] * s1).reshape(9, Cin, Cmid).astype(jnp.bfloat16)
    w2 = (params["w2"] * s2).reshape(9, Cmid, Cout).astype(jnp.bfloat16)
    b1 = b1.reshape(1, Cmid).astype(jnp.float32)
    b2 = b2.reshape(1, Cout).astype(jnp.float32)

    Ho, Wo, Hq1, Wq = _geometry(H, W, s)
    rows = Ho * Wq                         # flat-wide output rows (conv1 == conv2)
    plane1 = Hq1 * Wq                      # conv1 phase-plane rows
    slab_off = Wq + 1                      # conv1 out (0,0) inside conv2's padded plane
    plane2 = (Ho + 3) * Wq                 # conv2 padded-plane rows (incl. slack)

    ph1 = phase_decompose(x, s, Hq1, Wq)   # (N, s*s, plane1, Cin) bf16

    # Static tap schedules.
    taps1 = tuple(((dy % s) * s + (dx % s),
                   (dy // s) * Wq + (dx // s),
                   dy * 3 + dx)
                  for dy in range(3) for dx in range(3))
    taps2 = tuple((dy * Wq + dx, dy * 3 + dx)
                  for dy in range(3) for dx in range(3))

    # Shortcut source = x[i*s, j*s] lives at a fixed plane / offset of ph1.
    sc_plane = (1 % s) * s + (1 % s)
    sc_off = (1 // s) * (Wq + 1)

    # Valid-column mask for the flat-wide layout (junk columns -> 0 so they
    # become conv2's zero padding).
    col_valid = (np.arange(Wq) < Wo).astype(np.float32)
    mask = jnp.asarray(np.tile(col_valid, Ho).reshape(rows, 1))

    proj = "ws" in params
    args = [ph1, w1, b1, w2, b2, mask]
    in_specs = [
        pl.BlockSpec((None, s * s, plane1, Cin), lambda n: (n, 0, 0, 0)),
        pl.BlockSpec((9, Cin, Cmid), lambda n: (0, 0, 0)),
        pl.BlockSpec((1, Cmid), lambda n: (0, 0)),
        pl.BlockSpec((9, Cmid, Cout), lambda n: (0, 0, 0)),
        pl.BlockSpec((1, Cout), lambda n: (0, 0)),
        pl.BlockSpec((rows, 1), lambda n: (0, 0)),
    ]
    if proj:
        ss, bs = fold_bn(*params["bns"])
        ws = (params["ws"].reshape(Cin, Cout) * ss).astype(jnp.bfloat16)
        bs = bs.reshape(1, Cout).astype(jnp.float32)
        args += [ws, bs]
        in_specs += [pl.BlockSpec((Cin, Cout), lambda n: (0, 0)),
                     pl.BlockSpec((1, Cout), lambda n: (0, 0))]

    kernel = functools.partial(
        _basic_block_kernel, taps1=taps1, taps2=taps2, rows=rows,
        slab_off=slab_off, plane2=plane2, sc_plane=sc_plane, sc_off=sc_off,
        proj=proj)

    out_flat = pl.pallas_call(
        kernel,
        out_shape=jax.ShapeDtypeStruct((N, rows, Cout), jnp.float32),
        grid=(N,),
        in_specs=in_specs,
        out_specs=pl.BlockSpec((None, rows, Cout), lambda n: (n, 0, 0)),
        scratch_shapes=[
            pltpu.VMEM((plane2, Cmid), jnp.bfloat16),   # conv2 input plane
            pltpu.VMEM((rows, Cmid), jnp.float32),      # conv1 accumulator
            pltpu.VMEM((rows, Cout), jnp.float32),      # conv2 accumulator
        ],
        compiler_params=pltpu.CompilerParams(
            dimension_semantics=("parallel",),
            vmem_limit_bytes=_vmem_limit_bytes()),
    )(*args)

    out = out_flat.reshape(N, Ho, Wq, Cout)[:, :, :Wo, :]    # drop junk columns
    return jnp.transpose(out, (0, 3, 1, 2))                  # NHWC -> NCHW


# --------------------------- pure-JAX reference ---------------------------- #

def _ref_forward(x, params, stride):
    def conv(x, w_hwio, stride, pad):
        w_oihw = jnp.transpose(w_hwio, (3, 2, 0, 1))
        return jax.lax.conv_general_dilated(
            x, w_oihw, (stride, stride), ((pad, pad), (pad, pad)),
            dimension_numbers=("NCHW", "OIHW", "NCHW"))

    def bn(x, p):
        g, b, m, v = (a[None, :, None, None] for a in p)
        return (x - m) / jnp.sqrt(v + 1e-5) * g + b

    out = jax.nn.relu(bn(conv(x, params["w1"], stride, 1), params["bn1"]))
    out = bn(conv(out, params["w2"], 1, 1), params["bn2"])
    sc = x if "ws" not in params else bn(conv(x, params["ws"], stride, 0),
                                         params["bns"])
    return jax.nn.relu(out + sc)


# ------------------------------ init / main -------------------------------- #

def init_basic_block(key, in_planes, planes, stride):
    ks = jax.random.split(key, 16)

    def bn_params(k0, k1, k2, k3, c):
        return (jax.random.uniform(k0, (c,), minval=0.5, maxval=1.5),   # gamma
                jax.random.normal(k1, (c,)) * 0.1,                      # beta
                jax.random.normal(k2, (c,)) * 0.1,                      # running_mean
                jax.random.uniform(k3, (c,), minval=0.5, maxval=1.5))   # running_var

    p = {
        "w1": jax.random.normal(ks[0], (3, 3, in_planes, planes)) * 0.1,
        "bn1": bn_params(ks[1], ks[2], ks[3], ks[4], planes),
        "w2": jax.random.normal(ks[5], (3, 3, planes, planes)) * 0.1,
        "bn2": bn_params(ks[6], ks[7], ks[8], ks[9], planes),
    }
    if stride != 1 or in_planes != planes:
        p["ws"] = jax.random.normal(ks[10], (1, 1, in_planes, planes)) * 0.1
        p["bns"] = bn_params(ks[11], ks[12], ks[13], ks[14], planes)
    return p


if __name__ == "__main__":
    key = jax.random.PRNGKey(0)

    configs = [
        # (N, in_planes, H, W, planes, stride)
        (2, 4, 16, 16, 8, 2),   # stride 2 -> fused 1x1-conv projection shortcut
        (2, 8, 16, 16, 8, 1),   # identity shortcut
        (2, 4, 16, 16, 8, 1),   # stride 1 but channel change -> projection shortcut
    ]
    for cfg_i, (N, in_planes, H, W, planes, stride) in enumerate(configs):
        kx, kp = jax.random.split(jax.random.fold_in(key, cfg_i))
        x = jax.random.normal(kx, (N, in_planes, H, W), dtype=jnp.float32)
        params = init_basic_block(kp, in_planes, planes, stride)

        out = jax.block_until_ready(basic_block_forward(x, params, stride))
        ref = jax.block_until_ready(_ref_forward(x, params, stride))

        # bf16 MXU inputs / bf16 intermediate activation (f32 accumulation)
        # -> looser tolerance than pure f32.
        np.testing.assert_allclose(np.asarray(out), np.asarray(ref),
                                   rtol=3e-2, atol=3e-2)

    print("KERNEL_OK")
</pallas_src>

<mosaic_0001>
module attributes {stable_mosaic.version = 11 : i64} {
  func.func @_basic_block_kernel(%arg0: i32, %arg1: memref<1x4x160x4xbf16, #tpu.memory_space<vmem>>, %arg2: memref<9x4x8xbf16, #tpu.memory_space<vmem>>, %arg3: memref<1x8xf32, #tpu.memory_space<vmem>>, %arg4: memref<9x8x8xbf16, #tpu.memory_space<vmem>>, %arg5: memref<1x8xf32, #tpu.memory_space<vmem>>, %arg6: memref<128x1xf32, #tpu.memory_space<vmem>>, %arg7: memref<4x8xbf16, #tpu.memory_space<vmem>>, %arg8: memref<1x8xf32, #tpu.memory_space<vmem>>, %arg9: memref<1x128x8xf32, #tpu.memory_space<vmem>>, %arg10: memref<176x8xbf16, #tpu.memory_space<vmem>>, %arg11: memref<128x8xf32, #tpu.memory_space<vmem>>, %arg12: memref<128x8xf32, #tpu.memory_space<vmem>>) attributes {dimension_semantics = [#tpu.dimension_semantics<parallel>], iteration_bounds = array<i64: 2>, scalar_prefetch = 0 : i64, scratch_operands = 3 : i64, tpu.core_type = #tpu.core_type<tc>, window_params = [{transform_indices = @transform_0, window_bounds = array<i64: 1, 4, 160, 4>}, {pipeline_mode = #tpu.pipeline_mode<synchronous>, transform_indices = @transform_1, window_bounds = array<i64: 9, 4, 8>}, {pipeline_mode = #tpu.pipeline_mode<synchronous>, transform_indices = @transform_2, window_bounds = array<i64: 1, 8>}, {pipeline_mode = #tpu.pipeline_mode<synchronous>, transform_indices = @transform_3, window_bounds = array<i64: 9, 8, 8>}, {pipeline_mode = #tpu.pipeline_mode<synchronous>, transform_indices = @transform_4, window_bounds = array<i64: 1, 8>}, {pipeline_mode = #tpu.pipeline_mode<synchronous>, transform_indices = @transform_5, window_bounds = array<i64: 128, 1>}, {pipeline_mode = #tpu.pipeline_mode<synchronous>, transform_indices = @transform_6, window_bounds = array<i64: 4, 8>}, {pipeline_mode = #tpu.pipeline_mode<synchronous>, transform_indices = @transform_7, window_bounds = array<i64: 1, 8>}, {transform_indices = @transform_8, window_bounds = array<i64: 1, 128, 8>}]} {
    %c0 = arith.constant 0 : index
    %c0_0 = arith.constant 0 : index
    %c0_1 = arith.constant 0 : index
    %c0_2 = arith.constant 0 : index
    %0 = vector.load %arg1[%c0, %c0_0, %c0_1, %c0_2] : memref<1x4x160x4xbf16, #tpu.memory_space<vmem>>, vector<1x1x128x4xbf16>
    %1 = vector.shape_cast %0 : vector<1x1x128x4xbf16> to vector<128x4xbf16>
    %c0_3 = arith.constant 0 : index
    %c0_4 = arith.constant 0 : index
    %c0_5 = arith.constant 0 : index
    %2 = vector.load %arg2[%c0_3, %c0_4, %c0_5] : memref<9x4x8xbf16, #tpu.memory_space<vmem>>, vector<1x4x8xbf16>
    %3 = vector.shape_cast %2 : vector<1x4x8xbf16> to vector<4x8xbf16>
    %cst = arith.constant dense<0.000000e+00> : vector<128x8xf32>
    %4 = tpu.matmul %1, %3, %cst {dimension_numbers = #tpu.dot_dimension_numbers<[1], [0], [0], [1], [0, 0, 1, 1], [], []>} : vector<128x4xbf16>, vector<4x8xbf16>, vector<128x8xf32> -> vector<128x8xf32>
    %c0_6 = arith.constant 0 : index
    %c0_7 = arith.constant 0 : index
    %5 = vector.load %arg11[%c0_6, %c0_7] : memref<128x8xf32, #tpu.memory_space<vmem>>, vector<128x8xf32>
    tpu.vector_store %arg11[%c0_6, %c0_7], %4 {strides = array<i32>} : memref<128x8xf32, #tpu.memory_space<vmem>>, vector<128x8xf32>,
    %c0_8 = arith.constant 0 : index
    %c1 = arith.constant 1 : index
    %c0_9 = arith.constant 0 : index
    %c0_10 = arith.constant 0 : index
    %6 = vector.load %arg1[%c0_8, %c1, %c0_9, %c0_10] : memref<1x4x160x4xbf16, #tpu.memory_space<vmem>>, vector<1x1x128x4xbf16>
    %7 = vector.shape_cast %6 : vector<1x1x128x4xbf16> to vector<128x4xbf16>
    %c1_11 = arith.constant 1 : index
    %c0_12 = arith.constant 0 : index
    %c0_13 = arith.constant 0 : index
    %8 = vector.load %arg2[%c1_11, %c0_12, %c0_13] : memref<9x4x8xbf16, #tpu.memory_space<vmem>>, vector<1x4x8xbf16>
    %9 = vector.shape_cast %8 : vector<1x4x8xbf16> to vector<4x8xbf16>
    %cst_14 = arith.constant dense<0.000000e+00> : vector<128x8xf32>
    %10 = tpu.matmul %7, %9, %cst_14 {dimension_numbers = #tpu.dot_dimension_numbers<[1], [0], [0], [1], [0, 0, 1, 1], [], []>} : vector<128x4xbf16>, vector<4x8xbf16>, vector<128x8xf32> -> vector<128x8xf32>
    %c0_15 = arith.constant 0 : index
    %c0_16 = arith.constant 0 : index
    %11 = vector.load %arg11[%c0_15, %c0_16] : memref<128x8xf32, #tpu.memory_space<vmem>>, vector<128x8xf32>
    %12 = arith.addf %11, %10 : vector<128x8xf32>
    %c0_17 = arith.constant 0 : index
    %c0_18 = arith.constant 0 : index
    %13 = vector.load %arg11[%c0_17, %c0_18] : memref<128x8xf32, #tpu.memory_space<vmem>>, vector<128x8xf32>
    tpu.vector_store %arg11[%c0_17, %c0_18], %12 {strides = array<i32>} : memref<128x8xf32, #tpu.memory_space<vmem>>, vector<128x8xf32>,
    %c0_19 = arith.constant 0 : index
    %c0_20 = arith.constant 0 : index
    %c1_21 = arith.constant 1 : index
    %c0_22 = arith.constant 0 : index
    %14 = vector.load %arg1[%c0_19, %c0_20, %c1_21, %c0_22] : memref<1x4x160x4xbf16, #tpu.memory_space<vmem>>, vector<1x1x128x4xbf16>
    %15 = vector.shape_cast %14 : vector<1x1x128x4xbf16> to vector<128x4xbf16>
    %c2 = arith.constant 2 : index
    %c0_23 = arith.constant 0 : index
    %c0_24 = arith.constant 0 : index
    %16 = vector.load %arg2[%c2, %c0_23, %c0_24] : memref<9x4x8xbf16, #tpu.memory_space<vmem>>, vector<1x4x8xbf16>
    %17 = vector.shape_cast %16 : vector<1x4x8xbf16> to vector<4x8xbf16>
    %cst_25 = arith.constant dense<0.000000e+00> : vector<128x8xf32>
    %18 = tpu.matmul %15, %17, %cst_25 {dimension_numbers = #tpu.dot_dimension_numbers<[1], [0], [0], [1], [0, 0, 1, 1], [], []>} : vector<128x4xbf16>, vector<4x8xbf16>, vector<128x8xf32> -> vector<128x8xf32>
    %c0_26 = arith.constant 0 : index
    %c0_27 = arith.constant 0 : index
    %19 = vector.load %arg11[%c0_26, %c0_27] : memref<128x8xf32, #tpu.memory_space<vmem>>, vector<128x8xf32>
    %20 = arith.addf %19, %18 : vector<128x8xf32>
    %c0_28 = arith.constant 0 : index
    %c0_29 = arith.constant 0 : index
    %21 = vector.load %arg11[%c0_28, %c0_29] : memref<128x8xf32, #tpu.memory_space<vmem>>, vector<128x8xf32>
    tpu.vector_store %arg11[%c0_28, %c0_29], %20 {strides = array<i32>} : memref<128x8xf32, #tpu.memory_space<vmem>>, vector<128x8xf32>,
    %c0_30 = arith.constant 0 : index
    %c2_31 = arith.constant 2 : index
    %c0_32 = arith.constant 0 : index
    %c0_33 = arith.constant 0 : index
    %22 = vector.load %arg1[%c0_30, %c2_31, %c0_32, %c0_33] : memref<1x4x160x4xbf16, #tpu.memory_space<vmem>>, vector<1x1x128x4xbf16>
    %23 = vector.shape_cast %22 : vector<1x1x128x4xbf16> to vector<128x4xbf16>
    %c3 = arith.constant 3 : index
    %c0_34 = arith.constant 0 : index
    %c0_35 = arith.constant 0 : index
    %24 = vector.load %arg2[%c3, %c0_34, %c0_35] : memref<9x4x8xbf16, #tpu.memory_space<vmem>>, vector<1x4x8xbf16>
    %25 = vector.shape_cast %24 : vector<1x4x8xbf16> to vector<4x8xbf16>
    %cst_36 = arith.constant dense<0.000000e+00> : vector<128x8xf32>
    %26 = tpu.matmul %23, %25, %cst_36 {dimension_numbers = #tpu.dot_dimension_numbers<[1], [0], [0], [1], [0, 0, 1, 1], [], []>} : vector<128x4xbf16>, vector<4x8xbf16>, vector<128x8xf32> -> vector<128x8xf32>
    %c0_37 = arith.constant 0 : index
    %c0_38 = arith.constant 0 : index
    %27 = vector.load %arg11[%c0_37, %c0_38] : memref<128x8xf32, #tpu.memory_space<vmem>>, vector<128x8xf32>
    %28 = arith.addf %27, %26 : vector<128x8xf32>
    %c0_39 = arith.constant 0 : index
    %c0_40 = arith.constant 0 : index
    %29 = vector.load %arg11[%c0_39, %c0_40] : memref<128x8xf32, #tpu.memory_space<vmem>>, vector<128x8xf32>
    tpu.vector_store %arg11[%c0_39, %c0_40], %28 {strides = array<i32>} : memref<128x8xf32, #tpu.memory_space<vmem>>, vector<128x8xf32>,
    %c0_41 = arith.constant 0 : index
    %c3_42 = arith.constant 3 : index
    %c0_43 = arith.constant 0 : index
    %c0_44 = arith.constant 0 : index
    %30 = vector.load %arg1[%c0_41, %c3_42, %c0_43, %c0_44] : memref<1x4x160x4xbf16, #tpu.memory_space<vmem>>, vector<1x1x128x4xbf16>
    %31 = vector.shape_cast %30 : vector<1x1x128x4xbf16> to vector<128x4xbf16>
    %c4 = arith.constant 4 : index
    %c0_45 = arith.constant 0 : index
    %c0_46 = arith.constant 0 : index
    %32 = vector.load %arg2[%c4, %c0_45, %c0_46] : memref<9x4x8xbf16, #tpu.memory_space<vmem>>, vector<1x4x8xbf16>
    %33 = vector.shape_cast %32 : vector<1x4x8xbf16> to vector<4x8xbf16>
    %cst_47 = arith.constant dense<0.000000e+00> : vector<128x8xf32>
    %34 = tpu.matmul %31, %33, %cst_47 {dimension_numbers = #tpu.dot_dimension_numbers<[1], [0], [0], [1], [0, 0, 1, 1], [], []>} : vector<128x4xbf16>, vector<4x8xbf16>, vector<128x8xf32> -> vector<128x8xf32>
    %c0_48 = arith.constant 0 : index
    %c0_49 = arith.constant 0 : index
    %35 = vector.load %arg11[%c0_48, %c0_49] : memref<128x8xf32, #tpu.memory_space<vmem>>, vector<128x8xf32>
    %36 = arith.addf %35, %34 : vector<128x8xf32>
    %c0_50 = arith.constant 0 : index
    %c0_51 = arith.constant 0 : index
    %37 = vector.load %arg11[%c0_50, %c0_51] : memref<128x8xf32, #tpu.memory_space<vmem>>, vector<128x8xf32>
    tpu.vector_store %arg11[%c0_50, %c0_51], %36 {strides = array<i32>} : memref<128x8xf32, #tpu.memory_space<vmem>>, vector<128x8xf32>,
    %c0_52 = arith.constant 0 : index
    %c2_53 = arith.constant 2 : index
    %c1_54 = arith.constant 1 : index
    %c0_55 = arith.constant 0 : index
    %38 = vector.load %arg1[%c0_52, %c2_53, %c1_54, %c0_55] : memref<1x4x160x4xbf16, #tpu.memory_space<vmem>>, vector<1x1x128x4xbf16>
    %39 = vector.shape_cast %38 : vector<1x1x128x4xbf16> to vector<128x4xbf16>
    %c5 = arith.constant 5 : index
    %c0_56 = arith.constant 0 : index
    %c0_57 = arith.constant 0 : index
    %40 = vector.load %arg2[%c5, %c0_56, %c0_57] : memref<9x4x8xbf16, #tpu.memory_space<vmem>>, vector<1x4x8xbf16>
    %41 = vector.shape_cast %40 : vector<1x4x8xbf16> to vector<4x8xbf16>
    %cst_58 = arith.constant dense<0.000000e+00> : vector<128x8xf32>
    %42 = tpu.matmul %39, %41, %cst_58 {dimension_numbers = #tpu.dot_dimension_numbers<[1], [0], [0], [1], [0, 0, 1, 1], [], []>} : vector<128x4xbf16>, vector<4x8xbf16>, vector<128x8xf32> -> vector<128x8xf32>
    %c0_59 = arith.constant 0 : index
    %c0_60 = arith.constant 0 : index
    %43 = vector.load %arg11[%c0_59, %c0_60] : memref<128x8xf32, #tpu.memory_space<vmem>>, vector<128x8xf32>
    %44 = arith.addf %43, %42 : vector<128x8xf32>
    %c0_61 = arith.constant 0 : index
    %c0_62 = arith.constant 0 : index
    %45 = vector.load %arg11[%c0_61, %c0_62] : memref<128x8xf32, #tpu.memory_space<vmem>>, vector<128x8xf32>
    tpu.vector_store %arg11[%c0_61, %c0_62], %44 {strides = array<i32>} : memref<128x8xf32, #tpu.memory_space<vmem>>, vector<128x8xf32>,
    %c0_63 = arith.constant 0 : index
    %c0_64 = arith.constant 0 : index
    %c16 = arith.constant 16 : index
    %c0_65 = arith.constant 0 : index
    %46 = vector.load %arg1[%c0_63, %c0_64, %c16, %c0_65] : memref<1x4x160x4xbf16, #tpu.memory_space<vmem>>, vector<1x1x128x4xbf16>
    %47 = vector.shape_cast %46 : vector<1x1x128x4xbf16> to vector<128x4xbf16>
    %c6 = arith.constant 6 : index
    %c0_66 = arith.constant 0 : index
    %c0_67 = arith.constant 0 : index
    %48 = vector.load %arg2[%c6, %c0_66, %c0_67] : memref<9x4x8xbf16, #tpu.memory_space<vmem>>, vector<1x4x8xbf16>
    %49 = vector.shape_cast %48 : vector<1x4x8xbf16> to vector<4x8xbf16>
    %cst_68 = arith.constant dense<0.000000e+00> : vector<128x8xf32>
    %50 = tpu.matmul %47, %49, %cst_68 {dimension_numbers = #tpu.dot_dimension_numbers<[1], [0], [0], [1], [0, 0, 1, 1], [], []>} : vector<128x4xbf16>, vector<4x8xbf16>, vector<128x8xf32> -> vector<128x8xf32>
    %c0_69 = arith.constant 0 : index
    %c0_70 = arith.constant 0 : index
    %51 = vector.load %arg11[%c0_69, %c0_70] : memref<128x8xf32, #tpu.memory_space<vmem>>, vector<128x8xf32>
    %52 = arith.addf %51, %50 : vector<128x8xf32>
    %c0_71 = arith.constant 0 : index
    %c0_72 = arith.constant 0 : index
    %53 = vector.load %arg11[%c0_71, %c0_72] : memref<128x8xf32, #tpu.memory_space<vmem>>, vector<128x8xf32>
    tpu.vector_store %arg11[%c0_71, %c0_72], %52 {strides = array<i32>} : memref<128x8xf32, #tpu.memory_space<vmem>>, vector<128x8xf32>,
    %c0_73 = arith.constant 0 : index
    %c1_74 = arith.constant 1 : index
    %c16_75 = arith.constant 16 : index
    %c0_76 = arith.constant 0 : index
    %54 = vector.load %arg1[%c0_73, %c1_74, %c16_75, %c0_76] : memref<1x4x160x4xbf16, #tpu.memory_space<vmem>>, vector<1x1x128x4xbf16>
    %55 = vector.shape_cast %54 : vector<1x1x128x4xbf16> to vector<128x4xbf16>
    %c7 = arith.constant 7 : index
    %c0_77 = arith.constant 0 : index
    %c0_78 = arith.constant 0 : index
    %56 = vector.load %arg2[%c7, %c0_77, %c0_78] : memref<9x4x8xbf16, #tpu.memory_space<vmem>>, vector<1x4x8xbf16>
    %57 = vector.shape_cast %56 : vector<1x4x8xbf16> to vector<4x8xbf16>
    %cst_79 = arith.constant dense<0.000000e+00> : vector<128x8xf32>
    %58 = tpu.matmul %55, %57, %cst_79 {dimension_numbers = #tpu.dot_dimension_numbers<[1], [0], [0], [1], [0, 0, 1, 1], [], []>} : vector<128x4xbf16>, vector<4x8xbf16>, vector<128x8xf32> -> vector<128x8xf32>
    %c0_80 = arith.constant 0 : index
    %c0_81 = arith.constant 0 : index
    %59 = vector.load %arg11[%c0_80, %c0_81] : memref<128x8xf32, #tpu.memory_space<vmem>>, vector<128x8xf32>
    %60 = arith.addf %59, %58 : vector<128x8xf32>
    %c0_82 = arith.constant 0 : index
    %c0_83 = arith.constant 0 : index
    %61 = vector.load %arg11[%c0_82, %c0_83] : memref<128x8xf32, #tpu.memory_space<vmem>>, vector<128x8xf32>
    tpu.vector_store %arg11[%c0_82, %c0_83], %60 {strides = array<i32>} : memref<128x8xf32, #tpu.memory_space<vmem>>, vector<128x8xf32>,
    %c0_84 = arith.constant 0 : index
    %c0_85 = arith.constant 0 : index
    %c17 = arith.constant 17 : index
    %c0_86 = arith.constant 0 : index
    %62 = vector.load %arg1[%c0_84, %c0_85, %c17, %c0_86] : memref<1x4x160x4xbf16, #tpu.memory_space<vmem>>, vector<1x1x128x4xbf16>
    %63 = vector.shape_cast %62 : vector<1x1x128x4xbf16> to vector<128x4xbf16>
    %c8 = arith.constant 8 : index
    %c0_87 = arith.constant 0 : index
    %c0_88 = arith.constant 0 : index
    %64 = vector.load %arg2[%c8, %c0_87, %c0_88] : memref<9x4x8xbf16, #tpu.memory_space<vmem>>, vector<1x4x8xbf16>
    %65 = vector.shape_cast %64 : vector<1x4x8xbf16> to vector<4x8xbf16>
    %cst_89 = arith.constant dense<0.000000e+00> : vector<128x8xf32>
    %66 = tpu.matmul %63, %65, %cst_89 {dimension_numbers = #tpu.dot_dimension_numbers<[1], [0], [0], [1], [0, 0, 1, 1], [], []>} : vector<128x4xbf16>, vector<4x8xbf16>, vector<128x8xf32> -> vector<128x8xf32>
    %c0_90 = arith.constant 0 : index
    %c0_91 = arith.constant 0 : index
    %67 = vector.load %arg11[%c0_90, %c0_91] : memref<128x8xf32, #tpu.memory_space<vmem>>, vector<128x8xf32>
    %68 = arith.addf %67, %66 : vector<128x8xf32>
    %c0_92 = arith.constant 0 : index
    %c0_93 = arith.constant 0 : index
    %69 = vector.load %arg11[%c0_92, %c0_93] : memref<128x8xf32, #tpu.memory_space<vmem>>, vector<128x8xf32>
    tpu.vector_store %arg11[%c0_92, %c0_93], %68 {strides = array<i32>} : memref<128x8xf32, #tpu.memory_space<vmem>>, vector<128x8xf32>,
    %c0_94 = arith.constant 0 : index
    %c0_95 = arith.constant 0 : index
    %70 = vector.load %arg11[%c0_94, %c0_95] : memref<128x8xf32, #tpu.memory_space<vmem>>, vector<128x8xf32>
    %c0_96 = arith.constant 0 : index
    %c0_97 = arith.constant 0 : index
    %71 = vector.load %arg3[%c0_96, %c0_97] : memref<1x8xf32, #tpu.memory_space<vmem>>, vector<1x8xf32>
    %72 = vector.broadcast %71 : vector<1x8xf32> to vector<128x8xf32>
    %73 = arith.addf %70, %72 : vector<128x8xf32>
    %cst_98 = arith.constant 0.000000e+00 : f32
    %74 = vector.broadcast %cst_98 : f32 to vector<128x8xf32>
    %75 = arith.maximumf %73, %74 : vector<128x8xf32>
    %c0_99 = arith.constant 0 : index
    %c0_100 = arith.constant 0 : index
    %76 = vector.load %arg6[%c0_99, %c0_100] : memref<128x1xf32, #tpu.memory_space<vmem>>, vector<128x1xf32>
    %77 = vector.broadcast %76 : vector<128x1xf32> to vector<128x8xf32>
    %78 = arith.mulf %75, %77 : vector<128x8xf32>
    %cst_101 = arith.constant 0.000000e+00 : bf16
    %79 = vector.broadcast %cst_101 : bf16 to vector<17x8xbf16>
    %c0_102 = arith.constant 0 : index
    %c0_103 = arith.constant 0 : index
    %80 = vector.load %arg10[%c0_102, %c0_103] : memref<176x8xbf16, #tpu.memory_space<vmem>>, vector<17x8xbf16>
    tpu.vector_store %arg10[%c0_102, %c0_103], %79 {strides = array<i32>} : memref<176x8xbf16, #tpu.memory_space<vmem>>, vector<17x8xbf16>,
    %81 = arith.truncf %78 : vector<128x8xf32> to vector<128x8xbf16>
    %c17_104 = arith.constant 17 : index
    %c0_105 = arith.constant 0 : index
    %82 = vector.load %arg10[%c17_104, %c0_105] : memref<176x8xbf16, #tpu.memory_space<vmem>>, vector<128x8xbf16>
    tpu.vector_store %arg10[%c17_104, %c0_105], %81 {strides = array<i32>} : memref<176x8xbf16, #tpu.memory_space<vmem>>, vector<128x8xbf16>,
    %cst_106 = arith.constant 0.000000e+00 : bf16
    %83 = vector.broadcast %cst_106 : bf16 to vector<31x8xbf16>
    %c145 = arith.constant 145 : index
    %c0_107 = arith.constant 0 : index
    %84 = vector.load %arg10[%c145, %c0_107] : memref<176x8xbf16, #tpu.memory_space<vmem>>, vector<31x8xbf16>
    tpu.vector_store %arg10[%c145, %c0_107], %83 {strides = array<i32>} : memref<176x8xbf16, #tpu.memory_space<vmem>>, vector<31x8xbf16>,
    %c0_108 = arith.constant 0 : index
    %c0_109 = arith.constant 0 : index
    %85 = vector.load %arg10[%c0_108, %c0_109] : memref<176x8xbf16, #tpu.memory_space<vmem>>, vector<128x8xbf16>
    %c0_110 = arith.constant 0 : index
    %c0_111 = arith.constant 0 : index
    %c0_112 = arith.constant 0 : index
    %86 = vector.load %arg4[%c0_110, %c0_111, %c0_112] : memref<9x8x8xbf16, #tpu.memory_space<vmem>>, vector<1x8x8xbf16>
    %87 = vector.shape_cast %86 : vector<1x8x8xbf16> to vector<8x8xbf16>
    %cst_113 = arith.constant dense<0.000000e+00> : vector<128x8xf32>
    %88 = tpu.matmul %85, %87, %cst_113 {dimension_numbers = #tpu.dot_dimension_numbers<[1], [0], [0], [1], [0, 0, 1, 1], [], []>} : vector<128x8xbf16>, vector<8x8xbf16>, vector<128x8xf32> -> vector<128x8xf32>
    %c0_114 = arith.constant 0 : index
    %c0_115 = arith.constant 0 : index
    %89 = vector.load %arg12[%c0_114, %c0_115] : memref<128x8xf32, #tpu.memory_space<vmem>>, vector<128x8xf32>
    tpu.vector_store %arg12[%c0_114, %c0_115], %88 {strides = array<i32>} : memref<128x8xf32, #tpu.memory_space<vmem>>, vector<128x8xf32>,
    %c1_116 = arith.constant 1 : index
    %c0_117 = arith.constant 0 : index
    %90 = vector.load %arg10[%c1_116, %c0_117] : memref<176x8xbf16, #tpu.memory_space<vmem>>, vector<128x8xbf16>
    %c1_118 = arith.constant 1 : index
    %c0_119 = arith.constant 0 : index
    %c0_120 = arith.constant 0 : index
    %91 = vector.load %arg4[%c1_118, %c0_119, %c0_120] : memref<9x8x8xbf16, #tpu.memory_space<vmem>>, vector<1x8x8xbf16>
    %92 = vector.shape_cast %91 : vector<1x8x8xbf16> to vector<8x8xbf16>
    %cst_121 = arith.constant dense<0.000000e+00> : vector<128x8xf32>
    %93 = tpu.matmul %90, %92, %cst_121 {dimension_numbers = #tpu.dot_dimension_numbers<[1], [0], [0], [1], [0, 0, 1, 1], [], []>} : vector<128x8xbf16>, vector<8x8xbf16>, vector<128x8xf32> -> vector<128x8xf32>
    %c0_122 = arith.constant 0 : index
    %c0_123 = arith.constant 0 : index
    %94 = vector.load %arg12[%c0_122, %c0_123] : memref<128x8xf32, #tpu.memory_space<vmem>>, vector<128x8xf32>
    %95 = arith.addf %94, %93 : vector<128x8xf32>
    %c0_124 = arith.constant 0 : index
    %c0_125 = arith.constant 0 : index
    %96 = vector.load %arg12[%c0_124, %c0_125] : memref<128x8xf32, #tpu.memory_space<vmem>>, vector<128x8xf32>
    tpu.vector_store %arg12[%c0_124, %c0_125], %95 {strides = array<i32>} : memref<128x8xf32, #tpu.memory_space<vmem>>, vector<128x8xf32>,
    %c2_126 = arith.constant 2 : index
    %c0_127 = arith.constant 0 : index
    %97 = vector.load %arg10[%c2_126, %c0_127] : memref<176x8xbf16, #tpu.memory_space<vmem>>, vector<128x8xbf16>
    %c2_128 = arith.constant 2 : index
    %c0_129 = arith.constant 0 : index
    %c0_130 = arith.constant 0 : index
    %98 = vector.load %arg4[%c2_128, %c0_129, %c0_130] : memref<9x8x8xbf16, #tpu.memory_space<vmem>>, vector<1x8x8xbf16>
    %99 = vector.shape_cast %98 : vector<1x8x8xbf16> to vector<8x8xbf16>
    %cst_131 = arith.constant dense<0.000000e+00> : vector<128x8xf32>
    %100 = tpu.matmul %97, %99, %cst_131 {dimension_numbers = #tpu.dot_dimension_numbers<[1], [0], [0], [1], [0, 0, 1, 1], [], []>} : vector<128x8xbf16>, vector<8x8xbf16>, vector<128x8xf32> -> vector<128x8xf32>
    %c0_132 = arith.constant 0 : index
    %c0_133 = arith.constant 0 : index
    %101 = vector.load %arg12[%c0_132, %c0_133] : memref<128x8xf32, #tpu.memory_space<vmem>>, vector<128x8xf32>
    %102 = arith.addf %101, %100 : vector<128x8xf32>
    %c0_134 = arith.constant 0 : index
    %c0_135 = arith.constant 0 : index
    %103 = vector.load %arg12[%c0_134, %c0_135] : memref<128x8xf32, #tpu.memory_space<vmem>>, vector<128x8xf32>
    tpu.vector_store %arg12[%c0_134, %c0_135], %102 {strides = array<i32>} : memref<128x8xf32, #tpu.memory_space<vmem>>, vector<128x8xf32>,
    %c16_136 = arith.constant 16 : index
    %c0_137 = arith.constant 0 : index
    %104 = vector.load %arg10[%c16_136, %c0_137] : memref<176x8xbf16, #tpu.memory_space<vmem>>, vector<128x8xbf16>
    %c3_138 = arith.constant 3 : index
    %c0_139 = arith.constant 0 : index
    %c0_140 = arith.constant 0 : index
    %105 = vector.load %arg4[%c3_138, %c0_139, %c0_140] : memref<9x8x8xbf16, #tpu.memory_space<vmem>>, vector<1x8x8xbf16>
    %106 = vector.shape_cast %105 : vector<1x8x8xbf16> to vector<8x8xbf16>
    %cst_141 = arith.constant dense<0.000000e+00> : vector<128x8xf32>
    %107 = tpu.matmul %104, %106, %cst_141 {dimension_numbers = #tpu.dot_dimension_numbers<[1], [0], [0], [1], [0, 0, 1, 1], [], []>} : vector<128x8xbf16>, vector<8x8xbf16>, vector<128x8xf32> -> vector<128x8xf32>
    %c0_142 = arith.constant 0 : index
    %c0_143 = arith.constant 0 : index
    %108 = vector.load %arg12[%c0_142, %c0_143] : memref<128x8xf32, #tpu.memory_space<vmem>>, vector<128x8xf32>
    %109 = arith.addf %108, %107 : vector<128x8xf32>
    %c0_144 = arith.constant 0 : index
    %c0_145 = arith.constant 0 : index
    %110 = vector.load %arg12[%c0_144, %c0_145] : memref<128x8xf32, #tpu.memory_space<vmem>>, vector<128x8xf32>
    tpu.vector_store %arg12[%c0_144, %c0_145], %109 {strides = array<i32>} : memref<128x8xf32, #tpu.memory_space<vmem>>, vector<128x8xf32>,
    %c17_146 = arith.constant 17 : index
    %c0_147 = arith.constant 0 : index
    %111 = vector.load %arg10[%c17_146, %c0_147] : memref<176x8xbf16, #tpu.memory_space<vmem>>, vector<128x8xbf16>
    %c4_148 = arith.constant 4 : index
    %c0_149 = arith.constant 0 : index
    %c0_150 = arith.constant 0 : index
    %112 = vector.load %arg4[%c4_148, %c0_149, %c0_150] : memref<9x8x8xbf16, #tpu.memory_space<vmem>>, vector<1x8x8xbf16>
    %113 = vector.shape_cast %112 : vector<1x8x8xbf16> to vector<8x8xbf16>
    %cst_151 = arith.constant dense<0.000000e+00> : vector<128x8xf32>
    %114 = tpu.matmul %111, %113, %cst_151 {dimension_numbers = #tpu.dot_dimension_numbers<[1], [0], [0], [1], [0, 0, 1, 1], [], []>} : vector<128x8xbf16>, vector<8x8xbf16>, vector<128x8xf32> -> vector<128x8xf32>
    %c0_152 = arith.constant 0 : index
    %c0_153 = arith.constant 0 : index
    %115 = vector.load %arg12[%c0_152, %c0_153] : memref<128x8xf32, #tpu.memory_space<vmem>>, vector<128x8xf32>
    %116 = arith.addf %115, %114 : vector<128x8xf32>
    %c0_154 = arith.constant 0 : index
    %c0_155 = arith.constant 0 : index
    %117 = vector.load %arg12[%c0_154, %c0_155] : memref<128x8xf32, #tpu.memory_space<vmem>>, vector<128x8xf32>
    tpu.vector_store %arg12[%c0_154, %c0_155], %116 {strides = array<i32>} : memref<128x8xf32, #tpu.memory_space<vmem>>, vector<128x8xf32>,
    %c18 = arith.constant 18 : index
    %c0_156 = arith.constant 0 : index
    %118 = vector.load %arg10[%c18, %c0_156] : memref<176x8xbf16, #tpu.memory_space<vmem>>, vector<128x8xbf16>
    %c5_157 = arith.constant 5 : index
    %c0_158 = arith.constant 0 : index
    %c0_159 = arith.constant 0 : index
    %119 = vector.load %arg4[%c5_157, %c0_158, %c0_159] : memref<9x8x8xbf16, #tpu.memory_space<vmem>>, vector<1x8x8xbf16>
    %120 = vector.shape_cast %119 : vector<1x8x8xbf16> to vector<8x8xbf16>
    %cst_160 = arith.constant dense<0.000000e+00> : vector<128x8xf32>
    %121 = tpu.matmul %118, %120, %cst_160 {dimension_numbers = #tpu.dot_dimension_numbers<[1], [0], [0], [1], [0, 0, 1, 1], [], []>} : vector<128x8xbf16>, vector<8x8xbf16>, vector<128x8xf32> -> vector<128x8xf32>
    %c0_161 = arith.constant 0 : index
    %c0_162 = arith.constant 0 : index
    %122 = vector.load %arg12[%c0_161, %c0_162] : memref<128x8xf32, #tpu.memory_space<vmem>>, vector<128x8xf32>
    %123 = arith.addf %122, %121 : vector<128x8xf32>
    %c0_163 = arith.constant 0 : index
    %c0_164 = arith.constant 0 : index
    %124 = vector.load %arg12[%c0_163, %c0_164] : memref<128x8xf32, #tpu.memory_space<vmem>>, vector<128x8xf32>
    tpu.vector_store %arg12[%c0_163, %c0_164], %123 {strides = array<i32>} : memref<128x8xf32, #tpu.memory_space<vmem>>, vector<128x8xf32>,
    %c32 = arith.constant 32 : index
    %c0_165 = arith.constant 0 : index
    %125 = vector.load %arg10[%c32, %c0_165] : memref<176x8xbf16, #tpu.memory_space<vmem>>, vector<128x8xbf16>
    %c6_166 = arith.constant 6 : index
    %c0_167 = arith.constant 0 : index
    %c0_168 = arith.constant 0 : index
    %126 = vector.load %arg4[%c6_166, %c0_167, %c0_168] : memref<9x8x8xbf16, #tpu.memory_space<vmem>>, vector<1x8x8xbf16>
    %127 = vector.shape_cast %126 : vector<1x8x8xbf16> to vector<8x8xbf16>
    %cst_169 = arith.constant dense<0.000000e+00> : vector<128x8xf32>
    %128 = tpu.matmul %125, %127, %cst_169 {dimension_numbers = #tpu.dot_dimension_numbers<[1], [0], [0], [1], [0, 0, 1, 1], [], []>} : vector<128x8xbf16>, vector<8x8xbf16>, vector<128x8xf32> -> vector<128x8xf32>
    %c0_170 = arith.constant 0 : index
    %c0_171 = arith.constant 0 : index
    %129 = vector.load %arg12[%c0_170, %c0_171] : memref<128x8xf32, #tpu.memory_space<vmem>>, vector<128x8xf32>
    %130 = arith.addf %129, %128 : vector<128x8xf32>
    %c0_172 = arith.constant 0 : index
    %c0_173 = arith.constant 0 : index
    %131 = vector.load %arg12[%c0_172, %c0_173] : memref<128x8xf32, #tpu.memory_space<vmem>>, vector<128x8xf32>
    tpu.vector_store %arg12[%c0_172, %c0_173], %130 {strides = array<i32>} : memref<128x8xf32, #tpu.memory_space<vmem>>, vector<128x8xf32>,
    %c33 = arith.constant 33 : index
    %c0_174 = arith.constant 0 : index
    %132 = vector.load %arg10[%c33, %c0_174] : memref<176x8xbf16, #tpu.memory_space<vmem>>, vector<128x8xbf16>
    %c7_175 = arith.constant 7 : index
    %c0_176 = arith.constant 0 : index
    %c0_177 = arith.constant 0 : index
    %133 = vector.load %arg4[%c7_175, %c0_176, %c0_177] : memref<9x8x8xbf16, #tpu.memory_space<vmem>>, vector<1x8x8xbf16>
    %134 = vector.shape_cast %133 : vector<1x8x8xbf16> to vector<8x8xbf16>
    %cst_178 = arith.constant dense<0.000000e+00> : vector<128x8xf32>
    %135 = tpu.matmul %132, %134, %cst_178 {dimension_numbers = #tpu.dot_dimension_numbers<[1], [0], [0], [1], [0, 0, 1, 1], [], []>} : vector<128x8xbf16>, vector<8x8xbf16>, vector<128x8xf32> -> vector<128x8xf32>
    %c0_179 = arith.constant 0 : index
    %c0_180 = arith.constant 0 : index
    %136 = vector.load %arg12[%c0_179, %c0_180] : memref<128x8xf32, #tpu.memory_space<vmem>>, vector<128x8xf32>
    %137 = arith.addf %136, %135 : vector<128x8xf32>
    %c0_181 = arith.constant 0 : index
    %c0_182 = arith.constant 0 : index
    %138 = vector.load %arg12[%c0_181, %c0_182] : memref<128x8xf32, #tpu.memory_space<vmem>>, vector<128x8xf32>
    tpu.vector_store %arg12[%c0_181, %c0_182], %137 {strides = array<i32>} : memref<128x8xf32, #tpu.memory_space<vmem>>, vector<128x8xf32>,
    %c34 = arith.constant 34 : index
    %c0_183 = arith.constant 0 : index
    %139 = vector.load %arg10[%c34, %c0_183] : memref<176x8xbf16, #tpu.memory_space<vmem>>, vector<128x8xbf16>
    %c8_184 = arith.constant 8 : index
    %c0_185 = arith.constant 0 : index
    %c0_186 = arith.constant 0 : index
    %140 = vector.load %arg4[%c8_184, %c0_185, %c0_186] : memref<9x8x8xbf16, #tpu.memory_space<vmem>>, vector<1x8x8xbf16>
    %141 = vector.shape_cast %140 : vector<1x8x8xbf16> to vector<8x8xbf16>
    %cst_187 = arith.constant dense<0.000000e+00> : vector<128x8xf32>
    %142 = tpu.matmul %139, %141, %cst_187 {dimension_numbers = #tpu.dot_dimension_numbers<[1], [0], [0], [1], [0, 0, 1, 1], [], []>} : vector<128x8xbf16>, vector<8x8xbf16>, vector<128x8xf32> -> vector<128x8xf32>
    %c0_188 = arith.constant 0 : index
    %c0_189 = arith.constant 0 : index
    %143 = vector.load %arg12[%c0_188, %c0_189] : memref<128x8xf32, #tpu.memory_space<vmem>>, vector<128x8xf32>
    %144 = arith.addf %143, %142 : vector<128x8xf32>
    %c0_190 = arith.constant 0 : index
    %c0_191 = arith.constant 0 : index
    %145 = vector.load %arg12[%c0_190, %c0_191] : memref<128x8xf32, #tpu.memory_space<vmem>>, vector<128x8xf32>
    tpu.vector_store %arg12[%c0_190, %c0_191], %144 {strides = array<i32>} : memref<128x8xf32, #tpu.memory_space<vmem>>, vector<128x8xf32>,
    %c0_192 = arith.constant 0 : index
    %c0_193 = arith.constant 0 : index
    %146 = vector.load %arg12[%c0_192, %c0_193] : memref<128x8xf32, #tpu.memory_space<vmem>>, vector<128x8xf32>
    %c0_194 = arith.constant 0 : index
    %c0_195 = arith.constant 0 : index
    %147 = vector.load %arg5[%c0_194, %c0_195] : memref<1x8xf32, #tpu.memory_space<vmem>>, vector<1x8xf32>
    %148 = vector.broadcast %147 : vector<1x8xf32> to vector<128x8xf32>
    %149 = arith.addf %146, %148 : vector<128x8xf32>
    %c0_196 = arith.constant 0 : index
    %c3_197 = arith.constant 3 : index
    %c0_198 = arith.constant 0 : index
    %c0_199 = arith.constant 0 : index
    %150 = vector.load %arg1[%c0_196, %c3_197, %c0_198, %c0_199] : memref<1x4x160x4xbf16, #tpu.memory_space<vmem>>, vector<1x1x128x4xbf16>
    %151 = vector.shape_cast %150 : vector<1x1x128x4xbf16> to vector<128x4xbf16>
    %c0_200 = arith.constant 0 : index
    %c0_201 = arith.constant 0 : index
    %152 = vector.load %arg7[%c0_200, %c0_201] : memref<4x8xbf16, #tpu.memory_space<vmem>>, vector<4x8xbf16>
    %cst_202 = arith.constant dense<0.000000e+00> : vector<128x8xf32>
    %153 = tpu.matmul %151, %152, %cst_202 {dimension_numbers = #tpu.dot_dimension_numbers<[1], [0], [0], [1], [0, 0, 1, 1], [], []>} : vector<128x4xbf16>, vector<4x8xbf16>, vector<128x8xf32> -> vector<128x8xf32>
    %154 = arith.addf %149, %153 : vector<128x8xf32>
    %c0_203 = arith.constant 0 : index
    %c0_204 = arith.constant 0 : index
    %155 = vector.load %arg8[%c0_203, %c0_204] : memref<1x8xf32, #tpu.memory_space<vmem>>, vector<1x8xf32>
    %156 = vector.broadcast %155 : vector<1x8xf32> to vector<128x8xf32>
    %157 = arith.addf %154, %156 : vector<128x8xf32>
    %cst_205 = arith.constant 0.000000e+00 : f32
    %158 = vector.broadcast %cst_205 : f32 to vector<128x8xf32>
    %159 = arith.maximumf %157, %158 : vector<128x8xf32>
    %c0_206 = arith.constant 0 : index
    %c0_207 = arith.constant 0 : index
    %c0_208 = arith.constant 0 : index
    %160 = vector.load %arg9[%c0_206, %c0_207, %c0_208] : memref<1x128x8xf32, #tpu.memory_space<vmem>>, vector<1x128x8xf32>
    %161 = vector.shape_cast %160 : vector<1x128x8xf32> to vector<128x8xf32>
    %162 = vector.shape_cast %159 : vector<128x8xf32> to vector<1x128x8xf32>
    tpu.vector_store %arg9[%c0_206, %c0_207, %c0_208], %162 {strides = array<i32>} : memref<1x128x8xf32, #tpu.memory_space<vmem>>, vector<1x128x8xf32>,
    return
  }
  func.func @transform_0(%arg0: i32) -> (i32, i32, i32, i32) {
    %c0_i32 = arith.constant 0 : i32
    %c0_i32_0 = arith.constant 0 : i32
    %c0_i32_1 = arith.constant 0 : i32
    %c0_i32_2 = arith.constant 0 : i32
    return %arg0, %c0_i32, %c0_i32_0, %c0_i32_1 : i32, i32, i32, i32
  }
  func.func @transform_1(%arg0: i32) -> (i32, i32, i32) {
    %c0_i32 = arith.constant 0 : i32
    %c0_i32_0 = arith.constant 0 : i32
    %c0_i32_1 = arith.constant 0 : i32
    %c0_i32_2 = arith.constant 0 : i32
    return %c0_i32, %c0_i32_0, %c0_i32_1 : i32, i32, i32
  }
  func.func @transform_2(%arg0: i32) -> (i32, i32) {
    %c0_i32 = arith.constant 0 : i32
    %c0_i32_0 = arith.constant 0 : i32
    %c0_i32_1 = arith.constant 0 : i32
    return %c0_i32, %c0_i32_0 : i32, i32
  }
  func.func @transform_3(%arg0: i32) -> (i32, i32, i32) {
    %c0_i32 = arith.constant 0 : i32
    %c0_i32_0 = arith.constant 0 : i32
    %c0_i32_1 = arith.constant 0 : i32
    %c0_i32_2 = arith.constant 0 : i32
    return %c0_i32, %c0_i32_0, %c0_i32_1 : i32, i32, i32
  }
  func.func @transform_4(%arg0: i32) -> (i32, i32) {
    %c0_i32 = arith.constant 0 : i32
    %c0_i32_0 = arith.constant 0 : i32
    %c0_i32_1 = arith.constant 0 : i32
    return %c0_i32, %c0_i32_0 : i32, i32
  }
  func.func @transform_5(%arg0: i32) -> (i32, i32) {
    %c0_i32 = arith.constant 0 : i32
    %c0_i32_0 = arith.constant 0 : i32
    %c0_i32_1 = arith.constant 0 : i32
    return %c0_i32, %c0_i32_0 : i32, i32
  }
  func.func @transform_6(%arg0: i32) -> (i32, i32) {
    %c0_i32 = arith.constant 0 : i32
    %c0_i32_0 = arith.constant 0 : i32
    %c0_i32_1 = arith.constant 0 : i32
    return %c0_i32, %c0_i32_0 : i32, i32
  }
  func.func @transform_7(%arg0: i32) -> (i32, i32) {
    %c0_i32 = arith.constant 0 : i32
    %c0_i32_0 = arith.constant 0 : i32
    %c0_i32_1 = arith.constant 0 : i32
    return %c0_i32, %c0_i32_0 : i32, i32
  }
  func.func @transform_8(%arg0: i32) -> (i32, i32, i32) {
    %c0_i32 = arith.constant 0 : i32
    %c0_i32_0 = arith.constant 0 : i32
    %c0_i32_1 = arith.constant 0 : i32
    return %arg0, %c0_i32, %c0_i32_0 : i32, i32, i32
  }
}

</mosaic_0001>

<llo_original>
// kernel: tpu_custom_call.1
$region0: #{tpu_custom_call.1}
  #allocation0 [shape = 'u32[]', space=smem, size = 0x4, offset = 0x4, fixed_abs, tag = 'smem constant byte address 0x4 - core index']
  #allocation1 [shape = 'u32[144,128]{1,0:T(1,128)}', space=vmem, size = 0x12000, scoped, tag = 'internal scratch']
  #allocation2 [shape = 'bf16[176,8]{1,0:T(16,128)(2,1)}', space=vmem, size = 0xb000, scoped, tag = 'scratch operand']
  #allocation3 [shape = 'f32[128,8]{1,0:T(8,128)}', space=vmem, size = 0x10000, scoped, tag = 'scratch operand']
  #allocation4 [shape = 'f32[128,8]{1,0:T(8,128)}', space=vmem, size = 0x10000, scoped, tag = 'scratch operand']
  %s0 = inlined_call_operand.vmem [shape: bf16[2,4,160,4], index: 0, kind: input, shape index: {}]
  %s1 = inlined_call_operand.vmem [shape: bf16[9,4,8], index: 1, kind: input, shape index: {}]
  %s2 = inlined_call_operand.vmem [shape: f32[1,8], index: 2, kind: input, shape index: {}]
  %s3 = inlined_call_operand.vmem [shape: bf16[9,8,8], index: 3, kind: input, shape index: {}]
  %s4 = inlined_call_operand.vmem [shape: f32[1,8], index: 4, kind: input, shape index: {}]
  %s5 = inlined_call_operand.vmem [shape: f32[128,1], index: 5, kind: input, shape index: {}]
  %s6 = inlined_call_operand.vmem [shape: bf16[4,8], index: 6, kind: input, shape index: {}]
  %s7 = inlined_call_operand.vmem [shape: f32[1,8], index: 7, kind: input, shape index: {}]
  %s8 = inlined_call_operand.vmem [shape: f32[2,128,8], index: 8, kind: output, shape index: {}]
  %s9 = sld [smem:[#allocation0]]
  $region65: #{tpu_custom_call.1} parent=0
    _
  %s11 = ssub.s32 1, %s9
  %s12 = scalar_select 0, %s11, %s9
  loop: start=0, step=1, limit=4
  $region2: #{tpu_custom_call.1} parent=0 // loop_pre_header
    _
  $region3: #{tpu_custom_call.1} parent=0 // loop_header
    %s14 = sphi 0, %s18
    %p15 = scmp.ge.s32.totalorder %s14, 4
    %s24 = sphi 0, %s26
    %s27 = sphi 0, %s24
    %s28 = sphi 0, %s27
    %s44 = sphi 0, %s28
    %s48 = sphi 0, %s48
    %s50 = sphi 0, %s48
    %s51 = sphi 0, %s50
    %s65 = sphi 0, %s51
    %s69 = sphi 0, %s69
    %s71 = sphi 0, %s69
    %s72 = sphi 0, %s71
    %s86 = sphi 0, %s72
    %s90 = sphi 0, %s90
    %s92 = sphi 0, %s90
    %s93 = sphi 0, %s92
    %s107 = sphi 0, %s93
    %s111 = sphi 0, %s111
    %s113 = sphi 0, %s111
    %s114 = sphi 0, %s113
    %s128 = sphi 0, %s114
    %s132 = sphi 0, %s132
    %s134 = sphi 0, %s132
    %s135 = sphi 0, %s134
    %s149 = sphi 0, %s135
    %s153 = sphi 0, %s153
    %s155 = sphi 0, %s153
    %s156 = sphi 0, %s155
    %s170 = sphi 0, %s156
    %s174 = sphi 0, %s174
    %s176 = sphi 0, %s174
    %s177 = sphi 0, %s176
    %s191 = sphi 0, %s177
    %s197 = sphi 0, %s199
    %s200 = sphi 0, %s197
    %s201 = sphi 0, %s200
    %s217 = sphi 0, %s201
  $region4: #{tpu_custom_call.1} parent=0 // loop_header_branch
    %17 = sbr.rel (%p15) target = $region8
  $region5: #{tpu_custom_call.1} parent=0 // loop_body
    %s19 = ssub.s32 %s14, 1
    %s20 = ssub.s32 %s14, 2
    %s21 = sadd.s32 %s14, 1
    %s22 = ssub.s32 %s14, %s21
    %p23 = scmp.eq.s32.totalorder %s22, 0
    %s25 = sadd.s32 %s24, 1
    %s26 = scalar_select %p23, %s24, %s25
    %p29 = pneg %p23
    %p30 = scmp.eq.s32.totalorder %s14, 1
    %p31 = por %p29, %p30
    %p32 = scmp.ne.s32.totalorder %s24, %s27
    %p33 = scmp.eq.s32.totalorder %s14, 0
    %p34 = por %p32, %p33
    %p35 = scmp.ne.s32.totalorder %s24, %s27
    %p36 = scmp.eq.s32.totalorder %s19, 1
    %p37 = por %p35, %p36
    %p38 = scmp.ne.s32.totalorder %s27, %s28
    %p39 = scmp.eq.s32.totalorder %s19, 0
    %p40 = por %p38, %p39
    %p41 = scmp.ne.s32.totalorder %s27, %s28
    %p42 = scmp.eq.s32.totalorder %s20, 1
    %p43 = por %p41, %p42
    %p45 = scmp.ne.s32.totalorder %s28, %s44
    %p46 = scmp.eq.s32.totalorder %s20, 0
    %p47 = por %p45, %p46
    %s49 = sadd.s32 %s48, 1
    %p52 = scmp.eq.s32.totalorder %s14, 1
    %p53 = scmp.ne.s32.totalorder %s48, %s50
    %p54 = scmp.eq.s32.totalorder %s14, 0
    %p55 = por %p53, %p54
    %p56 = scmp.ne.s32.totalorder %s48, %s50
    %p57 = scmp.eq.s32.totalorder %s19, 1
    %p58 = por %p56, %p57
    %p59 = scmp.ne.s32.totalorder %s50, %s51
    %p60 = scmp.eq.s32.totalorder %s19, 0
    %p61 = por %p59, %p60
    %p62 = scmp.ne.s32.totalorder %s50, %s51
    %p63 = scmp.eq.s32.totalorder %s20, 1
    %p64 = por %p62, %p63
    %p66 = scmp.ne.s32.totalorder %s51, %s65
    %p67 = scmp.eq.s32.totalorder %s20, 0
    %p68 = por %p66, %p67
    %s70 = sadd.s32 %s69, 1
    %p73 = scmp.eq.s32.totalorder %s14, 1
    %p74 = scmp.ne.s32.totalorder %s69, %s71
    %p75 = scmp.eq.s32.totalorder %s14, 0
    %p76 = por %p74, %p75
    %p77 = scmp.ne.s32.totalorder %s69, %s71
    %p78 = scmp.eq.s32.totalorder %s19, 1
    %p79 = por %p77, %p78
    %p80 = scmp.ne.s32.totalorder %s71, %s72
    %p81 = scmp.eq.s32.totalorder %s19, 0
    %p82 = por %p80, %p81
    %p83 = scmp.ne.s32.totalorder %s71, %s72
    %p84 = scmp.eq.s32.totalorder %s20, 1
    %p85 = por %p83, %p84
    %p87 = scmp.ne.s32.totalorder %s72, %s86
    %p88 = scmp.eq.s32.totalorder %s20, 0
    %p89 = por %p87, %p88
    %s91 = sadd.s32 %s90, 1
    %p94 = scmp.eq.s32.totalorder %s14, 1
    %p95 = scmp.ne.s32.totalorder %s90, %s92
    %p96 = scmp.eq.s32.totalorder %s14, 0
    %p97 = por %p95, %p96
    %p98 = scmp.ne.s32.totalorder %s90, %s92
    %p99 = scmp.eq.s32.totalorder %s19, 1
    %p100 = por %p98, %p99
    %p101 = scmp.ne.s32.totalorder %s92, %s93
    %p102 = scmp.eq.s32.totalorder %s19, 0
    %p103 = por %p101, %p102
    %p104 = scmp.ne.s32.totalorder %s92, %s93
    %p105 = scmp.eq.s32.totalorder %s20, 1
    %p106 = por %p104, %p105
    %p108 = scmp.ne.s32.totalorder %s93, %s107
    %p109 = scmp.eq.s32.totalorder %s20, 0
    %p110 = por %p108, %p109
    %s112 = sadd.s32 %s111, 1
    %p115 = scmp.eq.s32.totalorder %s14, 1
    %p116 = scmp.ne.s32.totalorder %s111, %s113
    %p117 = scmp.eq.s32.totalorder %s14, 0
    %p118 = por %p116, %p117
    %p119 = scmp.ne.s32.totalorder %s111, %s113
    %p120 = scmp.eq.s32.totalorder %s19, 1
    %p121 = por %p119, %p120
    %p122 = scmp.ne.s32.totalorder %s113, %s114
    %p123 = scmp.eq.s32.totalorder %s19, 0
    %p124 = por %p122, %p123
    %p125 = scmp.ne.s32.totalorder %s113, %s114
    %p126 = scmp.eq.s32.totalorder %s20, 1
    %p127 = por %p125, %p126
    %p129 = scmp.ne.s32.totalorder %s114, %s128
    %p130 = scmp.eq.s32.totalorder %s20, 0
    %p131 = por %p129, %p130
    %s133 = sadd.s32 %s132, 1
    %p136 = scmp.eq.s32.totalorder %s14, 1
    %p137 = scmp.ne.s32.totalorder %s132, %s134
    %p138 = scmp.eq.s32.totalorder %s14, 0
    %p139 = por %p137, %p138
    %p140 = scmp.ne.s32.totalorder %s132, %s134
    %p141 = scmp.eq.s32.totalorder %s19, 1
    %p142 = por %p140, %p141
    %p143 = scmp.ne.s32.totalorder %s134, %s135
    %p144 = scmp.eq.s32.totalorder %s19, 0
    %p145 = por %p143, %p144
    %p146 = scmp.ne.s32.totalorder %s134, %s135
    %p147 = scmp.eq.s32.totalorder %s20, 1
    %p148 = por %p146, %p147
    %p150 = scmp.ne.s32.totalorder %s135, %s149
    %p151 = scmp.eq.s32.totalorder %s20, 0
    %p152 = por %p150, %p151
    %s154 = sadd.s32 %s153, 1
    %p157 = scmp.eq.s32.totalorder %s14, 1
    %p158 = scmp.ne.s32.totalorder %s153, %s155
    %p159 = scmp.eq.s32.totalorder %s14, 0
    %p160 = por %p158, %p159
    %p161 = scmp.ne.s32.totalorder %s153, %s155
    %p162 = scmp.eq.s32.totalorder %s19, 1
    %p163 = por %p161, %p162
    %p164 = scmp.ne.s32.totalorder %s155, %s156
    %p165 = scmp.eq.s32.totalorder %s19, 0
    %p166 = por %p164, %p165
    %p167 = scmp.ne.s32.totalorder %s155, %s156
    %p168 = scmp.eq.s32.totalorder %s20, 1
    %p169 = por %p167, %p168
    %p171 = scmp.ne.s32.totalorder %s156, %s170
    %p172 = scmp.eq.s32.totalorder %s20, 0
    %p173 = por %p171, %p172
    %s175 = sadd.s32 %s174, 1
    %p178 = scmp.eq.s32.totalorder %s14, 1
    %p179 = scmp.ne.s32.totalorder %s174, %s176
    %p180 = scmp.eq.s32.totalorder %s14, 0
    %p181 = por %p179, %p180
    %p182 = scmp.ne.s32.totalorder %s174, %s176
    %p183 = scmp.eq.s32.totalorder %s19, 1
    %p184 = por %p182, %p183
    %p185 = scmp.ne.s32.totalorder %s176, %s177
    %p186 = scmp.eq.s32.totalorder %s19, 0
    %p187 = por %p185, %p186
    %p188 = scmp.ne.s32.totalorder %s176, %s177
    %p189 = scmp.eq.s32.totalorder %s20, 1
    %p190 = por %p188, %p189
    %p192 = scmp.ne.s32.totalorder %s177, %s191
    %p193 = scmp.eq.s32.totalorder %s20, 0
    %p194 = por %p192, %p193
    %s195 = ssub.s32 %s14, %s21
    %p196 = scmp.eq.s32.totalorder %s195, 0
    %s198 = sadd.s32 %s197, 1
    %s199 = scalar_select %p196, %s197, %s198
    %p202 = pneg %p196
    %p203 = scmp.eq.s32.totalorder %s14, 1
    %p204 = por %p202, %p203
    %p205 = scmp.ne.s32.totalorder %s197, %s200
    %p206 = scmp.eq.s32.totalorder %s14, 0
    %p207 = por %p205, %p206
    %p208 = scmp.ne.s32.totalorder %s197, %s200
    %p209 = scmp.eq.s32.totalorder %s19, 1
    %p210 = por %p208, %p209
    %p211 = scmp.ne.s32.totalorder %s200, %s201
    %p212 = scmp.eq.s32.totalorder %s19, 0
    %p213 = por %p211, %p212
    %p214 = scmp.ne.s32.totalorder %s200, %s201
    %p215 = scmp.eq.s32.totalorder %s20, 1
    %p216 = por %p214, %p215
    %p218 = scmp.ne.s32.totalorder %s201, %s217
    %p219 = scmp.eq.s32.totalorder %s20, 0
    %p220 = por %p218, %p219
    %p221 = scmp.le.s32.totalorder 1, %s14
    %p222 = scmp.lt.s32.totalorder %s14, 3
    %p223 = pnand %p221, %p222
    %p224 = pneg %p223
    // Predicated region
    $region9: #{tpu_custom_call.1} parent=5 // pred_check
      _
    $region10: #{tpu_custom_call.1} parent=5 // pred_check_branch
      %226 = sbr.rel (%p223) target = $region12
    $region11: #{tpu_custom_call.1} parent=5 // pred_region
      %s227 = ssub.s32 %s14, 1
      // Predicated region
      $region13: #{tpu_custom_call.1} parent=11 // pred_check
        %p228 = pneg %p61
      $region14: #{tpu_custom_call.1} parent=11 // pred_check_branch
        %230 = sbr.rel (%p228) target = $region16
      $region15: #{tpu_custom_call.1} parent=11 // pred_region
        _
      $region16: #{tpu_custom_call.1} parent=11 // pred_fallthru
        _
      // Predicated region
      $region17: #{tpu_custom_call.1} parent=11 // pred_check
        %p231 = pneg %p82
      $region18: #{tpu_custom_call.1} parent=11 // pred_check_branch
        %233 = sbr.rel (%p231) target = $region20
      $region19: #{tpu_custom_call.1} parent=11 // pred_region
        _
      $region20: #{tpu_custom_call.1} parent=11 // pred_fallthru
        _
      // Predicated region
      $region21: #{tpu_custom_call.1} parent=11 // pred_check
        %p234 = pneg %p103
      $region22: #{tpu_custom_call.1} parent=11 // pred_check_branch
        %236 = sbr.rel (%p234) target = $region24
      $region23: #{tpu_custom_call.1} parent=11 // pred_region
        _
      $region24: #{tpu_custom_call.1} parent=11 // pred_fallthru
        _
      // Predicated region
      $region25: #{tpu_custom_call.1} parent=11 // pred_check
        %p237 = pneg %p124
      $region26: #{tpu_custom_call.1} parent=11 // pred_check_branch
        %239 = sbr.rel (%p237) target = $region28
      $region27: #{tpu_custom_call.1} parent=11 // pred_region
        _
      $region28: #{tpu_custom_call.1} parent=11 // pred_fallthru
        _
      // Predicated region
      $region29: #{tpu_custom_call.1} parent=11 // pred_check
        %p240 = pneg %p145
      $region30: #{tpu_custom_call.1} parent=11 // pred_check_branch
        %242 = sbr.rel (%p240) target = $region32
      $region31: #{tpu_custom_call.1} parent=11 // pred_region
        _
      $region32: #{tpu_custom_call.1} parent=11 // pred_fallthru
        _
      // Predicated region
      $region33: #{tpu_custom_call.1} parent=11 // pred_check
        %p243 = pneg %p166
      $region34: #{tpu_custom_call.1} parent=11 // pred_check_branch
        %245 = sbr.rel (%p243) target = $region36
      $region35: #{tpu_custom_call.1} parent=11 // pred_region
        _
      $region36: #{tpu_custom_call.1} parent=11 // pred_fallthru
        _
      // Predicated region
      $region37: #{tpu_custom_call.1} parent=11 // pred_check
        %p246 = pneg %p187
      $region38: #{tpu_custom_call.1} parent=11 // pred_check_branch
        %248 = sbr.rel (%p246) target = $region40
      $region39: #{tpu_custom_call.1} parent=11 // pred_region
        _
      $region40: #{tpu_custom_call.1} parent=11 // pred_fallthru
        _
    $region12: #{tpu_custom_call.1} parent=5 // pred_fallthru
      _
    %p249 = scmp.lt.s32.totalorder %s14, 2
    // Predicated region
    $region41: #{tpu_custom_call.1} parent=5 // pred_check
      %p250 = pneg %p249
    $region42: #{tpu_custom_call.1} parent=5 // pred_check_branch
      %252 = sbr.rel (%p250) target = $region44
    $region43: #{tpu_custom_call.1} parent=5 // pred_region
      // Predicated region
      $region45: #{tpu_custom_call.1} parent=43 // pred_check
        %p253 = pneg %p34
      $region46: #{tpu_custom_call.1} parent=43 // pred_check_branch
        %255 = sbr.rel (%p253) target = $region48
      $region47: #{tpu_custom_call.1} parent=43 // pred_region
        %p256 = scmp.lt.s32.totalorder %s14, 1
        %s257 = scalar_select %p256, %s14, 1
        %s258 = smul.addr %s257, 80
        %s259 = smul.addr %s258, 4
        %s260 = scalar_lea.vmem %s0, %s259
      $region48: #{tpu_custom_call.1} parent=43 // pred_fallthru
        _
    $region44: #{tpu_custom_call.1} parent=5 // pred_fallthru
      _
    %p261 = scmp.le.s32.totalorder 1, %s14
    %p262 = scmp.lt.s32.totalorder %s14, 3
    %p263 = pnand %p261, %p262
    %p264 = pneg %p263
    // Predicated region
    $region49: #{tpu_custom_call.1} parent=5 // pred_check
      _
    $region50: #{tpu_custom_call.1} parent=5 // pred_check_branch
      %266 = sbr.rel (%p263) target = $region52
    $region51: #{tpu_custom_call.1} parent=5 // pred_region
      %s267 = ssub.s32 %s14, 1
      %p268 = scmp.lt.s32.totalorder %s19, 1
      %s269 = scalar_select %p268, %s19, 1
      %s270 = smul.addr %s269, 80
      %s271 = smul.addr %s270, 4
      %s272 = scalar_lea.vmem %s0, %s271
      %p273 = pneg %p40
      %p274 = pneg %p37
      %p275 = pneg %p61
      %p276 = pneg %p58
      %p277 = pneg %p82
      %p278 = pneg %p79
      %p279 = pneg %p103
      %p280 = pneg %p100
      %p281 = pneg %p124
      %p282 = pneg %p121
      %p283 = pneg %p145
      %p284 = pneg %p142
      %p285 = pneg %p166
      %p286 = pneg %p163
      %p287 = pneg %p187
      %p288 = pneg %p184
      %p289 = pneg %p213
      %p290 = pneg %p210
      %p291 = scmp.lt.s32.totalorder %s19, 1
      %s292 = scalar_select %p291, %s19, 1
      %s293 = smul.addr %s292, 16
      %s294 = smul.addr %s293, 8
      %s295 = scalar_lea.vmem %s8, %s294
      %p296 = scmp.lt.s32.totalorder %s19, 1
      %s297 = scalar_select %p296, %s19, 1
      %s298 = smul.addr %s297, 80
      %s299 = smul.addr %s298, 4
      %s300 = scalar_lea.vmem %s0, %s299
      %p301 = scmp.lt.s32.totalorder %s19, 1
      %s302 = scalar_select %p301, %s19, 1
      %s303 = smul.addr %s302, 16
      %s304 = smul.addr %s303, 8
      %s305 = scalar_lea.vmem %s8, %s304
      %v307 = vld [vmem:[%s300] sm:$0xf]
      %v308 = vld [vmem:[%s300 + $0x4] sm:$0xf]
      %v309 = vld [vmem:[%s300 + $0x8] sm:$0xf]
      %v310 = vld [vmem:[%s300 + $0xc] sm:$0xf]
      %v311 = vld [vmem:[%s300 + $0x10] sm:$0xf]
      %v312 = vld [vmem:[%s300 + $0x14] sm:$0xf]
      %v313 = vld [vmem:[%s300 + $0x18] sm:$0xf]
      %v314 = vld [vmem:[%s300 + $0x1c] sm:$0xf]
      %v315 = vld [vmem:[%s300 + $0x20] sm:$0xf]
      %v316 = vld [vmem:[%s300 + $0x24] sm:$0xf]
      %v317 = vld [vmem:[%s300 + $0x28] sm:$0xf]
      %v318 = vld [vmem:[%s300 + $0x2c] sm:$0xf]
      %v319 = vld [vmem:[%s300 + $0x30] sm:$0xf]
      %v320 = vld [vmem:[%s300 + $0x34] sm:$0xf]
      %v321 = vld [vmem:[%s300 + $0x38] sm:$0xf]
      %v322 = vld [vmem:[%s300 + $0x3c] sm:$0xf]
      %v323 = vld [vmem:[%s1] sm:$0x3]
      %v340 = vunpack.c.l.b16 %v307
      %v341 = vunpack.c.l.b16 %v308
      %v342 = vunpack.c.l.b16 %v309
      %v343 = vunpack.c.l.b16 %v310
      %v344 = vunpack.c.l.b16 %v311
      %v345 = vunpack.c.l.b16 %v312
      %v346 = vunpack.c.l.b16 %v313
      %v347 = vunpack.c.l.b16 %v314
      %v348 = vunpack.c.l.b16 %v315
      %v349 = vunpack.c.l.b16 %v316
      %v350 = vunpack.c.l.b16 %v317
      %v351 = vunpack.c.l.b16 %v318
      %v352 = vunpack.c.l.b16 %v319
      %v353 = vunpack.c.l.b16 %v320
      %v354 = vunpack.c.l.b16 %v321
      %v355 = vunpack.c.l.b16 %v322
      %v356 = vpack.c.b16 %v341, %v340
      %v357 = vpack.c.b16 %v343, %v342
      %v358 = vpack.c.b16 %v345, %v344
      %v359 = vpack.c.b16 %v347, %v346
      %v360 = vpack.c.b16 %v349, %v348
      %v361 = vpack.c.b16 %v351, %v350
      %v362 = vpack.c.b16 %v353, %v352
      %v363 = vpack.c.b16 %v355, %v354
      %vm364 = vcmask 31744
      %v366 = vsel %vm364, %v356, 0
      %v369 = vsel %vm364, %v357, 0
      %v372 = vsel %vm364, %v358, 0
      %v375 = vsel %vm364, %v359, 0
      %v378 = vsel %vm364, %v360, 0
      %v381 = vsel %vm364, %v361, 0
      %v384 = vsel %vm364, %v362, 0
      %v387 = vsel %vm364, %v363, 0
      %vm389 = vcmask 1041408
      %v391 = vsel %vm389, %v323, 0
      %393 = vmatprep.subr.bf16.mxu0 0
      %394 = vmatpush1.bf16.msra.mxu0 %v391
      %395 = vmatprep.subr.bf16.mxu0 0
      %396 = vmatpush1.bf16.msra.mxu0 0
      %397 = vmatprep.subr.bf16.mxu0 0
      %398 = vmatpush1.bf16.msra.mxu0 0
      %399 = vmatprep.subr.bf16.mxu0 0
      %400 = vmatpush1.bf16.msra.mxu0 0
      %401 = vmatprep.subr.bf16.mxu0 0
      %402 = vmatpush1.bf16.msra.mxu0 0
      %403 = vmatprep.subr.bf16.mxu0 0
      %404 = vmatpush1.bf16.msra.mxu0 0
      %405 = vmatprep.subr.bf16.mxu0 0
      %406 = vmatpush1.bf16.msra.mxu0 0
      %407 = vmatprep.subr.bf16.mxu0 0
      %408 = vmatpush1.bf16.msra.mxu0 0
      %409 = vmatprep.subr.bf16.mxu0 0
      %410 = vmatpush1.bf16.msra.mxu0 0
      %411 = vmatprep.subr.bf16.mxu0 0
      %412 = vmatpush1.bf16.msra.mxu0 0
      %413 = vmatprep.subr.bf16.mxu0 0
      %414 = vmatpush1.bf16.msra.mxu0 0
      %415 = vmatprep.subr.bf16.mxu0 0
      %416 = vmatpush1.bf16.msra.mxu0 0
      %417 = vmatprep.subr.bf16.mxu0 0
      %418 = vmatpush1.bf16.msra.mxu0 0
      %419 = vmatprep.subr.bf16.mxu0 0
      %420 = vmatpush1.bf16.msra.mxu0 0
      %421 = vmatprep.subr.bf16.mxu0 0
      %422 = vmatpush1.bf16.msra.mxu0 0
      %423 = vmatprep.subr.bf16.mxu0 0
      %424 = vmatpush1.bf16.msra.mxu0 0
      %425 = vmatprep.mubr.bf16.mxu0 0
      %426 = vmatmul.mubr.bf16.gmra.mrb[0].mxu0 %v366
      %v427 = vpop.f32.mrb[0].mxu0
      %v428 = vadd.f32 0.0, %v427
      %v429 = vpop.f32.mrb[0].mxu0
      %v430 = vpop.f32.mrb[0].mxu0
      %v431 = vadd.f32 0.0, %v430
      %v432 = vpop.f32.mrb[0].mxu0
      %433 = vmatprep.mubr.bf16.mxu0 0
      %434 = vmatmul.mubr.bf16.gmra.mrb[0].mxu0 %v369
      %v435 = vpop.f32.mrb[0].mxu0
      %v436 = vadd.f32 0.0, %v435
      %v437 = vpop.f32.mrb[0].mxu0
      %v438 = vpop.f32.mrb[0].mxu0
      %v439 = vadd.f32 0.0, %v438
      %v440 = vpop.f32.mrb[0].mxu0
      %441 = vmatprep.mubr.bf16.mxu0 0
      %442 = vmatmul.mubr.bf16.gmra.mrb[0].mxu0 %v372
      %v443 = vpop.f32.mrb[0].mxu0
      %v444 = vadd.f32 0.0, %v443
      %v445 = vpop.f32.mrb[0].mxu0
      %v446 = vpop.f32.mrb[0].mxu0
      %v447 = vadd.f32 0.0, %v446
      %v448 = vpop.f32.mrb[0].mxu0
      %449 = vmatprep.mubr.bf16.mxu0 0
      %450 = vmatmul.mubr.bf16.gmra.mrb[0].mxu0 %v375
      %v451 = vpop.f32.mrb[0].mxu0
      %v452 = vadd.f32 0.0, %v451
      %v453 = vpop.f32.mrb[0].mxu0
      %v454 = vpop.f32.mrb[0].mxu0
      %v455 = vadd.f32 0.0, %v454
      %v456 = vpop.f32.mrb[0].mxu0
      %457 = vmatprep.mubr.bf16.mxu0 0
      %458 = vmatmul.mubr.bf16.gmra.mrb[0].mxu0 %v378
      %v459 = vpop.f32.mrb[0].mxu0
      %v460 = vadd.f32 0.0, %v459
      %v461 = vpop.f32.mrb[0].mxu0
      %v462 = vpop.f32.mrb[0].mxu0
      %v463 = vadd.f32 0.0, %v462
      %v464 = vpop.f32.mrb[0].mxu0
      %465 = vmatprep.mubr.bf16.mxu0 0
      %466 = vmatmul.mubr.bf16.gmra.mrb[0].mxu0 %v381
      %v467 = vpop.f32.mrb[0].mxu0
      %v468 = vadd.f32 0.0, %v467
      %v469 = vpop.f32.mrb[0].mxu0
      %v470 = vpop.f32.mrb[0].mxu0
      %v471 = vadd.f32 0.0, %v470
      %v472 = vpop.f32.mrb[0].mxu0
      %473 = vmatprep.mubr.bf16.mxu0 0
      %474 = vmatmul.mubr.bf16.gmra.mrb[0].mxu0 %v384
      %v475 = vpop.f32.mrb[0].mxu0
      %v476 = vadd.f32 0.0, %v475
      %v477 = vpop.f32.mrb[0].mxu0
      %v478 = vpop.f32.mrb[0].mxu0
      %v479 = vadd.f32 0.0, %v478
      %v480 = vpop.f32.mrb[0].mxu0
      %481 = vmatprep.mubr.bf16.mxu0 0
      %482 = vmatmul.mubr.bf16.gmra.mrb[0].mxu0 %v387
      %v483 = vpop.f32.mrb[0].mxu0
      %v484 = vadd.f32 0.0, %v483
      %v485 = vpop.f32.mrb[0].mxu0
      %v486 = vpop.f32.mrb[0].mxu0
      %v487 = vadd.f32 0.0, %v486
      %v488 = vpop.f32.mrb[0].mxu0
      %489 = vdwg.mxu0
      %vm490 = vcmask 64512
      %491 = vst.msk [vmem:[#allocation3] sm:$0xff] %vm490, %v428
      %492 = vst.msk [vmem:[#allocation3 + $0x8] sm:$0xff] %vm490, %v431
      %493 = vst.msk [vmem:[#allocation3 + $0x10] sm:$0xff] %vm490, %v436
      %494 = vst.msk [vmem:[#allocation3 + $0x18] sm:$0xff] %vm490, %v439
      %495 = vst.msk [vmem:[#allocation3 + $0x20] sm:$0xff] %vm490, %v444
      %496 = vst.msk [vmem:[#allocation3 + $0x28] sm:$0xff] %vm490, %v447
      %497 = vst.msk [vmem:[#allocation3 + $0x30] sm:$0xff] %vm490, %v452
      %498 = vst.msk [vmem:[#allocation3 + $0x38] sm:$0xff] %vm490, %v455
      %499 = vst.msk [vmem:[#allocation3 + $0x40] sm:$0xff] %vm490, %v460
      %500 = vst.msk [vmem:[#allocation3 + $0x48] sm:$0xff] %vm490, %v463
      %501 = vst.msk [vmem:[#allocation3 + $0x50] sm:$0xff] %vm490, %v468
      %502 = vst.msk [vmem:[#allocation3 + $0x58] sm:$0xff] %vm490, %v471
      %503 = vst.msk [vmem:[#allocation3 + $0x60] sm:$0xff] %vm490, %v476
      %504 = vst.msk [vmem:[#allocation3 + $0x68] sm:$0xff] %vm490, %v479
      %505 = vst.msk [vmem:[#allocation3 + $0x70] sm:$0xff] %vm490, %v484
      %506 = vst.msk [vmem:[#allocation3 + $0x78] sm:$0xff] %vm490, %v487
      %s507 = scalar_lea.vmem %s300, 80
      %v508 = vld [vmem:[%s507] sm:$0xf]
      %v509 = vld [vmem:[%s507 + $0x4] sm:$0xf]
      %v510 = vld [vmem:[%s507 + $0x8] sm:$0xf]
      %v511 = vld [vmem:[%s507 + $0xc] sm:$0xf]
      %v512 = vld [vmem:[%s507 + $0x10] sm:$0xf]
      %v513 = vld [vmem:[%s507 + $0x14] sm:$0xf]
      %v514 = vld [vmem:[%s507 + $0x18] sm:$0xf]
      %v515 = vld [vmem:[%s507 + $0x1c] sm:$0xf]
      %v516 = vld [vmem:[%s507 + $0x20] sm:$0xf]
      %v517 = vld [vmem:[%s507 + $0x24] sm:$0xf]
      %v518 = vld [vmem:[%s507 + $0x28] sm:$0xf]
      %v519 = vld [vmem:[%s507 + $0x2c] sm:$0xf]
      %v520 = vld [vmem:[%s507 + $0x30] sm:$0xf]
      %v521 = vld [vmem:[%s507 + $0x34] sm:$0xf]
      %v522 = vld [vmem:[%s507 + $0x38] sm:$0xf]
      %v523 = vld [vmem:[%s507 + $0x3c] sm:$0xf]
      %s524 = scalar_lea.vmem %s1, 2
      %v525 = vld [vmem:[%s524] sm:$0x3]
      %v542 = vunpack.c.l.b16 %v508
      %v543 = vunpack.c.l.b16 %v509
      %v544 = vunpack.c.l.b16 %v510
      %v545 = vunpack.c.l.b16 %v511
      %v546 = vunpack.c.l.b16 %v512
      %v547 = vunpack.c.l.b16 %v513
      %v548 = vunpack.c.l.b16 %v514
      %v549 = vunpack.c.l.b16 %v515
      %v550 = vunpack.c.l.b16 %v516
      %v551 = vunpack.c.l.b16 %v517
      %v552 = vunpack.c.l.b16 %v518
      %v553 = vunpack.c.l.b16 %v519
      %v554 = vunpack.c.l.b16 %v520
      %v555 = vunpack.c.l.b16 %v521
      %v556 = vunpack.c.l.b16 %v522
      %v557 = vunpack.c.l.b16 %v523
      %v558 = vpack.c.b16 %v543, %v542
      %v559 = vpack.c.b16 %v545, %v544
      %v560 = vpack.c.b16 %v547, %v546
      %v561 = vpack.c.b16 %v549, %v548
      %v562 = vpack.c.b16 %v551, %v550
      %v563 = vpack.c.b16 %v553, %v552
      %v564 = vpack.c.b16 %v555, %v554
      %v565 = vpack.c.b16 %v557, %v556
      %v567 = vsel %vm364, %v558, 0
      %v570 = vsel %vm364, %v559, 0
      %v573 = vsel %vm364, %v560, 0
      %v576 = vsel %vm364, %v561, 0
      %v579 = vsel %vm364, %v562, 0
      %v582 = vsel %vm364, %v563, 0
      %v585 = vsel %vm364, %v564, 0
      %v588 = vsel %vm364, %v565, 0
      %v591 = vsel %vm389, %v525, 0
      %593 = vmatprep.subr.bf16.mxu0 0
      %594 = vmatpush1.bf16.msra.mxu0 %v591
      %595 = vmatprep.subr.bf16.mxu0 0
      %596 = vmatpush1.bf16.msra.mxu0 0
      %597 = vmatprep.subr.bf16.mxu0 0
      %598 = vmatpush1.bf16.msra.mxu0 0
      %599 = vmatprep.subr.bf16.mxu0 0
      %600 = vmatpush1.bf16.msra.mxu0 0
      %601 = vmatprep.subr.bf16.mxu0 0
      %602 = vmatpush1.bf16.msra.mxu0 0
      %603 = vmatprep.subr.bf16.mxu0 0
      %604 = vmatpush1.bf16.msra.mxu0 0
      %605 = vmatprep.subr.bf16.mxu0 0
      %606 = vmatpush1.bf16.msra.mxu0 0
      %607 = vmatprep.subr.bf16.mxu0 0
      %608 = vmatpush1.bf16.msra.mxu0 0
      %609 = vmatprep.subr.bf16.mxu0 0
      %610 = vmatpush1.bf16.msra.mxu0 0
      %611 = vmatprep.subr.bf16.mxu0 0
      %612 = vmatpush1.bf16.msra.mxu0 0
      %613 = vmatprep.subr.bf16.mxu0 0
      %614 = vmatpush1.bf16.msra.mxu0 0
      %615 = vmatprep.subr.bf16.mxu0 0
      %616 = vmatpush1.bf16.msra.mxu0 0
      %617 = vmatprep.subr.bf16.mxu0 0
      %618 = vmatpush1.bf16.msra.mxu0 0
      %619 = vmatprep.subr.bf16.mxu0 0
      %620 = vmatpush1.bf16.msra.mxu0 0
      %621 = vmatprep.subr.bf16.mxu0 0
      %622 = vmatpush1.bf16.msra.mxu0 0
      %623 = vmatprep.subr.bf16.mxu0 0
      %624 = vmatpush1.bf16.msra.mxu0 0
      %625 = vmatprep.mubr.bf16.mxu0 0
      %626 = vmatmul.mubr.bf16.gmra.mrb[0].mxu0 %v567
      %v627 = vpop.f32.mrb[0].mxu0
      %v628 = vadd.f32 0.0, %v627
      %v629 = vpop.f32.mrb[0].mxu0
      %v630 = vpop.f32.mrb[0].mxu0
      %v631 = vadd.f32 0.0, %v630
      %v632 = vpop.f32.mrb[0].mxu0
      %633 = vmatprep.mubr.bf16.mxu0 0
      %634 = vmatmul.mubr.bf16.gmra.mrb[0].mxu0 %v570
      %v635 = vpop.f32.mrb[0].mxu0
      %v636 = vadd.f32 0.0, %v635
      %v637 = vpop.f32.mrb[0].mxu0
      %v638 = vpop.f32.mrb[0].mxu0
      %v639 = vadd.f32 0.0, %v638
      %v640 = vpop.f32.mrb[0].mxu0
      %641 = vmatprep.mubr.bf16.mxu0 0
      %642 = vmatmul.mubr.bf16.gmra.mrb[0].mxu0 %v573
      %v643 = vpop.f32.mrb[0].mxu0
      %v644 = vadd.f32 0.0, %v643
      %v645 = vpop.f32.mrb[0].mxu0
      %v646 = vpop.f32.mrb[0].mxu0
      %v647 = vadd.f32 0.0, %v646
      %v648 = vpop.f32.mrb[0].mxu0
      %649 = vmatprep.mubr.bf16.mxu0 0
      %650 = vmatmul.mubr.bf16.gmra.mrb[0].mxu0 %v576
      %v651 = vpop.f32.mrb[0].mxu0
      %v652 = vadd.f32 0.0, %v651
      %v653 = vpop.f32.mrb[0].mxu0
      %v654 = vpop.f32.mrb[0].mxu0
      %v655 = vadd.f32 0.0, %v654
      %v656 = vpop.f32.mrb[0].mxu0
      %657 = vmatprep.mubr.bf16.mxu0 0
      %658 = vmatmul.mubr.bf16.gmra.mrb[0].mxu0 %v579
      %v659 = vpop.f32.mrb[0].mxu0
      %v660 = vadd.f32 0.0, %v659
      %v661 = vpop.f32.mrb[0].mxu0
      %v662 = vpop.f32.mrb[0].mxu0
      %v663 = vadd.f32 0.0, %v662
      %v664 = vpop.f32.mrb[0].mxu0
      %665 = vmatprep.mubr.bf16.mxu0 0
      %666 = vmatmul.mubr.bf16.gmra.mrb[0].mxu0 %v582
      %v667 = vpop.f32.mrb[0].mxu0
      %v668 = vadd.f32 0.0, %v667
      %v669 = vpop.f32.mrb[0].mxu0
      %v670 = vpop.f32.mrb[0].mxu0
      %v671 = vadd.f32 0.0, %v670
      %v672 = vpop.f32.mrb[0].mxu0
      %673 = vmatprep.mubr.bf16.mxu0 0
      %674 = vmatmul.mubr.bf16.gmra.mrb[0].mxu0 %v585
      %v675 = vpop.f32.mrb[0].mxu0
      %v676 = vadd.f32 0.0, %v675
      %v677 = vpop.f32.mrb[0].mxu0
      %v678 = vpop.f32.mrb[0].mxu0
      %v679 = vadd.f32 0.0, %v678
      %v680 = vpop.f32.mrb[0].mxu0
      %681 = vmatprep.mubr.bf16.mxu0 0
      %682 = vmatmul.mubr.bf16.gmra.mrb[0].mxu0 %v588
      %v683 = vpop.f32.mrb[0].mxu0
      %v684 = vadd.f32 0.0, %v683
      %v685 = vpop.f32.mrb[0].mxu0
      %v686 = vpop.f32.mrb[0].mxu0
      %v687 = vadd.f32 0.0, %v686
      %v688 = vpop.f32.mrb[0].mxu0
      %689 = vdwg.mxu0
      %v690 = vld [vmem:[#allocation3] sm:$0xff]
      %v691 = vld [vmem:[#allocation3 + $0x8] sm:$0xff]
      %v692 = vld [vmem:[#allocation3 + $0x10] sm:$0xff]
      %v693 = vld [vmem:[#allocation3 + $0x18] sm:$0xff]
      %v694 = vld [vmem:[#allocation3 + $0x20] sm:$0xff]
      %v695 = vld [vmem:[#allocation3 + $0x28] sm:$0xff]
      %v696 = vld [vmem:[#allocation3 + $0x30] sm:$0xff]
      %v697 = vld [vmem:[#allocation3 + $0x38] sm:$0xff]
      %v698 = vld [vmem:[#allocation3 + $0x40] sm:$0xff]
      %v699 = vld [vmem:[#allocation3 + $0x48] sm:$0xff]
      %v700 = vld [vmem:[#allocation3 + $0x50] sm:$0xff]
      %v701 = vld [vmem:[#allocation3 + $0x58] sm:$0xff]
      %v702 = vld [vmem:[#allocation3 + $0x60] sm:$0xff]
      %v703 = vld [vmem:[#allocation3 + $0x68] sm:$0xff]
      %v704 = vld [vmem:[#allocation3 + $0x70] sm:$0xff]
      %v705 = vld [vmem:[#allocation3 + $0x78] sm:$0xff]
      %v706 = vadd.f32 %v690, %v628
      %v707 = vadd.f32 %v691, %v631
      %v708 = vadd.f32 %v692, %v636
      %v709 = vadd.f32 %v693, %v639
      %v710 = vadd.f32 %v694, %v644
      %v711 = vadd.f32 %v695, %v647
      %v712 = vadd.f32 %v696, %v652
      %v713 = vadd.f32 %v697, %v655
      %v714 = vadd.f32 %v698, %v660
      %v715 = vadd.f32 %v699, %v663
      %v716 = vadd.f32 %v700, %v668
      %v717 = vadd.f32 %v701, %v671
      %v718 = vadd.f32 %v702, %v676
      %v719 = vadd.f32 %v703, %v679
      %v720 = vadd.f32 %v704, %v684
      %v721 = vadd.f32 %v705, %v687
      %722 = vst.msk [vmem:[#allocation3] sm:$0xff] %vm490, %v706
      %723 = vst.msk [vmem:[#allocation3 + $0x8] sm:$0xff] %vm490, %v707
      %724 = vst.msk [vmem:[#allocation3 + $0x10] sm:$0xff] %vm490, %v708
      %725 = vst.msk [vmem:[#allocation3 + $0x18] sm:$0xff] %vm490, %v709
      %726 = vst.msk [vmem:[#allocation3 + $0x20] sm:$0xff] %vm490, %v710
      %727 = vst.msk [vmem:[#allocation3 + $0x28] sm:$0xff] %vm490, %v711
      %728 = vst.msk [vmem:[#allocation3 + $0x30] sm:$0xff] %vm490, %v712
      %729 = vst.msk [vmem:[#allocation3 + $0x38] sm:$0xff] %vm490, %v713
      %730 = vst.msk [vmem:[#allocation3 + $0x40] sm:$0xff] %vm490, %v714
      %731 = vst.msk [vmem:[#allocation3 + $0x48] sm:$0xff] %vm490, %v715
      %732 = vst.msk [vmem:[#allocation3 + $0x50] sm:$0xff] %vm490, %v716
      %733 = vst.msk [vmem:[#allocation3 + $0x58] sm:$0xff] %vm490, %v717
      %734 = vst.msk [vmem:[#allocation3 + $0x60] sm:$0xff] %vm490, %v718
      %735 = vst.msk [vmem:[#allocation3 + $0x68] sm:$0xff] %vm490, %v719
      %736 = vst.msk [vmem:[#allocation3 + $0x70] sm:$0xff] %vm490, %v720
      %737 = vst.msk [vmem:[#allocation3 + $0x78] sm:$0xff] %vm490, %v721
      %v738 = vld [vmem:[%s300] sm:$0xf]
      %v739 = vld [vmem:[%s300 + $0x4] sm:$0xf]
      %v740 = vld [vmem:[%s300 + $0x8] sm:$0xf]
      %v741 = vld [vmem:[%s300 + $0xc] sm:$0xf]
      %v742 = vld [vmem:[%s300 + $0x10] sm:$0xf]
      %v743 = vld [vmem:[%s300 + $0x14] sm:$0xf]
      %v744 = vld [vmem:[%s300 + $0x18] sm:$0xf]
      %v745 = vld [vmem:[%s300 + $0x1c] sm:$0xf]
      %v746 = vld [vmem:[%s300 + $0x20] sm:$0xf]
      %v747 = vld [vmem:[%s300 + $0x24] sm:$0xf]
      %v748 = vld [vmem:[%s300 + $0x28] sm:$0xf]
      %v749 = vld [vmem:[%s300 + $0x2c] sm:$0xf]
      %v750 = vld [vmem:[%s300 + $0x30] sm:$0xf]
      %v751 = vld [vmem:[%s300 + $0x34] sm:$0xf]
      %v752 = vld [vmem:[%s300 + $0x38] sm:$0xf]
      %v753 = vld [vmem:[%s300 + $0x3c] sm:$0xf]
      %v754 = vld [vmem:[%s300 + $0x40] sm:$0x1]
      %s755 = scalar_lea.vmem %s1, 4
      %v756 = vld [vmem:[%s755] sm:$0x3]
      %v774 = vunpack.c.l.b16 %v738
      %v775 = vunpack.c.l.b16 %v739
      %v776 = vunpack.c.l.b16 %v740
      %v777 = vunpack.c.l.b16 %v741
      %v778 = vunpack.c.l.b16 %v742
      %v779 = vunpack.c.l.b16 %v743
      %v780 = vunpack.c.l.b16 %v744
      %v781 = vunpack.c.l.b16 %v745
      %v782 = vunpack.c.l.b16 %v746
      %v783 = vunpack.c.l.b16 %v747
      %v784 = vunpack.c.l.b16 %v748
      %v785 = vunpack.c.l.b16 %v749
      %v786 = vunpack.c.l.b16 %v750
      %v787 = vunpack.c.l.b16 %v751
      %v788 = vunpack.c.l.b16 %v752
      %v789 = vunpack.c.l.b16 %v753
      %v790 = vunpack.c.l.b16 %v754
      %v791 = vpack.c.b16 %v775, %v774
      %v792 = vpack.c.b16 %v777, %v776
      %v793 = vpack.c.b16 %v779, %v778
      %v794 = vpack.c.b16 %v781, %v780
      %v795 = vpack.c.b16 %v783, %v782
      %v796 = vpack.c.b16 %v785, %v784
      %v797 = vpack.c.b16 %v787, %v786
      %v798 = vpack.c.b16 %v789, %v788
      %v799 = vpack.c.b16 %v790, %v790
      %vm800 = vsmask.f32 7424
      %v802 = vshrl.u32 %v791, 16
      %v804 = vshll.u32 %v791, 16
      %v806 = vrot.slane %v804, 1
      %v807 = vor.u32 %v802, %v806
      %v809 = vshll.u32 %v792, 16
      %v811 = vrot.slane %v809, 1
      %v812 = vsel %vm800, %v807, %v811
      %v813 = vshrl.u32 %v792, 16
      %v815 = vor.u32 %v813, %v811
      %v817 = vshll.u32 %v793, 16
      %v819 = vrot.slane %v817, 1
      %v820 = vsel %vm800, %v815, %v819
      %v821 = vshrl.u32 %v793, 16
      %v823 = vor.u32 %v821, %v819
      %v825 = vshll.u32 %v794, 16
      %v827 = vrot.slane %v825, 1
      %v828 = vsel %vm800, %v823, %v827
      %v829 = vshrl.u32 %v794, 16
      %v831 = vor.u32 %v829, %v827
      %v833 = vshll.u32 %v795, 16
      %v835 = vrot.slane %v833, 1
      %v836 = vsel %vm800, %v831, %v835
      %v837 = vshrl.u32 %v795, 16
      %v839 = vor.u32 %v837, %v835
      %v841 = vshll.u32 %v796, 16
      %v843 = vrot.slane %v841, 1
      %v844 = vsel %vm800, %v839, %v843
      %v845 = vshrl.u32 %v796, 16
      %v847 = vor.u32 %v845, %v843
      %v849 = vshll.u32 %v797, 16
      %v851 = vrot.slane %v849, 1
      %v852 = vsel %vm800, %v847, %v851
      %v853 = vshrl.u32 %v797, 16
      %v855 = vor.u32 %v853, %v851
      %v857 = vshll.u32 %v798, 16
      %v859 = vrot.slane %v857, 1
      %v860 = vsel %vm800, %v855, %v859
      %v861 = vshrl.u32 %v798, 16
      %v863 = vor.u32 %v861, %v859
      %v865 = vshll.u32 %v799, 16
      %v867 = vrot.slane %v865, 1
      %v868 = vsel %vm800, %v863, %v867
      %v870 = vsel %vm364, %v812, 0
      %v873 = vsel %vm364, %v820, 0
      %v876 = vsel %vm364, %v828, 0
      %v879 = vsel %vm364, %v836, 0
      %v882 = vsel %vm364, %v844, 0
      %v885 = vsel %vm364, %v852, 0
      %v888 = vsel %vm364, %v860, 0
      %v891 = vsel %vm364, %v868, 0
      %v894 = vsel %vm389, %v756, 0
      %896 = vmatprep.subr.bf16.mxu0 0
      %897 = vmatpush1.bf16.msra.mxu0 %v894
      %898 = vmatprep.subr.bf16.mxu0 0
      %899 = vmatpush1.bf16.msra.mxu0 0
      %900 = vmatprep.subr.bf16.mxu0 0
      %901 = vmatpush1.bf16.msra.mxu0 0
      %902 = vmatprep.subr.bf16.mxu0 0
      %903 = vmatpush1.bf16.msra.mxu0 0
      %904 = vmatprep.subr.bf16.mxu0 0
      %905 = vmatpush1.bf16.msra.mxu0 0
      %906 = vmatprep.subr.bf16.mxu0 0
      %907 = vmatpush1.bf16.msra.mxu0 0
      %908 = vmatprep.subr.bf16.mxu0 0
      %909 = vmatpush1.bf16.msra.mxu0 0
      %910 = vmatprep.subr.bf16.mxu0 0
      %911 = vmatpush1.bf16.msra.mxu0 0
      %912 = vmatprep.subr.bf16.mxu0 0
      %913 = vmatpush1.bf16.msra.mxu0 0
      %914 = vmatprep.subr.bf16.mxu0 0
      %915 = vmatpush1.bf16.msra.mxu0 0
      %916 = vmatprep.subr.bf16.mxu0 0
      %917 = vmatpush1.bf16.msra.mxu0 0
      %918 = vmatprep.subr.bf16.mxu0 0
      %919 = vmatpush1.bf16.msra.mxu0 0
      %920 = vmatprep.subr.bf16.mxu0 0
      %921 = vmatpush1.bf16.msra.mxu0 0
      %922 = vmatprep.subr.bf16.mxu0 0
      %923 = vmatpush1.bf16.msra.mxu0 0
      %924 = vmatprep.subr.bf16.mxu0 0
      %925 = vmatpush1.bf16.msra.mxu0 0
      %926 = vmatprep.subr.bf16.mxu0 0
      %927 = vmatpush1.bf16.msra.mxu0 0
      %928 = vmatprep.mubr.bf16.mxu0 0
      %929 = vmatmul.mubr.bf16.gmra.mrb[0].mxu0 %v870
      %v930 = vpop.f32.mrb[0].mxu0
      %v931 = vadd.f32 0.0, %v930
      %v932 = vpop.f32.mrb[0].mxu0
      %v933 = vpop.f32.mrb[0].mxu0
      %v934 = vadd.f32 0.0, %v933
      %v935 = vpop.f32.mrb[0].mxu0
      %936 = vmatprep.mubr.bf16.mxu0 0
      %937 = vmatmul.mubr.bf16.gmra.mrb[0].mxu0 %v873
      %v938 = vpop.f32.mrb[0].mxu0
      %v939 = vadd.f32 0.0, %v938
      %v940 = vpop.f32.mrb[0].mxu0
      %v941 = vpop.f32.mrb[0].mxu0
      %v942 = vadd.f32 0.0, %v941
      %v943 = vpop.f32.mrb[0].mxu0
      %944 = vmatprep.mubr.bf16.mxu0 0
      %945 = vmatmul.mubr.bf16.gmra.mrb[0].mxu0 %v876
      %v946 = vpop.f32.mrb[0].mxu0
      %v947 = vadd.f32 0.0, %v946
      %v948 = vpop.f32.mrb[0].mxu0
      %v949 = vpop.f32.mrb[0].mxu0
      %v950 = vadd.f32 0.0, %v949
      %v951 = vpop.f32.mrb[0].mxu0
      %952 = vmatprep.mubr.bf16.mxu0 0
      %953 = vmatmul.mubr.bf16.gmra.mrb[0].mxu0 %v879
      %v954 = vpop.f32.mrb[0].mxu0
      %v955 = vadd.f32 0.0, %v954
      %v956 = vpop.f32.mrb[0].mxu0
      %v957 = vpop.f32.mrb[0].mxu0
      %v958 = vadd.f32 0.0, %v957
      %v959 = vpop.f32.mrb[0].mxu0
      %960 = vmatprep.mubr.bf16.mxu0 0
      %961 = vmatmul.mubr.bf16.gmra.mrb[0].mxu0 %v882
      %v962 = vpop.f32.mrb[0].mxu0
      %v963 = vadd.f32 0.0, %v962
      %v964 = vpop.f32.mrb[0].mxu0
      %v965 = vpop.f32.mrb[0].mxu0
      %v966 = vadd.f32 0.0, %v965
      %v967 = vpop.f32.mrb[0].mxu0
      %968 = vmatprep.mubr.bf16.mxu0 0
      %969 = vmatmul.mubr.bf16.gmra.mrb[0].mxu0 %v885
      %v970 = vpop.f32.mrb[0].mxu0
      %v971 = vadd.f32 0.0, %v970
      %v972 = vpop.f32.mrb[0].mxu0
      %v973 = vpop.f32.mrb[0].mxu0
      %v974 = vadd.f32 0.0, %v973
      %v975 = vpop.f32.mrb[0].mxu0
      %976 = vmatprep.mubr.bf16.mxu0 0
      %977 = vmatmul.mubr.bf16.gmra.mrb[0].mxu0 %v888
      %v978 = vpop.f32.mrb[0].mxu0
      %v979 = vadd.f32 0.0, %v978
      %v980 = vpop.f32.mrb[0].mxu0
      %v981 = vpop.f32.mrb[0].mxu0
      %v982 = vadd.f32 0.0, %v981
      %v983 = vpop.f32.mrb[0].mxu0
      %984 = vmatprep.mubr.bf16.mxu0 0
      %985 = vmatmul.mubr.bf16.gmra.mrb[0].mxu0 %v891
      %v986 = vpop.f32.mrb[0].mxu0
      %v987 = vadd.f32 0.0, %v986
      %v988 = vpop.f32.mrb[0].mxu0
      %v989 = vpop.f32.mrb[0].mxu0
      %v990 = vadd.f32 0.0, %v989
      %v991 = vpop.f32.mrb[0].mxu0
      %992 = vdwg.mxu0
      %v993 = vld [vmem:[#allocation3] sm:$0xff]
      %v994 = vld [vmem:[#allocation3 + $0x8] sm:$0xff]
      %v995 = vld [vmem:[#allocation3 + $0x10] sm:$0xff]
      %v996 = vld [vmem:[#allocation3 + $0x18] sm:$0xff]
      %v997 = vld [vmem:[#allocation3 + $0x20] sm:$0xff]
      %v998 = vld [vmem:[#allocation3 + $0x28] sm:$0xff]
      %v999 = vld [vmem:[#allocation3 + $0x30] sm:$0xff]
      %v1000 = vld [vmem:[#allocation3 + $0x38] sm:$0xff]
      %v1001 = vld [vmem:[#allocation3 + $0x40] sm:$0xff]
      %v1002 = vld [vmem:[#allocation3 + $0x48] sm:$0xff]
      %v1003 = vld [vmem:[#allocation3 + $0x50] sm:$0xff]
      %v1004 = vld [vmem:[#allocation3 + $0x58] sm:$0xff]
      %v1005 = vld [vmem:[#allocation3 + $0x60] sm:$0xff]
      %v1006 = vld [vmem:[#allocation3 + $0x68] sm:$0xff]
      %v1007 = vld [vmem:[#allocation3 + $0x70] sm:$0xff]
      %v1008 = vld [vmem:[#allocation3 + $0x78] sm:$0xff]
      %v1009 = vadd.f32 %v993, %v931
      %v1010 = vadd.f32 %v994, %v934
      %v1011 = vadd.f32 %v995, %v939
      %v1012 = vadd.f32 %v996, %v942
      %v1013 = vadd.f32 %v997, %v947
      %v1014 = vadd.f32 %v998, %v950
      %v1015 = vadd.f32 %v999, %v955
      %v1016 = vadd.f32 %v1000, %v958
      %v1017 = vadd.f32 %v1001, %v963
      %v1018 = vadd.f32 %v1002, %v966
      %v1019 = vadd.f32 %v1003, %v971
      %v1020 = vadd.f32 %v1004, %v974
      %v1021 = vadd.f32 %v1005, %v979
      %v1022 = vadd.f32 %v1006, %v982
      %v1023 = vadd.f32 %v1007, %v987
      %v1024 = vadd.f32 %v1008, %v990
      %1025 = vst.msk [vmem:[#allocation3] sm:$0xff] %vm490, %v1009
      %1026 = vst.msk [vmem:[#allocation3 + $0x8] sm:$0xff] %vm490, %v1010
      %1027 = vst.msk [vmem:[#allocation3 + $0x10] sm:$0xff] %vm490, %v1011
      %1028 = vst.msk [vmem:[#allocation3 + $0x18] sm:$0xff] %vm490, %v1012
      %1029 = vst.msk [vmem:[#allocation3 + $0x20] sm:$0xff] %vm490, %v1013
      %1030 = vst.msk [vmem:[#allocation3 + $0x28] sm:$0xff] %vm490, %v1014
      %1031 = vst.msk [vmem:[#allocation3 + $0x30] sm:$0xff] %vm490, %v1015
      %1032 = vst.msk [vmem:[#allocation3 + $0x38] sm:$0xff] %vm490, %v1016
      %1033 = vst.msk [vmem:[#allocation3 + $0x40] sm:$0xff] %vm490, %v1017
      %1034 = vst.msk [vmem:[#allocation3 + $0x48] sm:$0xff] %vm490, %v1018
      %1035 = vst.msk [vmem:[#allocation3 + $0x50] sm:$0xff] %vm490, %v1019
      %1036 = vst.msk [vmem:[#allocation3 + $0x58] sm:$0xff] %vm490, %v1020
      %1037 = vst.msk [vmem:[#allocation3 + $0x60] sm:$0xff] %vm490, %v1021
      %1038 = vst.msk [vmem:[#allocation3 + $0x68] sm:$0xff] %vm490, %v1022
      %1039 = vst.msk [vmem:[#allocation3 + $0x70] sm:$0xff] %vm490, %v1023
      %1040 = vst.msk [vmem:[#allocation3 + $0x78] sm:$0xff] %vm490, %v1024
      %s1041 = scalar_lea.vmem %s300, 160
      %v1042 = vld [vmem:[%s1041] sm:$0xf]
      %v1043 = vld [vmem:[%s1041 + $0x4] sm:$0xf]
      %v1044 = vld [vmem:[%s1041 + $0x8] sm:$0xf]
      %v1045 = vld [vmem:[%s1041 + $0xc] sm:$0xf]
      %v1046 = vld [vmem:[%s1041 + $0x10] sm:$0xf]
      %v1047 = vld [vmem:[%s1041 + $0x14] sm:$0xf]
      %v1048 = vld [vmem:[%s1041 + $0x18] sm:$0xf]
      %v1049 = vld [vmem:[%s1041 + $0x1c] sm:$0xf]
      %v1050 = vld [vmem:[%s1041 + $0x20] sm:$0xf]
      %v1051 = vld [vmem:[%s1041 + $0x24] sm:$0xf]
      %v1052 = vld [vmem:[%s1041 + $0x28] sm:$0xf]
      %v1053 = vld [vmem:[%s1041 + $0x2c] sm:$0xf]
      %v1054 = vld [vmem:[%s1041 + $0x30] sm:$0xf]
      %v1055 = vld [vmem:[%s1041 + $0x34] sm:$0xf]
      %v1056 = vld [vmem:[%s1041 + $0x38] sm:$0xf]
      %v1057 = vld [vmem:[%s1041 + $0x3c] sm:$0xf]
      %s1058 = scalar_lea.vmem %s1, 6
      %v1059 = vld [vmem:[%s1058] sm:$0x3]
      %v1076 = vunpack.c.l.b16 %v1042
      %v1077 = vunpack.c.l.b16 %v1043
      %v1078 = vunpack.c.l.b16 %v1044
      %v1079 = vunpack.c.l.b16 %v1045
      %v1080 = vunpack.c.l.b16 %v1046
      %v1081 = vunpack.c.l.b16 %v1047
      %v1082 = vunpack.c.l.b16 %v1048
      %v1083 = vunpack.c.l.b16 %v1049
      %v1084 = vunpack.c.l.b16 %v1050
      %v1085 = vunpack.c.l.b16 %v1051
      %v1086 = vunpack.c.l.b16 %v1052
      %v1087 = vunpack.c.l.b16 %v1053
      %v1088 = vunpack.c.l.b16 %v1054
      %v1089 = vunpack.c.l.b16 %v1055
      %v1090 = vunpack.c.l.b16 %v1056
      %v1091 = vunpack.c.l.b16 %v1057
      %v1092 = vpack.c.b16 %v1077, %v1076
      %v1093 = vpack.c.b16 %v1079, %v1078
      %v1094 = vpack.c.b16 %v1081, %v1080
      %v1095 = vpack.c.b16 %v1083, %v1082
      %v1096 = vpack.c.b16 %v1085, %v1084
      %v1097 = vpack.c.b16 %v1087, %v1086
      %v1098 = vpack.c.b16 %v1089, %v1088
      %v1099 = vpack.c.b16 %v1091, %v1090
      %v1101 = vsel %vm364, %v1092, 0
      %v1104 = vsel %vm364, %v1093, 0
      %v1107 = vsel %vm364, %v1094, 0
      %v1110 = vsel %vm364, %v1095, 0
      %v1113 = vsel %vm364, %v1096, 0
      %v1116 = vsel %vm364, %v1097, 0
      %v1119 = vsel %vm364, %v1098, 0
      %v1122 = vsel %vm364, %v1099, 0
      %v1125 = vsel %vm389, %v1059, 0
      %1127 = vmatprep.subr.bf16.mxu0 0
      %1128 = vmatpush1.bf16.msra.mxu0 %v1125
      %1129 = vmatprep.subr.bf16.mxu0 0
      %1130 = vmatpush1.bf16.msra.mxu0 0
      %1131 = vmatprep.subr.bf16.mxu0 0
      %1132 = vmatpush1.bf16.msra.mxu0 0
      %1133 = vmatprep.subr.bf16.mxu0 0
      %1134 = vmatpush1.bf16.msra.mxu0 0
      %1135 = vmatprep.subr.bf16.mxu0 0
      %1136 = vmatpush1.bf16.msra.mxu0 0
      %1137 = vmatprep.subr.bf16.mxu0 0
      %1138 = vmatpush1.bf16.msra.mxu0 0
      %1139 = vmatprep.subr.bf16.mxu0 0
      %1140 = vmatpush1.bf16.msra.mxu0 0
      %1141 = vmatprep.subr.bf16.mxu0 0
      %1142 = vmatpush1.bf16.msra.mxu0 0
      %1143 = vmatprep.subr.bf16.mxu0 0
      %1144 = vmatpush1.bf16.msra.mxu0 0
      %1145 = vmatprep.subr.bf16.mxu0 0
      %1146 = vmatpush1.bf16.msra.mxu0 0
      %1147 = vmatprep.subr.bf16.mxu0 0
      %1148 = vmatpush1.bf16.msra.mxu0 0
      %1149 = vmatprep.subr.bf16.mxu0 0
      %1150 = vmatpush1.bf16.msra.mxu0 0
      %1151 = vmatprep.subr.bf16.mxu0 0
      %1152 = vmatpush1.bf16.msra.mxu0 0
      %1153 = vmatprep.subr.bf16.mxu0 0
      %1154 = vmatpush1.bf16.msra.mxu0 0
      %1155 = vmatprep.subr.bf16.mxu0 0
      %1156 = vmatpush1.bf16.msra.mxu0 0
      %1157 = vmatprep.subr.bf16.mxu0 0
      %1158 = vmatpush1.bf16.msra.mxu0 0
      %1159 = vmatprep.mubr.bf16.mxu0 0
      %1160 = vmatmul.mubr.bf16.gmra.mrb[0].mxu0 %v1101
      %v1161 = vpop.f32.mrb[0].mxu0
      %v1162 = vadd.f32 0.0, %v1161
      %v1163 = vpop.f32.mrb[0].mxu0
      %v1164 = vpop.f32.mrb[0].mxu0
      %v1165 = vadd.f32 0.0, %v1164
      %v1166 = vpop.f32.mrb[0].mxu0
      %1167 = vmatprep.mubr.bf16.mxu0 0
      %1168 = vmatmul.mubr.bf16.gmra.mrb[0].mxu0 %v1104
      %v1169 = vpop.f32.mrb[0].mxu0
      %v1170 = vadd.f32 0.0, %v1169
      %v1171 = vpop.f32.mrb[0].mxu0
      %v1172 = vpop.f32.mrb[0].mxu0
      %v1173 = vadd.f32 0.0, %v1172
      %v1174 = vpop.f32.mrb[0].mxu0
      %1175 = vmatprep.mubr.bf16.mxu0 0
      %1176 = vmatmul.mubr.bf16.gmra.mrb[0].mxu0 %v1107
      %v1177 = vpop.f32.mrb[0].mxu0
      %v1178 = vadd.f32 0.0, %v1177
      %v1179 = vpop.f32.mrb[0].mxu0
      %v1180 = vpop.f32.mrb[0].mxu0
      %v1181 = vadd.f32 0.0, %v1180
      %v1182 = vpop.f32.mrb[0].mxu0
      %1183 = vmatprep.mubr.bf16.mxu0 0
      %1184 = vmatmul.mubr.bf16.gmra.mrb[0].mxu0 %v1110
      %v1185 = vpop.f32.mrb[0].mxu0
      %v1186 = vadd.f32 0.0, %v1185
      %v1187 = vpop.f32.mrb[0].mxu0
      %v1188 = vpop.f32.mrb[0].mxu0
      %v1189 = vadd.f32 0.0, %v1188
      %v1190 = vpop.f32.mrb[0].mxu0
      %1191 = vmatprep.mubr.bf16.mxu0 0
      %1192 = vmatmul.mubr.bf16.gmra.mrb[0].mxu0 %v1113
      %v1193 = vpop.f32.mrb[0].mxu0
      %v1194 = vadd.f32 0.0, %v1193
      %v1195 = vpop.f32.mrb[0].mxu0
      %v1196 = vpop.f32.mrb[0].mxu0
      %v1197 = vadd.f32 0.0, %v1196
      %v1198 = vpop.f32.mrb[0].mxu0
      %1199 = vmatprep.mubr.bf16.mxu0 0
      %1200 = vmatmul.mubr.bf16.gmra.mrb[0].mxu0 %v1116
      %v1201 = vpop.f32.mrb[0].mxu0
      %v1202 = vadd.f32 0.0, %v1201
      %v1203 = vpop.f32.mrb[0].mxu0
      %v1204 = vpop.f32.mrb[0].mxu0
      %v1205 = vadd.f32 0.0, %v1204
      %v1206 = vpop.f32.mrb[0].mxu0
      %1207 = vmatprep.mubr.bf16.mxu0 0
      %1208 = vmatmul.mubr.bf16.gmra.mrb[0].mxu0 %v1119
      %v1209 = vpop.f32.mrb[0].mxu0
      %v1210 = vadd.f32 0.0, %v1209
      %v1211 = vpop.f32.mrb[0].mxu0
      %v1212 = vpop.f32.mrb[0].mxu0
      %v1213 = vadd.f32 0.0, %v1212
      %v1214 = vpop.f32.mrb[0].mxu0
      %1215 = vmatprep.mubr.bf16.mxu0 0
      %1216 = vmatmul.mubr.bf16.gmra.mrb[0].mxu0 %v1122
      %v1217 = vpop.f32.mrb[0].mxu0
      %v1218 = vadd.f32 0.0, %v1217
      %v1219 = vpop.f32.mrb[0].mxu0
      %v1220 = vpop.f32.mrb[0].mxu0
      %v1221 = vadd.f32 0.0, %v1220
      %v1222 = vpop.f32.mrb[0].mxu0
      %1223 = vdwg.mxu0
      %v1224 = vld [vmem:[#allocation3] sm:$0xff]
      %v1225 = vld [vmem:[#allocation3 + $0x8] sm:$0xff]
      %v1226 = vld [vmem:[#allocation3 + $0x10] sm:$0xff]
      %v1227 = vld [vmem:[#allocation3 + $0x18] sm:$0xff]
      %v1228 = vld [vmem:[#allocation3 + $0x20] sm:$0xff]
      %v1229 = vld [vmem:[#allocation3 + $0x28] sm:$0xff]
      %v1230 = vld [vmem:[#allocation3 + $0x30] sm:$0xff]
      %v1231 = vld [vmem:[#allocation3 + $0x38] sm:$0xff]
      %v1232 = vld [vmem:[#allocation3 + $0x40] sm:$0xff]
      %v1233 = vld [vmem:[#allocation3 + $0x48] sm:$0xff]
      %v1234 = vld [vmem:[#allocation3 + $0x50] sm:$0xff]
      %v1235 = vld [vmem:[#allocation3 + $0x58] sm:$0xff]
      %v1236 = vld [vmem:[#allocation3 + $0x60] sm:$0xff]
      %v1237 = vld [vmem:[#allocation3 + $0x68] sm:$0xff]
      %v1238 = vld [vmem:[#allocation3 + $0x70] sm:$0xff]
      %v1239 = vld [vmem:[#allocation3 + $0x78] sm:$0xff]
      %v1240 = vadd.f32 %v1224, %v1162
      %v1241 = vadd.f32 %v1225, %v1165
      %v1242 = vadd.f32 %v1226, %v1170
      %v1243 = vadd.f32 %v1227, %v1173
      %v1244 = vadd.f32 %v1228, %v1178
      %v1245 = vadd.f32 %v1229, %v1181
      %v1246 = vadd.f32 %v1230, %v1186
      %v1247 = vadd.f32 %v1231, %v1189
      %v1248 = vadd.f32 %v1232, %v1194
      %v1249 = vadd.f32 %v1233, %v1197
      %v1250 = vadd.f32 %v1234, %v1202
      %v1251 = vadd.f32 %v1235, %v1205
      %v1252 = vadd.f32 %v1236, %v1210
      %v1253 = vadd.f32 %v1237, %v1213
      %v1254 = vadd.f32 %v1238, %v1218
      %v1255 = vadd.f32 %v1239, %v1221
      %1256 = vst.msk [vmem:[#allocation3] sm:$0xff] %vm490, %v1240
      %1257 = vst.msk [vmem:[#allocation3 + $0x8] sm:$0xff] %vm490, %v1241
      %1258 = vst.msk [vmem:[#allocation3 + $0x10] sm:$0xff] %vm490, %v1242
      %1259 = vst.msk [vmem:[#allocation3 + $0x18] sm:$0xff] %vm490, %v1243
      %1260 = vst.msk [vmem:[#allocation3 + $0x20] sm:$0xff] %vm490, %v1244
      %1261 = vst.msk [vmem:[#allocation3 + $0x28] sm:$0xff] %vm490, %v1245
      %1262 = vst.msk [vmem:[#allocation3 + $0x30] sm:$0xff] %vm490, %v1246
      %1263 = vst.msk [vmem:[#allocation3 + $0x38] sm:$0xff] %vm490, %v1247
      %1264 = vst.msk [vmem:[#allocation3 + $0x40] sm:$0xff] %vm490, %v1248
      %1265 = vst.msk [vmem:[#allocation3 + $0x48] sm:$0xff] %vm490, %v1249
      %1266 = vst.msk [vmem:[#allocation3 + $0x50] sm:$0xff] %vm490, %v1250
      %1267 = vst.msk [vmem:[#allocation3 + $0x58] sm:$0xff] %vm490, %v1251
      %1268 = vst.msk [vmem:[#allocation3 + $0x60] sm:$0xff] %vm490, %v1252
      %1269 = vst.msk [vmem:[#allocation3 + $0x68] sm:$0xff] %vm490, %v1253
      %1270 = vst.msk [vmem:[#allocation3 + $0x70] sm:$0xff] %vm490, %v1254
      %1271 = vst.msk [vmem:[#allocation3 + $0x78] sm:$0xff] %vm490, %v1255
      %s1272 = scalar_lea.vmem %s300, 240
      %v1273 = vld [vmem:[%s1272] sm:$0xf]
      %v1274 = vld [vmem:[%s1272 + $0x4] sm:$0xf]
      %v1275 = vld [vmem:[%s1272 + $0x8] sm:$0xf]
      %v1276 = vld [vmem:[%s1272 + $0xc] sm:$0xf]
      %v1277 = vld [vmem:[%s1272 + $0x10] sm:$0xf]
      %v1278 = vld [vmem:[%s1272 + $0x14] sm:$0xf]
      %v1279 = vld [vmem:[%s1272 + $0x18] sm:$0xf]
      %v1280 = vld [vmem:[%s1272 + $0x1c] sm:$0xf]
      %v1281 = vld [vmem:[%s1272 + $0x20] sm:$0xf]
      %v1282 = vld [vmem:[%s1272 + $0x24] sm:$0xf]
      %v1283 = vld [vmem:[%s1272 + $0x28] sm:$0xf]
      %v1284 = vld [vmem:[%s1272 + $0x2c] sm:$0xf]
      %v1285 = vld [vmem:[%s1272 + $0x30] sm:$0xf]
      %v1286 = vld [vmem:[%s1272 + $0x34] sm:$0xf]
      %v1287 = vld [vmem:[%s1272 + $0x38] sm:$0xf]
      %v1288 = vld [vmem:[%s1272 + $0x3c] sm:$0xf]
      %s1289 = scalar_lea.vmem %s1, 8
      %v1290 = vld [vmem:[%s1289] sm:$0x3]
      %v1307 = vunpack.c.l.b16 %v1273
      %v1308 = vunpack.c.l.b16 %v1274
      %v1309 = vunpack.c.l.b16 %v1275
      %v1310 = vunpack.c.l.b16 %v1276
      %v1311 = vunpack.c.l.b16 %v1277
      %v1312 = vunpack.c.l.b16 %v1278
      %v1313 = vunpack.c.l.b16 %v1279
      %v1314 = vunpack.c.l.b16 %v1280
      %v1315 = vunpack.c.l.b16 %v1281
      %v1316 = vunpack.c.l.b16 %v1282
      %v1317 = vunpack.c.l.b16 %v1283
      %v1318 = vunpack.c.l.b16 %v1284
      %v1319 = vunpack.c.l.b16 %v1285
      %v1320 = vunpack.c.l.b16 %v1286
      %v1321 = vunpack.c.l.b16 %v1287
      %v1322 = vunpack.c.l.b16 %v1288
      %v1323 = vpack.c.b16 %v1308, %v1307
      %v1324 = vpack.c.b16 %v1310, %v1309
      %v1325 = vpack.c.b16 %v1312, %v1311
      %v1326 = vpack.c.b16 %v1314, %v1313
      %v1327 = vpack.c.b16 %v1316, %v1315
      %v1328 = vpack.c.b16 %v1318, %v1317
      %v1329 = vpack.c.b16 %v1320, %v1319
      %v1330 = vpack.c.b16 %v1322, %v1321
      %v1332 = vsel %vm364, %v1323, 0
      %v1335 = vsel %vm364, %v1324, 0
      %v1338 = vsel %vm364, %v1325, 0
      %v1341 = vsel %vm364, %v1326, 0
      %v1344 = vsel %vm364, %v1327, 0
      %v1347 = vsel %vm364, %v1328, 0
      %v1350 = vsel %vm364, %v1329, 0
      %v1353 = vsel %vm364, %v1330, 0
      %v1356 = vsel %vm389, %v1290, 0
      %1358 = vmatprep.subr.bf16.mxu0 0
      %1359 = vmatpush1.bf16.msra.mxu0 %v1356
      %1360 = vmatprep.subr.bf16.mxu0 0
      %1361 = vmatpush1.bf16.msra.mxu0 0
      %1362 = vmatprep.subr.bf16.mxu0 0
      %1363 = vmatpush1.bf16.msra.mxu0 0
      %1364 = vmatprep.subr.bf16.mxu0 0
      %1365 = vmatpush1.bf16.msra.mxu0 0
      %1366 = vmatprep.subr.bf16.mxu0 0
      %1367 = vmatpush1.bf16.msra.mxu0 0
      %1368 = vmatprep.subr.bf16.mxu0 0
      %1369 = vmatpush1.bf16.msra.mxu0 0
      %1370 = vmatprep.subr.bf16.mxu0 0
      %1371 = vmatpush1.bf16.msra.mxu0 0
      %1372 = vmatprep.subr.bf16.mxu0 0
      %1373 = vmatpush1.bf16.msra.mxu0 0
      %1374 = vmatprep.subr.bf16.mxu0 0
      %1375 = vmatpush1.bf16.msra.mxu0 0
      %1376 = vmatprep.subr.bf16.mxu0 0
      %1377 = vmatpush1.bf16.msra.mxu0 0
      %1378 = vmatprep.subr.bf16.mxu0 0
      %1379 = vmatpush1.bf16.msra.mxu0 0
      %1380 = vmatprep.subr.bf16.mxu0 0
      %1381 = vmatpush1.bf16.msra.mxu0 0
      %1382 = vmatprep.subr.bf16.mxu0 0
      %1383 = vmatpush1.bf16.msra.mxu0 0
      %1384 = vmatprep.subr.bf16.mxu0 0
      %1385 = vmatpush1.bf16.msra.mxu0 0
      %1386 = vmatprep.subr.bf16.mxu0 0
      %1387 = vmatpush1.bf16.msra.mxu0 0
      %1388 = vmatprep.subr.bf16.mxu0 0
      %1389 = vmatpush1.bf16.msra.mxu0 0
      %1390 = vmatprep.mubr.bf16.mxu0 0
      %1391 = vmatmul.mubr.bf16.gmra.mrb[0].mxu0 %v1332
      %v1392 = vpop.f32.mrb[0].mxu0
      %v1393 = vadd.f32 0.0, %v1392
      %v1394 = vpop.f32.mrb[0].mxu0
      %v1395 = vpop.f32.mrb[0].mxu0
      %v1396 = vadd.f32 0.0, %v1395
      %v1397 = vpop.f32.mrb[0].mxu0
      %1398 = vmatprep.mubr.bf16.mxu0 0
      %1399 = vmatmul.mubr.bf16.gmra.mrb[0].mxu0 %v1335
      %v1400 = vpop.f32.mrb[0].mxu0
      %v1401 = vadd.f32 0.0, %v1400
      %v1402 = vpop.f32.mrb[0].mxu0
      %v1403 = vpop.f32.mrb[0].mxu0
      %v1404 = vadd.f32 0.0, %v1403
      %v1405 = vpop.f32.mrb[0].mxu0
      %1406 = vmatprep.mubr.bf16.mxu0 0
      %1407 = vmatmul.mubr.bf16.gmra.mrb[0].mxu0 %v1338
      %v1408 = vpop.f32.mrb[0].mxu0
      %v1409 = vadd.f32 0.0, %v1408
      %v1410 = vpop.f32.mrb[0].mxu0
      %v1411 = vpop.f32.mrb[0].mxu0
      %v1412 = vadd.f32 0.0, %v1411
      %v1413 = vpop.f32.mrb[0].mxu0
      %1414 = vmatprep.mubr.bf16.mxu0 0
      %1415 = vmatmul.mubr.bf16.gmra.mrb[0].mxu0 %v1341
      %v1416 = vpop.f32.mrb[0].mxu0
      %v1417 = vadd.f32 0.0, %v1416
      %v1418 = vpop.f32.mrb[0].mxu0
      %v1419 = vpop.f32.mrb[0].mxu0
      %v1420 = vadd.f32 0.0, %v1419
      %v1421 = vpop.f32.mrb[0].mxu0
      %1422 = vmatprep.mubr.bf16.mxu0 0
      %1423 = vmatmul.mubr.bf16.gmra.mrb[0].mxu0 %v1344
      %v1424 = vpop.f32.mrb[0].mxu0
      %v1425 = vadd.f32 0.0, %v1424
      %v1426 = vpop.f32.mrb[0].mxu0
      %v1427 = vpop.f32.mrb[0].mxu0
      %v1428 = vadd.f32 0.0, %v1427
      %v1429 = vpop.f32.mrb[0].mxu0
      %1430 = vmatprep.mubr.bf16.mxu0 0
      %1431 = vmatmul.mubr.bf16.gmra.mrb[0].mxu0 %v1347
      %v1432 = vpop.f32.mrb[0].mxu0
      %v1433 = vadd.f32 0.0, %v1432
      %v1434 = vpop.f32.mrb[0].mxu0
      %v1435 = vpop.f32.mrb[0].mxu0
      %v1436 = vadd.f32 0.0, %v1435
      %v1437 = vpop.f32.mrb[0].mxu0
      %1438 = vmatprep.mubr.bf16.mxu0 0
      %1439 = vmatmul.mubr.bf16.gmra.mrb[0].mxu0 %v1350
      %v1440 = vpop.f32.mrb[0].mxu0
      %v1441 = vadd.f32 0.0, %v1440
      %v1442 = vpop.f32.mrb[0].mxu0
      %v1443 = vpop.f32.mrb[0].mxu0
      %v1444 = vadd.f32 0.0, %v1443
      %v1445 = vpop.f32.mrb[0].mxu0
      %1446 = vmatprep.mubr.bf16.mxu0 0
      %1447 = vmatmul.mubr.bf16.gmra.mrb[0].mxu0 %v1353
      %v1448 = vpop.f32.mrb[0].mxu0
      %v1449 = vadd.f32 0.0, %v1448
      %v1450 = vpop.f32.mrb[0].mxu0
      %v1451 = vpop.f32.mrb[0].mxu0
      %v1452 = vadd.f32 0.0, %v1451
      %v1453 = vpop.f32.mrb[0].mxu0
      %1454 = vdwg.mxu0
      %v1455 = vld [vmem:[#allocation3] sm:$0xff]
      %v1456 = vld [vmem:[#allocation3 + $0x8] sm:$0xff]
      %v1457 = vld [vmem:[#allocation3 + $0x10] sm:$0xff]
      %v1458 = vld [vmem:[#allocation3 + $0x18] sm:$0xff]
      %v1459 = vld [vmem:[#allocation3 + $0x20] sm:$0xff]
      %v1460 = vld [vmem:[#allocation3 + $0x28] sm:$0xff]
      %v1461 = vld [vmem:[#allocation3 + $0x30] sm:$0xff]
      %v1462 = vld [vmem:[#allocation3 + $0x38] sm:$0xff]
      %v1463 = vld [vmem:[#allocation3 + $0x40] sm:$0xff]
      %v1464 = vld [vmem:[#allocation3 + $0x48] sm:$0xff]
      %v1465 = vld [vmem:[#allocation3 + $0x50] sm:$0xff]
      %v1466 = vld [vmem:[#allocation3 + $0x58] sm:$0xff]
      %v1467 = vld [vmem:[#allocation3 + $0x60] sm:$0xff]
      %v1468 = vld [vmem:[#allocation3 + $0x68] sm:$0xff]
      %v1469 = vld [vmem:[#allocation3 + $0x70] sm:$0xff]
      %v1470 = vld [vmem:[#allocation3 + $0x78] sm:$0xff]
      %v1471 = vadd.f32 %v1455, %v1393
      %v1472 = vadd.f32 %v1456, %v1396
      %v1473 = vadd.f32 %v1457, %v1401
      %v1474 = vadd.f32 %v1458, %v1404
      %v1475 = vadd.f32 %v1459, %v1409
      %v1476 = vadd.f32 %v1460, %v1412
      %v1477 = vadd.f32 %v1461, %v1417
      %v1478 = vadd.f32 %v1462, %v1420
      %v1479 = vadd.f32 %v1463, %v1425
      %v1480 = vadd.f32 %v1464, %v1428
      %v1481 = vadd.f32 %v1465, %v1433
      %v1482 = vadd.f32 %v1466, %v1436
      %v1483 = vadd.f32 %v1467, %v1441
      %v1484 = vadd.f32 %v1468, %v1444
      %v1485 = vadd.f32 %v1469, %v1449
      %v1486 = vadd.f32 %v1470, %v1452
      %1487 = vst.msk [vmem:[#allocation3] sm:$0xff] %vm490, %v1471
      %1488 = vst.msk [vmem:[#allocation3 + $0x8] sm:$0xff] %vm490, %v1472
      %1489 = vst.msk [vmem:[#allocation3 + $0x10] sm:$0xff] %vm490, %v1473
      %1490 = vst.msk [vmem:[#allocation3 + $0x18] sm:$0xff] %vm490, %v1474
      %1491 = vst.msk [vmem:[#allocation3 + $0x20] sm:$0xff] %vm490, %v1475
      %1492 = vst.msk [vmem:[#allocation3 + $0x28] sm:$0xff] %vm490, %v1476
      %1493 = vst.msk [vmem:[#allocation3 + $0x30] sm:$0xff] %vm490, %v1477
      %1494 = vst.msk [vmem:[#allocation3 + $0x38] sm:$0xff] %vm490, %v1478
      %1495 = vst.msk [vmem:[#allocation3 + $0x40] sm:$0xff] %vm490, %v1479
      %1496 = vst.msk [vmem:[#allocation3 + $0x48] sm:$0xff] %vm490, %v1480
      %1497 = vst.msk [vmem:[#allocation3 + $0x50] sm:$0xff] %vm490, %v1481
      %1498 = vst.msk [vmem:[#allocation3 + $0x58] sm:$0xff] %vm490, %v1482
      %1499 = vst.msk [vmem:[#allocation3 + $0x60] sm:$0xff] %vm490, %v1483
      %1500 = vst.msk [vmem:[#allocation3 + $0x68] sm:$0xff] %vm490, %v1484
      %1501 = vst.msk [vmem:[#allocation3 + $0x70] sm:$0xff] %vm490, %v1485
      %1502 = vst.msk [vmem:[#allocation3 + $0x78] sm:$0xff] %vm490, %v1486
      %v1503 = vld [vmem:[%s1041] sm:$0xf]
      %v1504 = vld [vmem:[%s1041 + $0x4] sm:$0xf]
      %v1505 = vld [vmem:[%s1041 + $0x8] sm:$0xf]
      %v1506 = vld [vmem:[%s1041 + $0xc] sm:$0xf]
      %v1507 = vld [vmem:[%s1041 + $0x10] sm:$0xf]
      %v1508 = vld [vmem:[%s1041 + $0x14] sm:$0xf]
      %v1509 = vld [vmem:[%s1041 + $0x18] sm:$0xf]
      %v1510 = vld [vmem:[%s1041 + $0x1c] sm:$0xf]
      %v1511 = vld [vmem:[%s1041 + $0x20] sm:$0xf]
      %v1512 = vld [vmem:[%s1041 + $0x24] sm:$0xf]
      %v1513 = vld [vmem:[%s1041 + $0x28] sm:$0xf]
      %v1514 = vld [vmem:[%s1041 + $0x2c] sm:$0xf]
      %v1515 = vld [vmem:[%s1041 + $0x30] sm:$0xf]
      %v1516 = vld [vmem:[%s1041 + $0x34] sm:$0xf]
      %v1517 = vld [vmem:[%s1041 + $0x38] sm:$0xf]
      %v1518 = vld [vmem:[%s1041 + $0x3c] sm:$0xf]
      %v1519 = vld [vmem:[%s1041 + $0x40] sm:$0x1]
      %s1520 = scalar_lea.vmem %s1, 10
      %v1521 = vld [vmem:[%s1520] sm:$0x3]
      %v1539 = vunpack.c.l.b16 %v1503
      %v1540 = vunpack.c.l.b16 %v1504
      %v1541 = vunpack.c.l.b16 %v1505
      %v1542 = vunpack.c.l.b16 %v1506
      %v1543 = vunpack.c.l.b16 %v1507
      %v1544 = vunpack.c.l.b16 %v1508
      %v1545 = vunpack.c.l.b16 %v1509
      %v1546 = vunpack.c.l.b16 %v1510
      %v1547 = vunpack.c.l.b16 %v1511
      %v1548 = vunpack.c.l.b16 %v1512
      %v1549 = vunpack.c.l.b16 %v1513
      %v1550 = vunpack.c.l.b16 %v1514
      %v1551 = vunpack.c.l.b16 %v1515
      %v1552 = vunpack.c.l.b16 %v1516
      %v1553 = vunpack.c.l.b16 %v1517
      %v1554 = vunpack.c.l.b16 %v1518
      %v1555 = vunpack.c.l.b16 %v1519
      %v1556 = vpack.c.b16 %v1540, %v1539
      %v1557 = vpack.c.b16 %v1542, %v1541
      %v1558 = vpack.c.b16 %v1544, %v1543
      %v1559 = vpack.c.b16 %v1546, %v1545
      %v1560 = vpack.c.b16 %v1548, %v1547
      %v1561 = vpack.c.b16 %v1550, %v1549
      %v1562 = vpack.c.b16 %v1552, %v1551
      %v1563 = vpack.c.b16 %v1554, %v1553
      %v1564 = vpack.c.b16 %v1555, %v1555
      %v1566 = vshrl.u32 %v1556, 16
      %v1568 = vshll.u32 %v1556, 16
      %v1570 = vrot.slane %v1568, 1
      %v1571 = vor.u32 %v1566, %v1570
      %v1573 = vshll.u32 %v1557, 16
      %v1575 = vrot.slane %v1573, 1
      %v1576 = vsel %vm800, %v1571, %v1575
      %v1577 = vshrl.u32 %v1557, 16
      %v1579 = vor.u32 %v1577, %v1575
      %v1581 = vshll.u32 %v1558, 16
      %v1583 = vrot.slane %v1581, 1
      %v1584 = vsel %vm800, %v1579, %v1583
      %v1585 = vshrl.u32 %v1558, 16
      %v1587 = vor.u32 %v1585, %v1583
      %v1589 = vshll.u32 %v1559, 16
      %v1591 = vrot.slane %v1589, 1
      %v1592 = vsel %vm800, %v1587, %v1591
      %v1593 = vshrl.u32 %v1559, 16
      %v1595 = vor.u32 %v1593, %v1591
      %v1597 = vshll.u32 %v1560, 16
      %v1599 = vrot.slane %v1597, 1
      %v1600 = vsel %vm800, %v1595, %v1599
      %v1601 = vshrl.u32 %v1560, 16
      %v1603 = vor.u32 %v1601, %v1599
      %v1605 = vshll.u32 %v1561, 16
      %v1607 = vrot.slane %v1605, 1
      %v1608 = vsel %vm800, %v1603, %v1607
      %v1609 = vshrl.u32 %v1561, 16
      %v1611 = vor.u32 %v1609, %v1607
      %v1613 = vshll.u32 %v1562, 16
      %v1615 = vrot.slane %v1613, 1
      %v1616 = vsel %vm800, %v1611, %v1615
      %v1617 = vshrl.u32 %v1562, 16
      %v1619 = vor.u32 %v1617, %v1615
      %v1621 = vshll.u32 %v1563, 16
      %v1623 = vrot.slane %v1621, 1
      %v1624 = vsel %vm800, %v1619, %v1623
      %v1625 = vshrl.u32 %v1563, 16
      %v1627 = vor.u32 %v1625, %v1623
      %v1629 = vshll.u32 %v1564, 16
      %v1631 = vrot.slane %v1629, 1
      %v1632 = vsel %vm800, %v1627, %v1631
      %v1634 = vsel %vm364, %v1576, 0
      %v1637 = vsel %vm364, %v1584, 0
      %v1640 = vsel %vm364, %v1592, 0
      %v1643 = vsel %vm364, %v1600, 0
      %v1646 = vsel %vm364, %v1608, 0
      %v1649 = vsel %vm364, %v1616, 0
      %v1652 = vsel %vm364, %v1624, 0
      %v1655 = vsel %vm364, %v1632, 0
      %v1658 = vsel %vm389, %v1521, 0
      %1660 = vmatprep.subr.bf16.mxu0 0
      %1661 = vmatpush1.bf16.msra.mxu0 %v1658
      %1662 = vmatprep.subr.bf16.mxu0 0
      %1663 = vmatpush1.bf16.msra.mxu0 0
      %1664 = vmatprep.subr.bf16.mxu0 0
      %1665 = vmatpush1.bf16.msra.mxu0 0
      %1666 = vmatprep.subr.bf16.mxu0 0
      %1667 = vmatpush1.bf16.msra.mxu0 0
      %1668 = vmatprep.subr.bf16.mxu0 0
      %1669 = vmatpush1.bf16.msra.mxu0 0
      %1670 = vmatprep.subr.bf16.mxu0 0
      %1671 = vmatpush1.bf16.msra.mxu0 0
      %1672 = vmatprep.subr.bf16.mxu0 0
      %1673 = vmatpush1.bf16.msra.mxu0 0
      %1674 = vmatprep.subr.bf16.mxu0 0
      %1675 = vmatpush1.bf16.msra.mxu0 0
      %1676 = vmatprep.subr.bf16.mxu0 0
      %1677 = vmatpush1.bf16.msra.mxu0 0
      %1678 = vmatprep.subr.bf16.mxu0 0
      %1679 = vmatpush1.bf16.msra.mxu0 0
      %1680 = vmatprep.subr.bf16.mxu0 0
      %1681 = vmatpush1.bf16.msra.mxu0 0
      %1682 = vmatprep.subr.bf16.mxu0 0
      %1683 = vmatpush1.bf16.msra.mxu0 0
      %1684 = vmatprep.subr.bf16.mxu0 0
      %1685 = vmatpush1.bf16.msra.mxu0 0
      %1686 = vmatprep.subr.bf16.mxu0 0
      %1687 = vmatpush1.bf16.msra.mxu0 0
      %1688 = vmatprep.subr.bf16.mxu0 0
      %1689 = vmatpush1.bf16.msra.mxu0 0
      %1690 = vmatprep.subr.bf16.mxu0 0
      %1691 = vmatpush1.bf16.msra.mxu0 0
      %1692 = vmatprep.mubr.bf16.mxu0 0
      %1693 = vmatmul.mubr.bf16.gmra.mrb[0].mxu0 %v1634
      %v1694 = vpop.f32.mrb[0].mxu0
      %v1695 = vadd.f32 0.0, %v1694
      %v1696 = vpop.f32.mrb[0].mxu0
      %v1697 = vpop.f32.mrb[0].mxu0
      %v1698 = vadd.f32 0.0, %v1697
      %v1699 = vpop.f32.mrb[0].mxu0
      %1700 = vmatprep.mubr.bf16.mxu0 0
      %1701 = vmatmul.mubr.bf16.gmra.mrb[0].mxu0 %v1637
      %v1702 = vpop.f32.mrb[0].mxu0
      %v1703 = vadd.f32 0.0, %v1702
      %v1704 = vpop.f32.mrb[0].mxu0
      %v1705 = vpop.f32.mrb[0].mxu0
      %v1706 = vadd.f32 0.0, %v1705
      %v1707 = vpop.f32.mrb[0].mxu0
      %1708 = vmatprep.mubr.bf16.mxu0 0
      %1709 = vmatmul.mubr.bf16.gmra.mrb[0].mxu0 %v1640
      %v1710 = vpop.f32.mrb[0].mxu0
      %v1711 = vadd.f32 0.0, %v1710
      %v1712 = vpop.f32.mrb[0].mxu0
      %v1713 = vpop.f32.mrb[0].mxu0
      %v1714 = vadd.f32 0.0, %v1713
      %v1715 = vpop.f32.mrb[0].mxu0
      %1716 = vmatprep.mubr.bf16.mxu0 0
      %1717 = vmatmul.mubr.bf16.gmra.mrb[0].mxu0 %v1643
      %v1718 = vpop.f32.mrb[0].mxu0
      %v1719 = vadd.f32 0.0, %v1718
      %v1720 = vpop.f32.mrb[0].mxu0
      %v1721 = vpop.f32.mrb[0].mxu0
      %v1722 = vadd.f32 0.0, %v1721
      %v1723 = vpop.f32.mrb[0].mxu0
      %1724 = vmatprep.mubr.bf16.mxu0 0
      %1725 = vmatmul.mubr.bf16.gmra.mrb[0].mxu0 %v1646
      %v1726 = vpop.f32.mrb[0].mxu0
      %v1727 = vadd.f32 0.0, %v1726
      %v1728 = vpop.f32.mrb[0].mxu0
      %v1729 = vpop.f32.mrb[0].mxu0
      %v1730 = vadd.f32 0.0, %v1729
      %v1731 = vpop.f32.mrb[0].mxu0
      %1732 = vmatprep.mubr.bf16.mxu0 0
      %1733 = vmatmul.mubr.bf16.gmra.mrb[0].mxu0 %v1649
      %v1734 = vpop.f32.mrb[0].mxu0
      %v1735 = vadd.f32 0.0, %v1734
      %v1736 = vpop.f32.mrb[0].mxu0
      %v1737 = vpop.f32.mrb[0].mxu0
      %v1738 = vadd.f32 0.0, %v1737
      %v1739 = vpop.f32.mrb[0].mxu0
      %1740 = vmatprep.mubr.bf16.mxu0 0
      %1741 = vmatmul.mubr.bf16.gmra.mrb[0].mxu0 %v1652
      %v1742 = vpop.f32.mrb[0].mxu0
      %v1743 = vadd.f32 0.0, %v1742
      %v1744 = vpop.f32.mrb[0].mxu0
      %v1745 = vpop.f32.mrb[0].mxu0
      %v1746 = vadd.f32 0.0, %v1745
      %v1747 = vpop.f32.mrb[0].mxu0
      %1748 = vmatprep.mubr.bf16.mxu0 0
      %1749 = vmatmul.mubr.bf16.gmra.mrb[0].mxu0 %v1655
      %v1750 = vpop.f32.mrb[0].mxu0
      %v1751 = vadd.f32 0.0, %v1750
      %v1752 = vpop.f32.mrb[0].mxu0
      %v1753 = vpop.f32.mrb[0].mxu0
      %v1754 = vadd.f32 0.0, %v1753
      %v1755 = vpop.f32.mrb[0].mxu0
      %1756 = vdwg.mxu0
      %v1757 = vld [vmem:[#allocation3] sm:$0xff]
      %v1758 = vld [vmem:[#allocation3 + $0x8] sm:$0xff]
      %v1759 = vld [vmem:[#allocation3 + $0x10] sm:$0xff]
      %v1760 = vld [vmem:[#allocation3 + $0x18] sm:$0xff]
      %v1761 = vld [vmem:[#allocation3 + $0x20] sm:$0xff]
      %v1762 = vld [vmem:[#allocation3 + $0x28] sm:$0xff]
      %v1763 = vld [vmem:[#allocation3 + $0x30] sm:$0xff]
      %v1764 = vld [vmem:[#allocation3 + $0x38] sm:$0xff]
      %v1765 = vld [vmem:[#allocation3 + $0x40] sm:$0xff]
      %v1766 = vld [vmem:[#allocation3 + $0x48] sm:$0xff]
      %v1767 = vld [vmem:[#allocation3 + $0x50] sm:$0xff]
      %v1768 = vld [vmem:[#allocation3 + $0x58] sm:$0xff]
      %v1769 = vld [vmem:[#allocation3 + $0x60] sm:$0xff]
      %v1770 = vld [vmem:[#allocation3 + $0x68] sm:$0xff]
      %v1771 = vld [vmem:[#allocation3 + $0x70] sm:$0xff]
      %v1772 = vld [vmem:[#allocation3 + $0x78] sm:$0xff]
      %v1773 = vadd.f32 %v1757, %v1695
      %v1774 = vadd.f32 %v1758, %v1698
      %v1775 = vadd.f32 %v1759, %v1703
      %v1776 = vadd.f32 %v1760, %v1706
      %v1777 = vadd.f32 %v1761, %v1711
      %v1778 = vadd.f32 %v1762, %v1714
      %v1779 = vadd.f32 %v1763, %v1719
      %v1780 = vadd.f32 %v1764, %v1722
      %v1781 = vadd.f32 %v1765, %v1727
      %v1782 = vadd.f32 %v1766, %v1730
      %v1783 = vadd.f32 %v1767, %v1735
      %v1784 = vadd.f32 %v1768, %v1738
      %v1785 = vadd.f32 %v1769, %v1743
      %v1786 = vadd.f32 %v1770, %v1746
      %v1787 = vadd.f32 %v1771, %v1751
      %v1788 = vadd.f32 %v1772, %v1754
      %1789 = vst.msk [vmem:[#allocation3] sm:$0xff] %vm490, %v1773
      %1790 = vst.msk [vmem:[#allocation3 + $0x8] sm:$0xff] %vm490, %v1774
      %1791 = vst.msk [vmem:[#allocation3 + $0x10] sm:$0xff] %vm490, %v1775
      %1792 = vst.msk [vmem:[#allocation3 + $0x18] sm:$0xff] %vm490, %v1776
      %1793 = vst.msk [vmem:[#allocation3 + $0x20] sm:$0xff] %vm490, %v1777
      %1794 = vst.msk [vmem:[#allocation3 + $0x28] sm:$0xff] %vm490, %v1778
      %1795 = vst.msk [vmem:[#allocation3 + $0x30] sm:$0xff] %vm490, %v1779
      %1796 = vst.msk [vmem:[#allocation3 + $0x38] sm:$0xff] %vm490, %v1780
      %1797 = vst.msk [vmem:[#allocation3 + $0x40] sm:$0xff] %vm490, %v1781
      %1798 = vst.msk [vmem:[#allocation3 + $0x48] sm:$0xff] %vm490, %v1782
      %1799 = vst.msk [vmem:[#allocation3 + $0x50] sm:$0xff] %vm490, %v1783
      %1800 = vst.msk [vmem:[#allocation3 + $0x58] sm:$0xff] %vm490, %v1784
      %1801 = vst.msk [vmem:[#allocation3 + $0x60] sm:$0xff] %vm490, %v1785
      %1802 = vst.msk [vmem:[#allocation3 + $0x68] sm:$0xff] %vm490, %v1786
      %1803 = vst.msk [vmem:[#allocation3 + $0x70] sm:$0xff] %vm490, %v1787
      %1804 = vst.msk [vmem:[#allocation3 + $0x78] sm:$0xff] %vm490, %v1788
      %v1805 = vld [vmem:[%s300 + $0x8] sm:$0xf]
      %v1806 = vld [vmem:[%s300 + $0xc] sm:$0xf]
      %v1807 = vld [vmem:[%s300 + $0x10] sm:$0xf]
      %v1808 = vld [vmem:[%s300 + $0x14] sm:$0xf]
      %v1809 = vld [vmem:[%s300 + $0x18] sm:$0xf]
      %v1810 = vld [vmem:[%s300 + $0x1c] sm:$0xf]
      %v1811 = vld [vmem:[%s300 + $0x20] sm:$0xf]
      %v1812 = vld [vmem:[%s300 + $0x24] sm:$0xf]
      %v1813 = vld [vmem:[%s300 + $0x28] sm:$0xf]
      %v1814 = vld [vmem:[%s300 + $0x2c] sm:$0xf]
      %v1815 = vld [vmem:[%s300 + $0x30] sm:$0xf]
      %v1816 = vld [vmem:[%s300 + $0x34] sm:$0xf]
      %v1817 = vld [vmem:[%s300 + $0x38] sm:$0xf]
      %v1818 = vld [vmem:[%s300 + $0x3c] sm:$0xf]
      %v1819 = vld [vmem:[%s300 + $0x40] sm:$0xf]
      %v1820 = vld [vmem:[%s300 + $0x44] sm:$0xf]
      %s1821 = scalar_lea.vmem %s1, 12
      %v1822 = vld [vmem:[%s1821] sm:$0x3]
      %v1839 = vunpack.c.l.b16 %v1805
      %v1840 = vunpack.c.l.b16 %v1806
      %v1841 = vunpack.c.l.b16 %v1807
      %v1842 = vunpack.c.l.b16 %v1808
      %v1843 = vunpack.c.l.b16 %v1809
      %v1844 = vunpack.c.l.b16 %v1810
      %v1845 = vunpack.c.l.b16 %v1811
      %v1846 = vunpack.c.l.b16 %v1812
      %v1847 = vunpack.c.l.b16 %v1813
      %v1848 = vunpack.c.l.b16 %v1814
      %v1849 = vunpack.c.l.b16 %v1815
      %v1850 = vunpack.c.l.b16 %v1816
      %v1851 = vunpack.c.l.b16 %v1817
      %v1852 = vunpack.c.l.b16 %v1818
      %v1853 = vunpack.c.l.b16 %v1819
      %v1854 = vunpack.c.l.b16 %v1820
      %v1855 = vpack.c.b16 %v1840, %v1839
      %v1856 = vpack.c.b16 %v1842, %v1841
      %v1857 = vpack.c.b16 %v1844, %v1843
      %v1858 = vpack.c.b16 %v1846, %v1845
      %v1859 = vpack.c.b16 %v1848, %v1847
      %v1860 = vpack.c.b16 %v1850, %v1849
      %v1861 = vpack.c.b16 %v1852, %v1851
      %v1862 = vpack.c.b16 %v1854, %v1853
      %v1864 = vsel %vm364, %v1855, 0
      %v1867 = vsel %vm364, %v1856, 0
      %v1870 = vsel %vm364, %v1857, 0
      %v1873 = vsel %vm364, %v1858, 0
      %v1876 = vsel %vm364, %v1859, 0
      %v1879 = vsel %vm364, %v1860, 0
      %v1882 = vsel %vm364, %v1861, 0
      %v1885 = vsel %vm364, %v1862, 0
      %v1888 = vsel %vm389, %v1822, 0
      %1890 = vmatprep.subr.bf16.mxu0 0
      %1891 = vmatpush1.bf16.msra.mxu0 %v1888
      %1892 = vmatprep.subr.bf16.mxu0 0
      %1893 = vmatpush1.bf16.msra.mxu0 0
      %1894 = vmatprep.subr.bf16.mxu0 0
      %1895 = vmatpush1.bf16.msra.mxu0 0
      %1896 = vmatprep.subr.bf16.mxu0 0
      %1897 = vmatpush1.bf16.msra.mxu0 0
      %1898 = vmatprep.subr.bf16.mxu0 0
      %1899 = vmatpush1.bf16.msra.mxu0 0
      %1900 = vmatprep.subr.bf16.mxu0 0
      %1901 = vmatpush1.bf16.msra.mxu0 0
      %1902 = vmatprep.subr.bf16.mxu0 0
      %1903 = vmatpush1.bf16.msra.mxu0 0
      %1904 = vmatprep.subr.bf16.mxu0 0
      %1905 = vmatpush1.bf16.msra.mxu0 0
      %1906 = vmatprep.subr.bf16.mxu0 0
      %1907 = vmatpush1.bf16.msra.mxu0 0
      %1908 = vmatprep.subr.bf16.mxu0 0
      %1909 = vmatpush1.bf16.msra.mxu0 0
      %1910 = vmatprep.subr.bf16.mxu0 0
      %1911 = vmatpush1.bf16.msra.mxu0 0
      %1912 = vmatprep.subr.bf16.mxu0 0
      %1913 = vmatpush1.bf16.msra.mxu0 0
      %1914 = vmatprep.subr.bf16.mxu0 0
      %1915 = vmatpush1.bf16.msra.mxu0 0
      %1916 = vmatprep.subr.bf16.mxu0 0
      %1917 = vmatpush1.bf16.msra.mxu0 0
      %1918 = vmatprep.subr.bf16.mxu0 0
      %1919 = vmatpush1.bf16.msra.mxu0 0
      %1920 = vmatprep.subr.bf16.mxu0 0
      %1921 = vmatpush1.bf16.msra.mxu0 0
      %1922 = vmatprep.mubr.bf16.mxu0 0
      %1923 = vmatmul.mubr.bf16.gmra.mrb[0].mxu0 %v1864
      %v1924 = vpop.f32.mrb[0].mxu0
      %v1925 = vadd.f32 0.0, %v1924
      %v1926 = vpop.f32.mrb[0].mxu0
      %v1927 = vpop.f32.mrb[0].mxu0
      %v1928 = vadd.f32 0.0, %v1927
      %v1929 = vpop.f32.mrb[0].mxu0
      %1930 = vmatprep.mubr.bf16.mxu0 0
      %1931 = vmatmul.mubr.bf16.gmra.mrb[0].mxu0 %v1867
      %v1932 = vpop.f32.mrb[0].mxu0
      %v1933 = vadd.f32 0.0, %v1932
      %v1934 = vpop.f32.mrb[0].mxu0
      %v1935 = vpop.f32.mrb[0].mxu0
      %v1936 = vadd.f32 0.0, %v1935
      %v1937 = vpop.f32.mrb[0].mxu0
      %1938 = vmatprep.mubr.bf16.mxu0 0
      %1939 = vmatmul.mubr.bf16.gmra.mrb[0].mxu0 %v1870
      %v1940 = vpop.f32.mrb[0].mxu0
      %v1941 = vadd.f32 0.0, %v1940
      %v1942 = vpop.f32.mrb[0].mxu0
      %v1943 = vpop.f32.mrb[0].mxu0
      %v1944 = vadd.f32 0.0, %v1943
      %v1945 = vpop.f32.mrb[0].mxu0
      %1946 = vmatprep.mubr.bf16.mxu0 0
      %1947 = vmatmul.mubr.bf16.gmra.mrb[0].mxu0 %v1873
      %v1948 = vpop.f32.mrb[0].mxu0
      %v1949 = vadd.f32 0.0, %v1948
      %v1950 = vpop.f32.mrb[0].mxu0
      %v1951 = vpop.f32.mrb[0].mxu0
      %v1952 = vadd.f32 0.0, %v1951
      %v1953 = vpop.f32.mrb[0].mxu0
      %1954 = vmatprep.mubr.bf16.mxu0 0
      %1955 = vmatmul.mubr.bf16.gmra.mrb[0].mxu0 %v1876
      %v1956 = vpop.f32.mrb[0].mxu0
      %v1957 = vadd.f32 0.0, %v1956
      %v1958 = vpop.f32.mrb[0].mxu0
      %v1959 = vpop.f32.mrb[0].mxu0
      %v1960 = vadd.f32 0.0, %v1959
      %v1961 = vpop.f32.mrb[0].mxu0
      %1962 = vmatprep.mubr.bf16.mxu0 0
      %1963 = vmatmul.mubr.bf16.gmra.mrb[0].mxu0 %v1879
      %v1964 = vpop.f32.mrb[0].mxu0
      %v1965 = vadd.f32 0.0, %v1964
      %v1966 = vpop.f32.mrb[0].mxu0
      %v1967 = vpop.f32.mrb[0].mxu0
      %v1968 = vadd.f32 0.0, %v1967
      %v1969 = vpop.f32.mrb[0].mxu0
      %1970 = vmatprep.mubr.bf16.mxu0 0
      %1971 = vmatmul.mubr.bf16.gmra.mrb[0].mxu0 %v1882
      %v1972 = vpop.f32.mrb[0].mxu0
      %v1973 = vadd.f32 0.0, %v1972
      %v1974 = vpop.f32.mrb[0].mxu0
      %v1975 = vpop.f32.mrb[0].mxu0
      %v1976 = vadd.f32 0.0, %v1975
      %v1977 = vpop.f32.mrb[0].mxu0
      %1978 = vmatprep.mubr.bf16.mxu0 0
      %1979 = vmatmul.mubr.bf16.gmra.mrb[0].mxu0 %v1885
      %v1980 = vpop.f32.mrb[0].mxu0
      %v1981 = vadd.f32 0.0, %v1980
      %v1982 = vpop.f32.mrb[0].mxu0
      %v1983 = vpop.f32.mrb[0].mxu0
      %v1984 = vadd.f32 0.0, %v1983
      %v1985 = vpop.f32.mrb[0].mxu0
      %1986 = vdwg.mxu0
      %v1987 = vld [vmem:[#allocation3] sm:$0xff]
      %v1988 = vld [vmem:[#allocation3 + $0x8] sm:$0xff]
      %v1989 = vld [vmem:[#allocation3 + $0x10] sm:$0xff]
      %v1990 = vld [vmem:[#allocation3 + $0x18] sm:$0xff]
      %v1991 = vld [vmem:[#allocation3 + $0x20] sm:$0xff]
      %v1992 = vld [vmem:[#allocation3 + $0x28] sm:$0xff]
      %v1993 = vld [vmem:[#allocation3 + $0x30] sm:$0xff]
      %v1994 = vld [vmem:[#allocation3 + $0x38] sm:$0xff]
      %v1995 = vld [vmem:[#allocation3 + $0x40] sm:$0xff]
      %v1996 = vld [vmem:[#allocation3 + $0x48] sm:$0xff]
      %v1997 = vld [vmem:[#allocation3 + $0x50] sm:$0xff]
      %v1998 = vld [vmem:[#allocation3 + $0x58] sm:$0xff]
      %v1999 = vld [vmem:[#allocation3 + $0x60] sm:$0xff]
      %v2000 = vld [vmem:[#allocation3 + $0x68] sm:$0xff]
      %v2001 = vld [vmem:[#allocation3 + $0x70] sm:$0xff]
      %v2002 = vld [vmem:[#allocation3 + $0x78] sm:$0xff]
      %v2003 = vadd.f32 %v1987, %v1925
      %v2004 = vadd.f32 %v1988, %v1928
      %v2005 = vadd.f32 %v1989, %v1933
      %v2006 = vadd.f32 %v1990, %v1936
      %v2007 = vadd.f32 %v1991, %v1941
      %v2008 = vadd.f32 %v1992, %v1944
      %v2009 = vadd.f32 %v1993, %v1949
      %v2010 = vadd.f32 %v1994, %v1952
      %v2011 = vadd.f32 %v1995, %v1957
      %v2012 = vadd.f32 %v1996, %v1960
      %v2013 = vadd.f32 %v1997, %v1965
      %v2014 = vadd.f32 %v1998, %v1968
      %v2015 = vadd.f32 %v1999, %v1973
      %v2016 = vadd.f32 %v2000, %v1976
      %v2017 = vadd.f32 %v2001, %v1981
      %v2018 = vadd.f32 %v2002, %v1984
      %2019 = vst.msk [vmem:[#allocation3] sm:$0xff] %vm490, %v2003
      %2020 = vst.msk [vmem:[#allocation3 + $0x8] sm:$0xff] %vm490, %v2004
      %2021 = vst.msk [vmem:[#allocation3 + $0x10] sm:$0xff] %vm490, %v2005
      %2022 = vst.msk [vmem:[#allocation3 + $0x18] sm:$0xff] %vm490, %v2006
      %2023 = vst.msk [vmem:[#allocation3 + $0x20] sm:$0xff] %vm490, %v2007
      %2024 = vst.msk [vmem:[#allocation3 + $0x28] sm:$0xff] %vm490, %v2008
      %2025 = vst.msk [vmem:[#allocation3 + $0x30] sm:$0xff] %vm490, %v2009
      %2026 = vst.msk [vmem:[#allocation3 + $0x38] sm:$0xff] %vm490, %v2010
      %2027 = vst.msk [vmem:[#allocation3 + $0x40] sm:$0xff] %vm490, %v2011
      %2028 = vst.msk [vmem:[#allocation3 + $0x48] sm:$0xff] %vm490, %v2012
      %2029 = vst.msk [vmem:[#allocation3 + $0x50] sm:$0xff] %vm490, %v2013
      %2030 = vst.msk [vmem:[#allocation3 + $0x58] sm:$0xff] %vm490, %v2014
      %2031 = vst.msk [vmem:[#allocation3 + $0x60] sm:$0xff] %vm490, %v2015
      %2032 = vst.msk [vmem:[#allocation3 + $0x68] sm:$0xff] %vm490, %v2016
      %2033 = vst.msk [vmem:[#allocation3 + $0x70] sm:$0xff] %vm490, %v2017
      %2034 = vst.msk [vmem:[#allocation3 + $0x78] sm:$0xff] %vm490, %v2018
      %v2035 = vld [vmem:[%s507 + $0x8] sm:$0xf]
      %v2036 = vld [vmem:[%s507 + $0xc] sm:$0xf]
      %v2037 = vld [vmem:[%s507 + $0x10] sm:$0xf]
      %v2038 = vld [vmem:[%s507 + $0x14] sm:$0xf]
      %v2039 = vld [vmem:[%s507 + $0x18] sm:$0xf]
      %v2040 = vld [vmem:[%s507 + $0x1c] sm:$0xf]
      %v2041 = vld [vmem:[%s507 + $0x20] sm:$0xf]
      %v2042 = vld [vmem:[%s507 + $0x24] sm:$0xf]
      %v2043 = vld [vmem:[%s507 + $0x28] sm:$0xf]
      %v2044 = vld [vmem:[%s507 + $0x2c] sm:$0xf]
      %v2045 = vld [vmem:[%s507 + $0x30] sm:$0xf]
      %v2046 = vld [vmem:[%s507 + $0x34] sm:$0xf]
      %v2047 = vld [vmem:[%s507 + $0x38] sm:$0xf]
      %v2048 = vld [vmem:[%s507 + $0x3c] sm:$0xf]
      %v2049 = vld [vmem:[%s507 + $0x40] sm:$0xf]
      %v2050 = vld [vmem:[%s507 + $0x44] sm:$0xf]
      %s2051 = scalar_lea.vmem %s1, 14
      %v2052 = vld [vmem:[%s2051] sm:$0x3]
      %v2069 = vunpack.c.l.b16 %v2035
      %v2070 = vunpack.c.l.b16 %v2036
      %v2071 = vunpack.c.l.b16 %v2037
      %v2072 = vunpack.c.l.b16 %v2038
      %v2073 = vunpack.c.l.b16 %v2039
      %v2074 = vunpack.c.l.b16 %v2040
      %v2075 = vunpack.c.l.b16 %v2041
      %v2076 = vunpack.c.l.b16 %v2042
      %v2077 = vunpack.c.l.b16 %v2043
      %v2078 = vunpack.c.l.b16 %v2044
      %v2079 = vunpack.c.l.b16 %v2045
      %v2080 = vunpack.c.l.b16 %v2046
      %v2081 = vunpack.c.l.b16 %v2047
      %v2082 = vunpack.c.l.b16 %v2048
      %v2083 = vunpack.c.l.b16 %v2049
      %v2084 = vunpack.c.l.b16 %v2050
      %v2085 = vpack.c.b16 %v2070, %v2069
      %v2086 = vpack.c.b16 %v2072, %v2071
      %v2087 = vpack.c.b16 %v2074, %v2073
      %v2088 = vpack.c.b16 %v2076, %v2075
      %v2089 = vpack.c.b16 %v2078, %v2077
      %v2090 = vpack.c.b16 %v2080, %v2079
      %v2091 = vpack.c.b16 %v2082, %v2081
      %v2092 = vpack.c.b16 %v2084, %v2083
      %v2094 = vsel %vm364, %v2085, 0
      %v2097 = vsel %vm364, %v2086, 0
      %v2100 = vsel %vm364, %v2087, 0
      %v2103 = vsel %vm364, %v2088, 0
      %v2106 = vsel %vm364, %v2089, 0
      %v2109 = vsel %vm364, %v2090, 0
      %v2112 = vsel %vm364, %v2091, 0
      %v2115 = vsel %vm364, %v2092, 0
      %v2118 = vsel %vm389, %v2052, 0
      %2120 = vmatprep.subr.bf16.mxu0 0
      %2121 = vmatpush1.bf16.msra.mxu0 %v2118
      %2122 = vmatprep.subr.bf16.mxu0 0
      %2123 = vmatpush1.bf16.msra.mxu0 0
      %2124 = vmatprep.subr.bf16.mxu0 0
      %2125 = vmatpush1.bf16.msra.mxu0 0
      %2126 = vmatprep.subr.bf16.mxu0 0
      %2127 = vmatpush1.bf16.msra.mxu0 0
      %2128 = vmatprep.subr.bf16.mxu0 0
      %2129 = vmatpush1.bf16.msra.mxu0 0
      %2130 = vmatprep.subr.bf16.mxu0 0
      %2131 = vmatpush1.bf16.msra.mxu0 0
      %2132 = vmatprep.subr.bf16.mxu0 0
      %2133 = vmatpush1.bf16.msra.mxu0 0
      %2134 = vmatprep.subr.bf16.mxu0 0
      %2135 = vmatpush1.bf16.msra.mxu0 0
      %2136 = vmatprep.subr.bf16.mxu0 0
      %2137 = vmatpush1.bf16.msra.mxu0 0
      %2138 = vmatprep.subr.bf16.mxu0 0
      %2139 = vmatpush1.bf16.msra.mxu0 0
      %2140 = vmatprep.subr.bf16.mxu0 0
      %2141 = vmatpush1.bf16.msra.mxu0 0
      %2142 = vmatprep.subr.bf16.mxu0 0
      %2143 = vmatpush1.bf16.msra.mxu0 0
      %2144 = vmatprep.subr.bf16.mxu0 0
      %2145 = vmatpush1.bf16.msra.mxu0 0
      %2146 = vmatprep.subr.bf16.mxu0 0
      %2147 = vmatpush1.bf16.msra.mxu0 0
      %2148 = vmatprep.subr.bf16.mxu0 0
      %2149 = vmatpush1.bf16.msra.mxu0 0
      %2150 = vmatprep.subr.bf16.mxu0 0
      %2151 = vmatpush1.bf16.msra.mxu0 0
      %2152 = vmatprep.mubr.bf16.mxu0 0
      %2153 = vmatmul.mubr.bf16.gmra.mrb[0].mxu0 %v2094
      %v2154 = vpop.f32.mrb[0].mxu0
      %v2155 = vadd.f32 0.0, %v2154
      %v2156 = vpop.f32.mrb[0].mxu0
      %v2157 = vpop.f32.mrb[0].mxu0
      %v2158 = vadd.f32 0.0, %v2157
      %v2159 = vpop.f32.mrb[0].mxu0
      %2160 = vmatprep.mubr.bf16.mxu0 0
      %2161 = vmatmul.mubr.bf16.gmra.mrb[0].mxu0 %v2097
      %v2162 = vpop.f32.mrb[0].mxu0
      %v2163 = vadd.f32 0.0, %v2162
      %v2164 = vpop.f32.mrb[0].mxu0
      %v2165 = vpop.f32.mrb[0].mxu0
      %v2166 = vadd.f32 0.0, %v2165
      %v2167 = vpop.f32.mrb[0].mxu0
      %2168 = vmatprep.mubr.bf16.mxu0 0
      %2169 = vmatmul.mubr.bf16.gmra.mrb[0].mxu0 %v2100
      %v2170 = vpop.f32.mrb[0].mxu0
      %v2171 = vadd.f32 0.0, %v2170
      %v2172 = vpop.f32.mrb[0].mxu0
      %v2173 = vpop.f32.mrb[0].mxu0
      %v2174 = vadd.f32 0.0, %v2173
      %v2175 = vpop.f32.mrb[0].mxu0
      %2176 = vmatprep.mubr.bf16.mxu0 0
      %2177 = vmatmul.mubr.bf16.gmra.mrb[0].mxu0 %v2103
      %v2178 = vpop.f32.mrb[0].mxu0
      %v2179 = vadd.f32 0.0, %v2178
      %v2180 = vpop.f32.mrb[0].mxu0
      %v2181 = vpop.f32.mrb[0].mxu0
      %v2182 = vadd.f32 0.0, %v2181
      %v2183 = vpop.f32.mrb[0].mxu0
      %2184 = vmatprep.mubr.bf16.mxu0 0
      %2185 = vmatmul.mubr.bf16.gmra.mrb[0].mxu0 %v2106
      %v2186 = vpop.f32.mrb[0].mxu0
      %v2187 = vadd.f32 0.0, %v2186
      %v2188 = vpop.f32.mrb[0].mxu0
      %v2189 = vpop.f32.mrb[0].mxu0
      %v2190 = vadd.f32 0.0, %v2189
      %v2191 = vpop.f32.mrb[0].mxu0
      %2192 = vmatprep.mubr.bf16.mxu0 0
      %2193 = vmatmul.mubr.bf16.gmra.mrb[0].mxu0 %v2109
      %v2194 = vpop.f32.mrb[0].mxu0
      %v2195 = vadd.f32 0.0, %v2194
      %v2196 = vpop.f32.mrb[0].mxu0
      %v2197 = vpop.f32.mrb[0].mxu0
      %v2198 = vadd.f32 0.0, %v2197
      %v2199 = vpop.f32.mrb[0].mxu0
      %2200 = vmatprep.mubr.bf16.mxu0 0
      %2201 = vmatmul.mubr.bf16.gmra.mrb[0].mxu0 %v2112
      %v2202 = vpop.f32.mrb[0].mxu0
      %v2203 = vadd.f32 0.0, %v2202
      %v2204 = vpop.f32.mrb[0].mxu0
      %v2205 = vpop.f32.mrb[0].mxu0
      %v2206 = vadd.f32 0.0, %v2205
      %v2207 = vpop.f32.mrb[0].mxu0
      %2208 = vmatprep.mubr.bf16.mxu0 0
      %2209 = vmatmul.mubr.bf16.gmra.mrb[0].mxu0 %v2115
      %v2210 = vpop.f32.mrb[0].mxu0
      %v2211 = vadd.f32 0.0, %v2210
      %v2212 = vpop.f32.mrb[0].mxu0
      %v2213 = vpop.f32.mrb[0].mxu0
      %v2214 = vadd.f32 0.0, %v2213
      %v2215 = vpop.f32.mrb[0].mxu0
      %2216 = vdwg.mxu0
      %v2217 = vld [vmem:[#allocation3] sm:$0xff]
      %v2218 = vld [vmem:[#allocation3 + $0x8] sm:$0xff]
      %v2219 = vld [vmem:[#allocation3 + $0x10] sm:$0xff]
      %v2220 = vld [vmem:[#allocation3 + $0x18] sm:$0xff]
      %v2221 = vld [vmem:[#allocation3 + $0x20] sm:$0xff]
      %v2222 = vld [vmem:[#allocation3 + $0x28] sm:$0xff]
      %v2223 = vld [vmem:[#allocation3 + $0x30] sm:$0xff]
      %v2224 = vld [vmem:[#allocation3 + $0x38] sm:$0xff]
      %v2225 = vld [vmem:[#allocation3 + $0x40] sm:$0xff]
      %v2226 = vld [vmem:[#allocation3 + $0x48] sm:$0xff]
      %v2227 = vld [vmem:[#allocation3 + $0x50] sm:$0xff]
      %v2228 = vld [vmem:[#allocation3 + $0x58] sm:$0xff]
      %v2229 = vld [vmem:[#allocation3 + $0x60] sm:$0xff]
      %v2230 = vld [vmem:[#allocation3 + $0x68] sm:$0xff]
      %v2231 = vld [vmem:[#allocation3 + $0x70] sm:$0xff]
      %v2232 = vld [vmem:[#allocation3 + $0x78] sm:$0xff]
      %v2233 = vadd.f32 %v2217, %v2155
      %v2234 = vadd.f32 %v2218, %v2158
      %v2235 = vadd.f32 %v2219, %v2163
      %v2236 = vadd.f32 %v2220, %v2166
      %v2237 = vadd.f32 %v2221, %v2171
      %v2238 = vadd.f32 %v2222, %v2174
      %v2239 = vadd.f32 %v2223, %v2179
      %v2240 = vadd.f32 %v2224, %v2182
      %v2241 = vadd.f32 %v2225, %v2187
      %v2242 = vadd.f32 %v2226, %v2190
      %v2243 = vadd.f32 %v2227, %v2195
      %v2244 = vadd.f32 %v2228, %v2198
      %v2245 = vadd.f32 %v2229, %v2203
      %v2246 = vadd.f32 %v2230, %v2206
      %v2247 = vadd.f32 %v2231, %v2211
      %v2248 = vadd.f32 %v2232, %v2214
      %2249 = vst.msk [vmem:[#allocation3] sm:$0xff] %vm490, %v2233
      %2250 = vst.msk [vmem:[#allocation3 + $0x8] sm:$0xff] %vm490, %v2234
      %2251 = vst.msk [vmem:[#allocation3 + $0x10] sm:$0xff] %vm490, %v2235
      %2252 = vst.msk [vmem:[#allocation3 + $0x18] sm:$0xff] %vm490, %v2236
      %2253 = vst.msk [vmem:[#allocation3 + $0x20] sm:$0xff] %vm490, %v2237
      %2254 = vst.msk [vmem:[#allocation3 + $0x28] sm:$0xff] %vm490, %v2238
      %2255 = vst.msk [vmem:[#allocation3 + $0x30] sm:$0xff] %vm490, %v2239
      %2256 = vst.msk [vmem:[#allocation3 + $0x38] sm:$0xff] %vm490, %v2240
      %2257 = vst.msk [vmem:[#allocation3 + $0x40] sm:$0xff] %vm490, %v2241
      %2258 = vst.msk [vmem:[#allocation3 + $0x48] sm:$0xff] %vm490, %v2242
      %2259 = vst.msk [vmem:[#allocation3 + $0x50] sm:$0xff] %vm490, %v2243
      %2260 = vst.msk [vmem:[#allocation3 + $0x58] sm:$0xff] %vm490, %v2244
      %2261 = vst.msk [vmem:[#allocation3 + $0x60] sm:$0xff] %vm490, %v2245
      %2262 = vst.msk [vmem:[#allocation3 + $0x68] sm:$0xff] %vm490, %v2246
      %2263 = vst.msk [vmem:[#allocation3 + $0x70] sm:$0xff] %vm490, %v2247
      %2264 = vst.msk [vmem:[#allocation3 + $0x78] sm:$0xff] %vm490, %v2248
      %v2265 = vld [vmem:[%s300 + $0x8] sm:$0xf]
      %v2266 = vld [vmem:[%s300 + $0xc] sm:$0xf]
      %v2267 = vld [vmem:[%s300 + $0x10] sm:$0xf]
      %v2268 = vld [vmem:[%s300 + $0x14] sm:$0xf]
      %v2269 = vld [vmem:[%s300 + $0x18] sm:$0xf]
      %v2270 = vld [vmem:[%s300 + $0x1c] sm:$0xf]
      %v2271 = vld [vmem:[%s300 + $0x20] sm:$0xf]
      %v2272 = vld [vmem:[%s300 + $0x24] sm:$0xf]
      %v2273 = vld [vmem:[%s300 + $0x28] sm:$0xf]
      %v2274 = vld [vmem:[%s300 + $0x2c] sm:$0xf]
      %v2275 = vld [vmem:[%s300 + $0x30] sm:$0xf]
      %v2276 = vld [vmem:[%s300 + $0x34] sm:$0xf]
      %v2277 = vld [vmem:[%s300 + $0x38] sm:$0xf]
      %v2278 = vld [vmem:[%s300 + $0x3c] sm:$0xf]
      %v2279 = vld [vmem:[%s300 + $0x40] sm:$0xf]
      %v2280 = vld [vmem:[%s300 + $0x44] sm:$0xf]
      %v2281 = vld [vmem:[%s300 + $0x48] sm:$0x1]
      %s2282 = scalar_lea.vmem %s1, 16
      %v2283 = vld [vmem:[%s2282] sm:$0x3]
      %v2301 = vunpack.c.l.b16 %v2265
      %v2302 = vunpack.c.l.b16 %v2266
      %v2303 = vunpack.c.l.b16 %v2267
      %v2304 = vunpack.c.l.b16 %v2268
      %v2305 = vunpack.c.l.b16 %v2269
      %v2306 = vunpack.c.l.b16 %v2270
      %v2307 = vunpack.c.l.b16 %v2271
      %v2308 = vunpack.c.l.b16 %v2272
      %v2309 = vunpack.c.l.b16 %v2273
      %v2310 = vunpack.c.l.b16 %v2274
      %v2311 = vunpack.c.l.b16 %v2275
      %v2312 = vunpack.c.l.b16 %v2276
      %v2313 = vunpack.c.l.b16 %v2277
      %v2314 = vunpack.c.l.b16 %v2278
      %v2315 = vunpack.c.l.b16 %v2279
      %v2316 = vunpack.c.l.b16 %v2280
      %v2317 = vunpack.c.l.b16 %v2281
      %v2318 = vpack.c.b16 %v2302, %v2301
      %v2319 = vpack.c.b16 %v2304, %v2303
      %v2320 = vpack.c.b16 %v2306, %v2305
      %v2321 = vpack.c.b16 %v2308, %v2307
      %v2322 = vpack.c.b16 %v2310, %v2309
      %v2323 = vpack.c.b16 %v2312, %v2311
      %v2324 = vpack.c.b16 %v2314, %v2313
      %v2325 = vpack.c.b16 %v2316, %v2315
      %v2326 = vpack.c.b16 %v2317, %v2317
      %v2328 = vshrl.u32 %v2318, 16
      %v2330 = vshll.u32 %v2318, 16
      %v2332 = vrot.slane %v2330, 1
      %v2333 = vor.u32 %v2328, %v2332
      %v2335 = vshll.u32 %v2319, 16
      %v2337 = vrot.slane %v2335, 1
      %v2338 = vsel %vm800, %v2333, %v2337
      %v2339 = vshrl.u32 %v2319, 16
      %v2341 = vor.u32 %v2339, %v2337
      %v2343 = vshll.u32 %v2320, 16
      %v2345 = vrot.slane %v2343, 1
      %v2346 = vsel %vm800, %v2341, %v2345
      %v2347 = vshrl.u32 %v2320, 16
      %v2349 = vor.u32 %v2347, %v2345
      %v2351 = vshll.u32 %v2321, 16
      %v2353 = vrot.slane %v2351, 1
      %v2354 = vsel %vm800, %v2349, %v2353
      %v2355 = vshrl.u32 %v2321, 16
      %v2357 = vor.u32 %v2355, %v2353
      %v2359 = vshll.u32 %v2322, 16
      %v2361 = vrot.slane %v2359, 1
      %v2362 = vsel %vm800, %v2357, %v2361
      %v2363 = vshrl.u32 %v2322, 16
      %v2365 = vor.u32 %v2363, %v2361
      %v2367 = vshll.u32 %v2323, 16
      %v2369 = vrot.slane %v2367, 1
      %v2370 = vsel %vm800, %v2365, %v2369
      %v2371 = vshrl.u32 %v2323, 16
      %v2373 = vor.u32 %v2371, %v2369
      %v2375 = vshll.u32 %v2324, 16
      %v2377 = vrot.slane %v2375, 1
      %v2378 = vsel %vm800, %v2373, %v2377
      %v2379 = vshrl.u32 %v2324, 16
      %v2381 = vor.u32 %v2379, %v2377
      %v2383 = vshll.u32 %v2325, 16
      %v2385 = vrot.slane %v2383, 1
      %v2386 = vsel %vm800, %v2381, %v2385
      %v2387 = vshrl.u32 %v2325, 16
      %v2389 = vor.u32 %v2387, %v2385
      %v2391 = vshll.u32 %v2326, 16
      %v2393 = vrot.slane %v2391, 1
      %v2394 = vsel %vm800, %v2389, %v2393
      %v2396 = vsel %vm364, %v2338, 0
      %v2399 = vsel %vm364, %v2346, 0
      %v2402 = vsel %vm364, %v2354, 0
      %v2405 = vsel %vm364, %v2362, 0
      %v2408 = vsel %vm364, %v2370, 0
      %v2411 = vsel %vm364, %v2378, 0
      %v2414 = vsel %vm364, %v2386, 0
      %v2417 = vsel %vm364, %v2394, 0
      %v2420 = vsel %vm389, %v2283, 0
      %2422 = vmatprep.subr.bf16.mxu0 0
      %2423 = vmatpush1.bf16.msra.mxu0 %v2420
      %2424 = vmatprep.subr.bf16.mxu0 0
      %2425 = vmatpush1.bf16.msra.mxu0 0
      %2426 = vmatprep.subr.bf16.mxu0 0
      %2427 = vmatpush1.bf16.msra.mxu0 0
      %2428 = vmatprep.subr.bf16.mxu0 0
      %2429 = vmatpush1.bf16.msra.mxu0 0
      %2430 = vmatprep.subr.bf16.mxu0 0
      %2431 = vmatpush1.bf16.msra.mxu0 0
      %2432 = vmatprep.subr.bf16.mxu0 0
      %2433 = vmatpush1.bf16.msra.mxu0 0
      %2434 = vmatprep.subr.bf16.mxu0 0
      %2435 = vmatpush1.bf16.msra.mxu0 0
      %2436 = vmatprep.subr.bf16.mxu0 0
      %2437 = vmatpush1.bf16.msra.mxu0 0
      %2438 = vmatprep.subr.bf16.mxu0 0
      %2439 = vmatpush1.bf16.msra.mxu0 0
      %2440 = vmatprep.subr.bf16.mxu0 0
      %2441 = vmatpush1.bf16.msra.mxu0 0
      %2442 = vmatprep.subr.bf16.mxu0 0
      %2443 = vmatpush1.bf16.msra.mxu0 0
      %2444 = vmatprep.subr.bf16.mxu0 0
      %2445 = vmatpush1.bf16.msra.mxu0 0
      %2446 = vmatprep.subr.bf16.mxu0 0
      %2447 = vmatpush1.bf16.msra.mxu0 0
      %2448 = vmatprep.subr.bf16.mxu0 0
      %2449 = vmatpush1.bf16.msra.mxu0 0
      %2450 = vmatprep.subr.bf16.mxu0 0
      %2451 = vmatpush1.bf16.msra.mxu0 0
      %2452 = vmatprep.subr.bf16.mxu0 0
      %2453 = vmatpush1.bf16.msra.mxu0 0
      %2454 = vmatprep.mubr.bf16.mxu0 0
      %2455 = vmatmul.mubr.bf16.gmra.mrb[0].mxu0 %v2396
      %v2456 = vpop.f32.mrb[0].mxu0
      %v2457 = vadd.f32 0.0, %v2456
      %v2458 = vpop.f32.mrb[0].mxu0
      %v2459 = vpop.f32.mrb[0].mxu0
      %v2460 = vadd.f32 0.0, %v2459
      %v2461 = vpop.f32.mrb[0].mxu0
      %2462 = vmatprep.mubr.bf16.mxu0 0
      %2463 = vmatmul.mubr.bf16.gmra.mrb[0].mxu0 %v2399
      %v2464 = vpop.f32.mrb[0].mxu0
      %v2465 = vadd.f32 0.0, %v2464
      %v2466 = vpop.f32.mrb[0].mxu0
      %v2467 = vpop.f32.mrb[0].mxu0
      %v2468 = vadd.f32 0.0, %v2467
      %v2469 = vpop.f32.mrb[0].mxu0
      %2470 = vmatprep.mubr.bf16.mxu0 0
      %2471 = vmatmul.mubr.bf16.gmra.mrb[0].mxu0 %v2402
      %v2472 = vpop.f32.mrb[0].mxu0
      %v2473 = vadd.f32 0.0, %v2472
      %v2474 = vpop.f32.mrb[0].mxu0
      %v2475 = vpop.f32.mrb[0].mxu0
      %v2476 = vadd.f32 0.0, %v2475
      %v2477 = vpop.f32.mrb[0].mxu0
      %2478 = vmatprep.mubr.bf16.mxu0 0
      %2479 = vmatmul.mubr.bf16.gmra.mrb[0].mxu0 %v2405
      %v2480 = vpop.f32.mrb[0].mxu0
      %v2481 = vadd.f32 0.0, %v2480
      %v2482 = vpop.f32.mrb[0].mxu0
      %v2483 = vpop.f32.mrb[0].mxu0
      %v2484 = vadd.f32 0.0, %v2483
      %v2485 = vpop.f32.mrb[0].mxu0
      %2486 = vmatprep.mubr.bf16.mxu0 0
      %2487 = vmatmul.mubr.bf16.gmra.mrb[0].mxu0 %v2408
      %v2488 = vpop.f32.mrb[0].mxu0
      %v2489 = vadd.f32 0.0, %v2488
      %v2490 = vpop.f32.mrb[0].mxu0
      %v2491 = vpop.f32.mrb[0].mxu0
      %v2492 = vadd.f32 0.0, %v2491
      %v2493 = vpop.f32.mrb[0].mxu0
      %2494 = vmatprep.mubr.bf16.mxu0 0
      %2495 = vmatmul.mubr.bf16.gmra.mrb[0].mxu0 %v2411
      %v2496 = vpop.f32.mrb[0].mxu0
      %v2497 = vadd.f32 0.0, %v2496
      %v2498 = vpop.f32.mrb[0].mxu0
      %v2499 = vpop.f32.mrb[0].mxu0
      %v2500 = vadd.f32 0.0, %v2499
      %v2501 = vpop.f32.mrb[0].mxu0
      %2502 = vmatprep.mubr.bf16.mxu0 0
      %2503 = vmatmul.mubr.bf16.gmra.mrb[0].mxu0 %v2414
      %v2504 = vpop.f32.mrb[0].mxu0
      %v2505 = vadd.f32 0.0, %v2504
      %v2506 = vpop.f32.mrb[0].mxu0
      %v2507 = vpop.f32.mrb[0].mxu0
      %v2508 = vadd.f32 0.0, %v2507
      %v2509 = vpop.f32.mrb[0].mxu0
      %2510 = vmatprep.mubr.bf16.mxu0 0
      %2511 = vmatmul.mubr.bf16.gmra.mrb[0].mxu0 %v2417
      %v2512 = vpop.f32.mrb[0].mxu0
      %v2513 = vadd.f32 0.0, %v2512
      %v2514 = vpop.f32.mrb[0].mxu0
      %v2515 = vpop.f32.mrb[0].mxu0
      %v2516 = vadd.f32 0.0, %v2515
      %v2517 = vpop.f32.mrb[0].mxu0
      %2518 = vdwg.mxu0
      %v2519 = vld [vmem:[#allocation3] sm:$0xff]
      %v2520 = vld [vmem:[#allocation3 + $0x8] sm:$0xff]
      %v2521 = vld [vmem:[#allocation3 + $0x10] sm:$0xff]
      %v2522 = vld [vmem:[#allocation3 + $0x18] sm:$0xff]
      %v2523 = vld [vmem:[#allocation3 + $0x20] sm:$0xff]
      %v2524 = vld [vmem:[#allocation3 + $0x28] sm:$0xff]
      %v2525 = vld [vmem:[#allocation3 + $0x30] sm:$0xff]
      %v2526 = vld [vmem:[#allocation3 + $0x38] sm:$0xff]
      %v2527 = vld [vmem:[#allocation3 + $0x40] sm:$0xff]
      %v2528 = vld [vmem:[#allocation3 + $0x48] sm:$0xff]
      %v2529 = vld [vmem:[#allocation3 + $0x50] sm:$0xff]
      %v2530 = vld [vmem:[#allocation3 + $0x58] sm:$0xff]
      %v2531 = vld [vmem:[#allocation3 + $0x60] sm:$0xff]
      %v2532 = vld [vmem:[#allocation3 + $0x68] sm:$0xff]
      %v2533 = vld [vmem:[#allocation3 + $0x70] sm:$0xff]
      %v2534 = vld [vmem:[#allocation3 + $0x78] sm:$0xff]
      %v2535 = vadd.f32 %v2519, %v2457
      %v2536 = vadd.f32 %v2520, %v2460
      %v2537 = vadd.f32 %v2521, %v2465
      %v2538 = vadd.f32 %v2522, %v2468
      %v2539 = vadd.f32 %v2523, %v2473
      %v2540 = vadd.f32 %v2524, %v2476
      %v2541 = vadd.f32 %v2525, %v2481
      %v2542 = vadd.f32 %v2526, %v2484
      %v2543 = vadd.f32 %v2527, %v2489
      %v2544 = vadd.f32 %v2528, %v2492
      %v2545 = vadd.f32 %v2529, %v2497
      %v2546 = vadd.f32 %v2530, %v2500
      %v2547 = vadd.f32 %v2531, %v2505
      %v2548 = vadd.f32 %v2532, %v2508
      %v2549 = vadd.f32 %v2533, %v2513
      %v2550 = vadd.f32 %v2534, %v2516
      %2551 = vst.msk [vmem:[#allocation3] sm:$0xff] %vm490, %v2535
      %2552 = vst.msk [vmem:[#allocation3 + $0x8] sm:$0xff] %vm490, %v2536
      %2553 = vst.msk [vmem:[#allocation3 + $0x10] sm:$0xff] %vm490, %v2537
      %2554 = vst.msk [vmem:[#allocation3 + $0x18] sm:$0xff] %vm490, %v2538
      %2555 = vst.msk [vmem:[#allocation3 + $0x20] sm:$0xff] %vm490, %v2539
      %2556 = vst.msk [vmem:[#allocation3 + $0x28] sm:$0xff] %vm490, %v2540
      %2557 = vst.msk [vmem:[#allocation3 + $0x30] sm:$0xff] %vm490, %v2541
      %2558 = vst.msk [vmem:[#allocation3 + $0x38] sm:$0xff] %vm490, %v2542
      %2559 = vst.msk [vmem:[#allocation3 + $0x40] sm:$0xff] %vm490, %v2543
      %2560 = vst.msk [vmem:[#allocation3 + $0x48] sm:$0xff] %vm490, %v2544
      %2561 = vst.msk [vmem:[#allocation3 + $0x50] sm:$0xff] %vm490, %v2545
      %2562 = vst.msk [vmem:[#allocation3 + $0x58] sm:$0xff] %vm490, %v2546
      %2563 = vst.msk [vmem:[#allocation3 + $0x60] sm:$0xff] %vm490, %v2547
      %2564 = vst.msk [vmem:[#allocation3 + $0x68] sm:$0xff] %vm490, %v2548
      %2565 = vst.msk [vmem:[#allocation3 + $0x70] sm:$0xff] %vm490, %v2549
      %2566 = vst.msk [vmem:[#allocation3 + $0x78] sm:$0xff] %vm490, %v2550
      %v2567 = vld [vmem:[#allocation3] sm:$0xff]
      %v2568 = vld [vmem:[#allocation3 + $0x8] sm:$0xff]
      %v2569 = vld [vmem:[#allocation3 + $0x10] sm:$0xff]
      %v2570 = vld [vmem:[#allocation3 + $0x18] sm:$0xff]
      %v2571 = vld [vmem:[#allocation3 + $0x20] sm:$0xff]
      %v2572 = vld [vmem:[#allocation3 + $0x28] sm:$0xff]
      %v2573 = vld [vmem:[#allocation3 + $0x30] sm:$0xff]
      %v2574 = vld [vmem:[#allocation3 + $0x38] sm:$0xff]
      %v2575 = vld [vmem:[#allocation3 + $0x40] sm:$0xff]
      %v2576 = vld [vmem:[#allocation3 + $0x48] sm:$0xff]
      %v2577 = vld [vmem:[#allocation3 + $0x50] sm:$0xff]
      %v2578 = vld [vmem:[#allocation3 + $0x58] sm:$0xff]
      %v2579 = vld [vmem:[#allocation3 + $0x60] sm:$0xff]
      %v2580 = vld [vmem:[#allocation3 + $0x68] sm:$0xff]
      %v2581 = vld [vmem:[#allocation3 + $0x70] sm:$0xff]
      %v2582 = vld [vmem:[#allocation3 + $0x78] sm:$0xff]
      %v2583 = vld [vmem:[%s2] sm:$0x1]
      %v2585 = vlaneseq
      %v2586 = vshrl.u32 %v2585, 7
      %v2587 = vsub.s32 0, %v2586
      %v2588 = vrot.slane %v2583, %v2587
      %v2590 = vadd.f32 %v2567, %v2588
      %v2591 = vadd.f32 %v2568, %v2588
      %v2592 = vadd.f32 %v2569, %v2588
      %v2593 = vadd.f32 %v2570, %v2588
      %v2594 = vadd.f32 %v2571, %v2588
      %v2595 = vadd.f32 %v2572, %v2588
      %v2596 = vadd.f32 %v2573, %v2588
      %v2597 = vadd.f32 %v2574, %v2588
      %v2598 = vadd.f32 %v2575, %v2588
      %v2599 = vadd.f32 %v2576, %v2588
      %v2600 = vadd.f32 %v2577, %v2588
      %v2601 = vadd.f32 %v2578, %v2588
      %v2602 = vadd.f32 %v2579, %v2588
      %v2603 = vadd.f32 %v2580, %v2588
      %v2604 = vadd.f32 %v2581, %v2588
      %v2605 = vadd.f32 %v2582, %v2588
      %v2606 = vmax.f32 %v2590, 0.0
      %v2607 = vmax.f32 %v2591, 0.0
      %v2608 = vmax.f32 %v2592, 0.0
      %v2609 = vmax.f32 %v2593, 0.0
      %v2610 = vmax.f32 %v2594, 0.0
      %v2611 = vmax.f32 %v2595, 0.0
      %v2612 = vmax.f32 %v2596, 0.0
      %v2613 = vmax.f32 %v2597, 0.0
      %v2614 = vmax.f32 %v2598, 0.0
      %v2615 = vmax.f32 %v2599, 0.0
      %v2616 = vmax.f32 %v2600, 0.0
      %v2617 = vmax.f32 %v2601, 0.0
      %v2618 = vmax.f32 %v2602, 0.0
      %v2619 = vmax.f32 %v2603, 0.0
      %v2620 = vmax.f32 %v2604, 0.0
      %v2621 = vmax.f32 %v2605, 0.0
      %v2622 = vld [vmem:[%s5] sm:$0xff]
      %v2623 = vld [vmem:[%s5 + $0x8] sm:$0xff]
      %v2624 = vld [vmem:[%s5 + $0x10] sm:$0xff]
      %v2625 = vld [vmem:[%s5 + $0x18] sm:$0xff]
      %v2626 = vld [vmem:[%s5 + $0x20] sm:$0xff]
      %v2627 = vld [vmem:[%s5 + $0x28] sm:$0xff]
      %v2628 = vld [vmem:[%s5 + $0x30] sm:$0xff]
      %v2629 = vld [vmem:[%s5 + $0x38] sm:$0xff]
      %v2630 = vld [vmem:[%s5 + $0x40] sm:$0xff]
      %v2631 = vld [vmem:[%s5 + $0x48] sm:$0xff]
      %v2632 = vld [vmem:[%s5 + $0x50] sm:$0xff]
      %v2633 = vld [vmem:[%s5 + $0x58] sm:$0xff]
      %v2634 = vld [vmem:[%s5 + $0x60] sm:$0xff]
      %v2635 = vld [vmem:[%s5 + $0x68] sm:$0xff]
      %v2636 = vld [vmem:[%s5 + $0x70] sm:$0xff]
      %v2637 = vld [vmem:[%s5 + $0x78] sm:$0xff]
      %2639 = vset.pattern.permute.xlu0 0
      %2640 = vperm.xlu0 %2639, %v2622
      %v2641 = vpop.permute.xlu0 %2640
      %2644 = vset.pattern.permute.xlu0 0
      %2645 = vperm.xlu0 %2644, %v2623
      %v2646 = vpop.permute.xlu0 %2645
      %2649 = vset.pattern.permute.xlu0 0
      %2650 = vperm.xlu0 %2649, %v2624
      %v2651 = vpop.permute.xlu0 %2650
      %2654 = vset.pattern.permute.xlu0 0
      %2655 = vperm.xlu0 %2654, %v2625
      %v2656 = vpop.permute.xlu0 %2655
      %2659 = vset.pattern.permute.xlu0 0
      %2660 = vperm.xlu0 %2659, %v2626
      %v2661 = vpop.permute.xlu0 %2660
      %2664 = vset.pattern.permute.xlu0 0
      %2665 = vperm.xlu0 %2664, %v2627
      %v2666 = vpop.permute.xlu0 %2665
      %2669 = vset.pattern.permute.xlu0 0
      %2670 = vperm.xlu0 %2669, %v2628
      %v2671 = vpop.permute.xlu0 %2670
      %2674 = vset.pattern.permute.xlu0 0
      %2675 = vperm.xlu0 %2674, %v2629
      %v2676 = vpop.permute.xlu0 %2675
      %2679 = vset.pattern.permute.xlu0 0
      %2680 = vperm.xlu0 %2679, %v2630
      %v2681 = vpop.permute.xlu0 %2680
      %2684 = vset.pattern.permute.xlu0 0
      %2685 = vperm.xlu0 %2684, %v2631
      %v2686 = vpop.permute.xlu0 %2685
      %2689 = vset.pattern.permute.xlu0 0
      %2690 = vperm.xlu0 %2689, %v2632
      %v2691 = vpop.permute.xlu0 %2690
      %2694 = vset.pattern.permute.xlu0 0
      %2695 = vperm.xlu0 %2694, %v2633
      %v2696 = vpop.permute.xlu0 %2695
      %2699 = vset.pattern.permute.xlu0 0
      %2700 = vperm.xlu0 %2699, %v2634
      %v2701 = vpop.permute.xlu0 %2700
      %2704 = vset.pattern.permute.xlu0 0
      %2705 = vperm.xlu0 %2704, %v2635
      %v2706 = vpop.permute.xlu0 %2705
      %2709 = vset.pattern.permute.xlu0 0
      %2710 = vperm.xlu0 %2709, %v2636
      %v2711 = vpop.permute.xlu0 %2710
      %2714 = vset.pattern.permute.xlu0 0
      %2715 = vperm.xlu0 %2714, %v2637
      %v2716 = vpop.permute.xlu0 %2715
      %v2718 = vmul.f32 %v2606, %v2641
      %v2719 = vmul.f32 %v2607, %v2646
      %v2720 = vmul.f32 %v2608, %v2651
      %v2721 = vmul.f32 %v2609, %v2656
      %v2722 = vmul.f32 %v2610, %v2661
      %v2723 = vmul.f32 %v2611, %v2666
      %v2724 = vmul.f32 %v2612, %v2671
      %v2725 = vmul.f32 %v2613, %v2676
      %v2726 = vmul.f32 %v2614, %v2681
      %v2727 = vmul.f32 %v2615, %v2686
      %v2728 = vmul.f32 %v2616, %v2691
      %v2729 = vmul.f32 %v2617, %v2696
      %v2730 = vmul.f32 %v2618, %v2701
      %v2731 = vmul.f32 %v2619, %v2706
      %v2732 = vmul.f32 %v2620, %v2711
      %v2733 = vmul.f32 %v2621, %v2716
      %2734 = vst.msk [vmem:[#allocation2] sm:$0xff] %vm490, 0
      %vm2735 = vcmask 57344
      %vm2736 = vsmask.f32 256
      %vm2737 = vmand %vm2735, %vm2736
      %v2738 = vld [vmem:[#allocation2 + $0x8] sm:$0x1]
      %v2739 = vsel %vm2737, 0, %v2738
      %2740 = vst [vmem:[#allocation2 + $0x8] sm:$0x1] %v2739
      %v2741 = vpack.c.bf16 %v2719, %v2718
      %v2742 = vpack.c.bf16 %v2721, %v2720
      %v2743 = vpack.c.bf16 %v2723, %v2722
      %v2744 = vpack.c.bf16 %v2725, %v2724
      %v2745 = vpack.c.bf16 %v2727, %v2726
      %v2746 = vpack.c.bf16 %v2729, %v2728
      %v2747 = vpack.c.bf16 %v2731, %v2730
      %v2748 = vpack.c.bf16 %v2733, %v2732
      %v2750 = vshrl.u32 %v2741, 16
      %v2752 = vrot.slane %v2750, 7
      %v2753 = vshll.u32 %v2741, 16
      %v2755 = vor.u32 %v2752, %v2753
      %v2757 = vshrl.u32 %v2742, 16
      %v2759 = vrot.slane %v2757, 7
      %v2760 = vshll.u32 %v2742, 16
      %v2762 = vor.u32 %v2759, %v2760
      %v2763 = vsel %vm2736, %v2752, %v2762
      %v2765 = vshrl.u32 %v2743, 16
      %v2767 = vrot.slane %v2765, 7
      %v2768 = vshll.u32 %v2743, 16
      %v2770 = vor.u32 %v2767, %v2768
      %v2771 = vsel %vm2736, %v2759, %v2770
      %v2773 = vshrl.u32 %v2744, 16
      %v2775 = vrot.slane %v2773, 7
      %v2776 = vshll.u32 %v2744, 16
      %v2778 = vor.u32 %v2775, %v2776
      %v2779 = vsel %vm2736, %v2767, %v2778
      %v2781 = vshrl.u32 %v2745, 16
      %v2783 = vrot.slane %v2781, 7
      %v2784 = vshll.u32 %v2745, 16
      %v2786 = vor.u32 %v2783, %v2784
      %v2787 = vsel %vm2736, %v2775, %v2786
      %v2789 = vshrl.u32 %v2746, 16
      %v2791 = vrot.slane %v2789, 7
      %v2792 = vshll.u32 %v2746, 16
      %v2794 = vor.u32 %v2791, %v2792
      %v2795 = vsel %vm2736, %v2783, %v2794
      %v2797 = vshrl.u32 %v2747, 16
      %v2799 = vrot.slane %v2797, 7
      %v2800 = vshll.u32 %v2747, 16
      %v2802 = vor.u32 %v2799, %v2800
      %v2803 = vsel %vm2736, %v2791, %v2802
      %v2805 = vshrl.u32 %v2748, 16
      %v2807 = vrot.slane %v2805, 7
      %v2808 = vshll.u32 %v2748, 16
      %v2810 = vor.u32 %v2807, %v2808
      %v2811 = vsel %vm2736, %v2799, %v2810
      %vm2821 = vcmask 64512
      %vm2822 = vsmask.f32 7938
      %vm2823 = vmand %vm2821, %vm2822
      %v2824 = vld [vmem:[#allocation2 + $0x8] sm:$0xff]
      %v2825 = vsel %vm2823, %v2755, %v2824
      %2826 = vst [vmem:[#allocation2 + $0x8] sm:$0xff] %v2825
      %2827 = vst.msk [vmem:[#allocation2 + $0x10] sm:$0xff] %vm490, %v2763
      %2828 = vst.msk [vmem:[#allocation2 + $0x18] sm:$0xff] %vm490, %v2771
      %2829 = vst.msk [vmem:[#allocation2 + $0x20] sm:$0xff] %vm490, %v2779
      %2830 = vst.msk [vmem:[#allocation2 + $0x28] sm:$0xff] %vm490, %v2787
      %2831 = vst.msk [vmem:[#allocation2 + $0x30] sm:$0xff] %vm490, %v2795
      %2832 = vst.msk [vmem:[#allocation2 + $0x38] sm:$0xff] %vm490, %v2803
      %2833 = vst.msk [vmem:[#allocation2 + $0x40] sm:$0xff] %vm490, %v2811
      %v2834 = vld [vmem:[#allocation2 + $0x48] sm:$0x1]
      %v2835 = vsel %vm2737, %v2807, %v2834
      %2836 = vst [vmem:[#allocation2 + $0x48] sm:$0x1] %v2835
      %v2837 = vld [vmem:[#allocation2 + $0x48] sm:$0xff]
      %v2838 = vsel %vm2823, 0, %v2837
      %2839 = vst [vmem:[#allocation2 + $0x48] sm:$0xff] %v2838
      %2840 = vst.msk [vmem:[#allocation2 + $0x50] sm:$0xff] %vm490, 0
      %v2841 = vld [vmem:[#allocation2] sm:$0xff]
      %v2842 = vld [vmem:[#allocation2 + $0x8] sm:$0xff]
      %v2843 = vld [vmem:[#allocation2 + $0x10] sm:$0xff]
      %v2844 = vld [vmem:[#allocation2 + $0x18] sm:$0xff]
      %v2845 = vld [vmem:[#allocation2 + $0x20] sm:$0xff]
      %v2846 = vld [vmem:[#allocation2 + $0x28] sm:$0xff]
      %v2847 = vld [vmem:[#allocation2 + $0x30] sm:$0xff]
      %v2848 = vld [vmem:[#allocation2 + $0x38] sm:$0xff]
      %v2849 = vld [vmem:[%s3] sm:$0xf]
      %v2851 = vsel %vm490, %v2841, 0
      %v2854 = vsel %vm490, %v2842, 0
      %v2857 = vsel %vm490, %v2843, 0
      %v2860 = vsel %vm490, %v2844, 0
      %v2863 = vsel %vm490, %v2845, 0
      %v2866 = vsel %vm490, %v2846, 0
      %v2869 = vsel %vm490, %v2847, 0
      %v2872 = vsel %vm490, %v2848, 0
      %vm2874 = vcmask 1043456
      %v2876 = vsel %vm2874, %v2849, 0
      %2878 = vmatprep.subr.bf16.mxu0 0
      %2879 = vmatpush1.bf16.msra.mxu0 %v2876
      %2880 = vmatprep.subr.bf16.mxu0 0
      %2881 = vmatpush1.bf16.msra.mxu0 0
      %2882 = vmatprep.subr.bf16.mxu0 0
      %2883 = vmatpush1.bf16.msra.mxu0 0
      %2884 = vmatprep.subr.bf16.mxu0 0
      %2885 = vmatpush1.bf16.msra.mxu0 0
      %2886 = vmatprep.subr.bf16.mxu0 0
      %2887 = vmatpush1.bf16.msra.mxu0 0
      %2888 = vmatprep.subr.bf16.mxu0 0
      %2889 = vmatpush1.bf16.msra.mxu0 0
      %2890 = vmatprep.subr.bf16.mxu0 0
      %2891 = vmatpush1.bf16.msra.mxu0 0
      %2892 = vmatprep.subr.bf16.mxu0 0
      %2893 = vmatpush1.bf16.msra.mxu0 0
      %2894 = vmatprep.subr.bf16.mxu0 0
      %2895 = vmatpush1.bf16.msra.mxu0 0
      %2896 = vmatprep.subr.bf16.mxu0 0
      %2897 = vmatpush1.bf16.msra.mxu0 0
      %2898 = vmatprep.subr.bf16.mxu0 0
      %2899 = vmatpush1.bf16.msra.mxu0 0
      %2900 = vmatprep.subr.bf16.mxu0 0
      %2901 = vmatpush1.bf16.msra.mxu0 0
      %2902 = vmatprep.subr.bf16.mxu0 0
      %2903 = vmatpush1.bf16.msra.mxu0 0
      %2904 = vmatprep.subr.bf16.mxu0 0
      %2905 = vmatpush1.bf16.msra.mxu0 0
      %2906 = vmatprep.subr.bf16.mxu0 0
      %2907 = vmatpush1.bf16.msra.mxu0 0
      %2908 = vmatprep.subr.bf16.mxu0 0
      %2909 = vmatpush1.bf16.msra.mxu0 0
      %2910 = vmatprep.mubr.bf16.mxu0 0
      %2911 = vmatmul.mubr.bf16.gmra.mrb[0].mxu0 %v2851
      %v2912 = vpop.f32.mrb[0].mxu0
      %v2913 = vadd.f32 0.0, %v2912
      %v2914 = vpop.f32.mrb[0].mxu0
      %v2915 = vpop.f32.mrb[0].mxu0
      %v2916 = vadd.f32 0.0, %v2915
      %v2917 = vpop.f32.mrb[0].mxu0
      %2918 = vmatprep.mubr.bf16.mxu0 0
      %2919 = vmatmul.mubr.bf16.gmra.mrb[0].mxu0 %v2854
      %v2920 = vpop.f32.mrb[0].mxu0
      %v2921 = vadd.f32 0.0, %v2920
      %v2922 = vpop.f32.mrb[0].mxu0
      %v2923 = vpop.f32.mrb[0].mxu0
      %v2924 = vadd.f32 0.0, %v2923
      %v2925 = vpop.f32.mrb[0].mxu0
      %2926 = vmatprep.mubr.bf16.mxu0 0
      %2927 = vmatmul.mubr.bf16.gmra.mrb[0].mxu0 %v2857
      %v2928 = vpop.f32.mrb[0].mxu0
      %v2929 = vadd.f32 0.0, %v2928
      %v2930 = vpop.f32.mrb[0].mxu0
      %v2931 = vpop.f32.mrb[0].mxu0
      %v2932 = vadd.f32 0.0, %v2931
      %v2933 = vpop.f32.mrb[0].mxu0
      %2934 = vmatprep.mubr.bf16.mxu0 0
      %2935 = vmatmul.mubr.bf16.gmra.mrb[0].mxu0 %v2860
      %v2936 = vpop.f32.mrb[0].mxu0
      %v2937 = vadd.f32 0.0, %v2936
      %v2938 = vpop.f32.mrb[0].mxu0
      %v2939 = vpop.f32.mrb[0].mxu0
      %v2940 = vadd.f32 0.0, %v2939
      %v2941 = vpop.f32.mrb[0].mxu0
      %2942 = vmatprep.mubr.bf16.mxu0 0
      %2943 = vmatmul.mubr.bf16.gmra.mrb[0].mxu0 %v2863
      %v2944 = vpop.f32.mrb[0].mxu0
      %v2945 = vadd.f32 0.0, %v2944
      %v2946 = vpop.f32.mrb[0].mxu0
      %v2947 = vpop.f32.mrb[0].mxu0
      %v2948 = vadd.f32 0.0, %v2947
      %v2949 = vpop.f32.mrb[0].mxu0
      %2950 = vmatprep.mubr.bf16.mxu0 0
      %2951 = vmatmul.mubr.bf16.gmra.mrb[0].mxu0 %v2866
      %v2952 = vpop.f32.mrb[0].mxu0
      %v2953 = vadd.f32 0.0, %v2952
      %v2954 = vpop.f32.mrb[0].mxu0
      %v2955 = vpop.f32.mrb[0].mxu0
      %v2956 = vadd.f32 0.0, %v2955
      %v2957 = vpop.f32.mrb[0].mxu0
      %2958 = vmatprep.mubr.bf16.mxu0 0
      %2959 = vmatmul.mubr.bf16.gmra.mrb[0].mxu0 %v2869
      %v2960 = vpop.f32.mrb[0].mxu0
      %v2961 = vadd.f32 0.0, %v2960
      %v2962 = vpop.f32.mrb[0].mxu0
      %v2963 = vpop.f32.mrb[0].mxu0
      %v2964 = vadd.f32 0.0, %v2963
      %v2965 = vpop.f32.mrb[0].mxu0
      %2966 = vmatprep.mubr.bf16.mxu0 0
      %2967 = vmatmul.mubr.bf16.gmra.mrb[0].mxu0 %v2872
      %v2968 = vpop.f32.mrb[0].mxu0
      %v2969 = vadd.f32 0.0, %v2968
      %v2970 = vpop.f32.mrb[0].mxu0
      %v2971 = vpop.f32.mrb[0].mxu0
      %v2972 = vadd.f32 0.0, %v2971
      %v2973 = vpop.f32.mrb[0].mxu0
      %2974 = vdwg.mxu0
      %2975 = vst.msk [vmem:[#allocation4] sm:$0xff] %vm490, %v2913
      %2976 = vst.msk [vmem:[#allocation4 + $0x8] sm:$0xff] %vm490, %v2916
      %2977 = vst.msk [vmem:[#allocation4 + $0x10] sm:$0xff] %vm490, %v2921
      %2978 = vst.msk [vmem:[#allocation4 + $0x18] sm:$0xff] %vm490, %v2924
      %2979 = vst.msk [vmem:[#allocation4 + $0x20] sm:$0xff] %vm490, %v2929
      %2980 = vst.msk [vmem:[#allocation4 + $0x28] sm:$0xff] %vm490, %v2932
      %2981 = vst.msk [vmem:[#allocation4 + $0x30] sm:$0xff] %vm490, %v2937
      %2982 = vst.msk [vmem:[#allocation4 + $0x38] sm:$0xff] %vm490, %v2940
      %2983 = vst.msk [vmem:[#allocation4 + $0x40] sm:$0xff] %vm490, %v2945
      %2984 = vst.msk [vmem:[#allocation4 + $0x48] sm:$0xff] %vm490, %v2948
      %2985 = vst.msk [vmem:[#allocation4 + $0x50] sm:$0xff] %vm490, %v2953
      %2986 = vst.msk [vmem:[#allocation4 + $0x58] sm:$0xff] %vm490, %v2956
      %2987 = vst.msk [vmem:[#allocation4 + $0x60] sm:$0xff] %vm490, %v2961
      %2988 = vst.msk [vmem:[#allocation4 + $0x68] sm:$0xff] %vm490, %v2964
      %2989 = vst.msk [vmem:[#allocation4 + $0x70] sm:$0xff] %vm490, %v2969
      %2990 = vst.msk [vmem:[#allocation4 + $0x78] sm:$0xff] %vm490, %v2972
      %v2991 = vld [vmem:[#allocation2] sm:$0xff]
      %v2992 = vld [vmem:[#allocation2 + $0x8] sm:$0xff]
      %v2993 = vld [vmem:[#allocation2 + $0x10] sm:$0xff]
      %v2994 = vld [vmem:[#allocation2 + $0x18] sm:$0xff]
      %v2995 = vld [vmem:[#allocation2 + $0x20] sm:$0xff]
      %v2996 = vld [vmem:[#allocation2 + $0x28] sm:$0xff]
      %v2997 = vld [vmem:[#allocation2 + $0x30] sm:$0xff]
      %v2998 = vld [vmem:[#allocation2 + $0x38] sm:$0xff]
      %v2999 = vld [vmem:[#allocation2 + $0x40] sm:$0x1]
      %s3000 = scalar_lea.vmem %s3, 4
      %v3001 = vld [vmem:[%s3000] sm:$0xf]
      %v3003 = vshrl.u32 %v2991, 16
      %v3005 = vshll.u32 %v2991, 16
      %v3007 = vrot.slane %v3005, 1
      %v3008 = vor.u32 %v3003, %v3007
      %v3010 = vshll.u32 %v2992, 16
      %v3012 = vrot.slane %v3010, 1
      %v3013 = vsel %vm800, %v3008, %v3012
      %v3014 = vshrl.u32 %v2992, 16
      %v3016 = vor.u32 %v3014, %v3012
      %v3018 = vshll.u32 %v2993, 16
      %v3020 = vrot.slane %v3018, 1
      %v3021 = vsel %vm800, %v3016, %v3020
      %v3022 = vshrl.u32 %v2993, 16
      %v3024 = vor.u32 %v3022, %v3020
      %v3026 = vshll.u32 %v2994, 16
      %v3028 = vrot.slane %v3026, 1
      %v3029 = vsel %vm800, %v3024, %v3028
      %v3030 = vshrl.u32 %v2994, 16
      %v3032 = vor.u32 %v3030, %v3028
      %v3034 = vshll.u32 %v2995, 16
      %v3036 = vrot.slane %v3034, 1
      %v3037 = vsel %vm800, %v3032, %v3036
      %v3038 = vshrl.u32 %v2995, 16
      %v3040 = vor.u32 %v3038, %v3036
      %v3042 = vshll.u32 %v2996, 16
      %v3044 = vrot.slane %v3042, 1
      %v3045 = vsel %vm800, %v3040, %v3044
      %v3046 = vshrl.u32 %v2996, 16
      %v3048 = vor.u32 %v3046, %v3044
      %v3050 = vshll.u32 %v2997, 16
      %v3052 = vrot.slane %v3050, 1
      %v3053 = vsel %vm800, %v3048, %v3052
      %v3054 = vshrl.u32 %v2997, 16
      %v3056 = vor.u32 %v3054, %v3052
      %v3058 = vshll.u32 %v2998, 16
      %v3060 = vrot.slane %v3058, 1
      %v3061 = vsel %vm800, %v3056, %v3060
      %v3062 = vshrl.u32 %v2998, 16
      %v3064 = vor.u32 %v3062, %v3060
      %v3066 = vshll.u32 %v2999, 16
      %v3068 = vrot.slane %v3066, 1
      %v3069 = vsel %vm800, %v3064, %v3068
      %v3071 = vsel %vm490, %v3013, 0
      %v3074 = vsel %vm490, %v3021, 0
      %v3077 = vsel %vm490, %v3029, 0
      %v3080 = vsel %vm490, %v3037, 0
      %v3083 = vsel %vm490, %v3045, 0
      %v3086 = vsel %vm490, %v3053, 0
      %v3089 = vsel %vm490, %v3061, 0
      %v3092 = vsel %vm490, %v3069, 0
      %v3095 = vsel %vm2874, %v3001, 0
      %3097 = vmatprep.subr.bf16.mxu0 0
      %3098 = vmatpush1.bf16.msra.mxu0 %v3095
      %3099 = vmatprep.subr.bf16.mxu0 0
      %3100 = vmatpush1.bf16.msra.mxu0 0
      %3101 = vmatprep.subr.bf16.mxu0 0
      %3102 = vmatpush1.bf16.msra.mxu0 0
      %3103 = vmatprep.subr.bf16.mxu0 0
      %3104 = vmatpush1.bf16.msra.mxu0 0
      %3105 = vmatprep.subr.bf16.mxu0 0
      %3106 = vmatpush1.bf16.msra.mxu0 0
      %3107 = vmatprep.subr.bf16.mxu0 0
      %3108 = vmatpush1.bf16.msra.mxu0 0
      %3109 = vmatprep.subr.bf16.mxu0 0
      %3110 = vmatpush1.bf16.msra.mxu0 0
      %3111 = vmatprep.subr.bf16.mxu0 0
      %3112 = vmatpush1.bf16.msra.mxu0 0
      %3113 = vmatprep.subr.bf16.mxu0 0
      %3114 = vmatpush1.bf16.msra.mxu0 0
      %3115 = vmatprep.subr.bf16.mxu0 0
      %3116 = vmatpush1.bf16.msra.mxu0 0
      %3117 = vmatprep.subr.bf16.mxu0 0
      %3118 = vmatpush1.bf16.msra.mxu0 0
      %3119 = vmatprep.subr.bf16.mxu0 0
      %3120 = vmatpush1.bf16.msra.mxu0 0
      %3121 = vmatprep.subr.bf16.mxu0 0
      %3122 = vmatpush1.bf16.msra.mxu0 0
      %3123 = vmatprep.subr.bf16.mxu0 0
      %3124 = vmatpush1.bf16.msra.mxu0 0
      %3125 = vmatprep.subr.bf16.mxu0 0
      %3126 = vmatpush1.bf16.msra.mxu0 0
      %3127 = vmatprep.subr.bf16.mxu0 0
      %3128 = vmatpush1.bf16.msra.mxu0 0
      %3129 = vmatprep.mubr.bf16.mxu0 0
      %3130 = vmatmul.mubr.bf16.gmra.mrb[0].mxu0 %v3071
      %v3131 = vpop.f32.mrb[0].mxu0
      %v3132 = vadd.f32 0.0, %v3131
      %v3133 = vpop.f32.mrb[0].mxu0
      %v3134 = vpop.f32.mrb[0].mxu0
      %v3135 = vadd.f32 0.0, %v3134
      %v3136 = vpop.f32.mrb[0].mxu0
      %3137 = vmatprep.mubr.bf16.mxu0 0
      %3138 = vmatmul.mubr.bf16.gmra.mrb[0].mxu0 %v3074
      %v3139 = vpop.f32.mrb[0].mxu0
      %v3140 = vadd.f32 0.0, %v3139
      %v3141 = vpop.f32.mrb[0].mxu0
      %v3142 = vpop.f32.mrb[0].mxu0
      %v3143 = vadd.f32 0.0, %v3142
      %v3144 = vpop.f32.mrb[0].mxu0
      %3145 = vmatprep.mubr.bf16.mxu0 0
      %3146 = vmatmul.mubr.bf16.gmra.mrb[0].mxu0 %v3077
      %v3147 = vpop.f32.mrb[0].mxu0
      %v3148 = vadd.f32 0.0, %v3147
      %v3149 = vpop.f32.mrb[0].mxu0
      %v3150 = vpop.f32.mrb[0].mxu0
      %v3151 = vadd.f32 0.0, %v3150
      %v3152 = vpop.f32.mrb[0].mxu0
      %3153 = vmatprep.mubr.bf16.mxu0 0
      %3154 = vmatmul.mubr.bf16.gmra.mrb[0].mxu0 %v3080
      %v3155 = vpop.f32.mrb[0].mxu0
      %v3156 = vadd.f32 0.0, %v3155
      %v3157 = vpop.f32.mrb[0].mxu0
      %v3158 = vpop.f32.mrb[0].mxu0
      %v3159 = vadd.f32 0.0, %v3158
      %v3160 = vpop.f32.mrb[0].mxu0
      %3161 = vmatprep.mubr.bf16.mxu0 0
      %3162 = vmatmul.mubr.bf16.gmra.mrb[0].mxu0 %v3083
      %v3163 = vpop.f32.mrb[0].mxu0
      %v3164 = vadd.f32 0.0, %v3163
      %v3165 = vpop.f32.mrb[0].mxu0
      %v3166 = vpop.f32.mrb[0].mxu0
      %v3167 = vadd.f32 0.0, %v3166
      %v3168 = vpop.f32.mrb[0].mxu0
      %3169 = vmatprep.mubr.bf16.mxu0 0
      %3170 = vmatmul.mubr.bf16.gmra.mrb[0].mxu0 %v3086
      %v3171 = vpop.f32.mrb[0].mxu0
      %v3172 = vadd.f32 0.0, %v3171
      %v3173 = vpop.f32.mrb[0].mxu0
      %v3174 = vpop.f32.mrb[0].mxu0
      %v3175 = vadd.f32 0.0, %v3174
      %v3176 = vpop.f32.mrb[0].mxu0
      %3177 = vmatprep.mubr.bf16.mxu0 0
      %3178 = vmatmul.mubr.bf16.gmra.mrb[0].mxu0 %v3089
      %v3179 = vpop.f32.mrb[0].mxu0
      %v3180 = vadd.f32 0.0, %v3179
      %v3181 = vpop.f32.mrb[0].mxu0
      %v3182 = vpop.f32.mrb[0].mxu0
      %v3183 = vadd.f32 0.0, %v3182
      %v3184 = vpop.f32.mrb[0].mxu0
      %3185 = vmatprep.mubr.bf16.mxu0 0
      %3186 = vmatmul.mubr.bf16.gmra.mrb[0].mxu0 %v3092
      %v3187 = vpop.f32.mrb[0].mxu0
      %v3188 = vadd.f32 0.0, %v3187
      %v3189 = vpop.f32.mrb[0].mxu0
      %v3190 = vpop.f32.mrb[0].mxu0
      %v3191 = vadd.f32 0.0, %v3190
      %v3192 = vpop.f32.mrb[0].mxu0
      %3193 = vdwg.mxu0
      %v3194 = vld [vmem:[#allocation4] sm:$0xff]
      %v3195 = vld [vmem:[#allocation4 + $0x8] sm:$0xff]
      %v3196 = vld [vmem:[#allocation4 + $0x10] sm:$0xff]
      %v3197 = vld [vmem:[#allocation4 + $0x18] sm:$0xff]
      %v3198 = vld [vmem:[#allocation4 + $0x20] sm:$0xff]
      %v3199 = vld [vmem:[#allocation4 + $0x28] sm:$0xff]
      %v3200 = vld [vmem:[#allocation4 + $0x30] sm:$0xff]
      %v3201 = vld [vmem:[#allocation4 + $0x38] sm:$0xff]
      %v3202 = vld [vmem:[#allocation4 + $0x40] sm:$0xff]
      %v3203 = vld [vmem:[#allocation4 + $0x48] sm:$0xff]
      %v3204 = vld [vmem:[#allocation4 + $0x50] sm:$0xff]
      %v3205 = vld [vmem:[#allocation4 + $0x58] sm:$0xff]
      %v3206 = vld [vmem:[#allocation4 + $0x60] sm:$0xff]
      %v3207 = vld [vmem:[#allocation4 + $0x68] sm:$0xff]
      %v3208 = vld [vmem:[#allocation4 + $0x70] sm:$0xff]
      %v3209 = vld [vmem:[#allocation4 + $0x78] sm:$0xff]
      %v3210 = vadd.f32 %v3194, %v3132
      %v3211 = vadd.f32 %v3195, %v3135
      %v3212 = vadd.f32 %v3196, %v3140
      %v3213 = vadd.f32 %v3197, %v3143
      %v3214 = vadd.f32 %v3198, %v3148
      %v3215 = vadd.f32 %v3199, %v3151
      %v3216 = vadd.f32 %v3200, %v3156
      %v3217 = vadd.f32 %v3201, %v3159
      %v3218 = vadd.f32 %v3202, %v3164
      %v3219 = vadd.f32 %v3203, %v3167
      %v3220 = vadd.f32 %v3204, %v3172
      %v3221 = vadd.f32 %v3205, %v3175
      %v3222 = vadd.f32 %v3206, %v3180
      %v3223 = vadd.f32 %v3207, %v3183
      %v3224 = vadd.f32 %v3208, %v3188
      %v3225 = vadd.f32 %v3209, %v3191
      %3226 = vst.msk [vmem:[#allocation4] sm:$0xff] %vm490, %v3210
      %3227 = vst.msk [vmem:[#allocation4 + $0x8] sm:$0xff] %vm490, %v3211
      %3228 = vst.msk [vmem:[#allocation4 + $0x10] sm:$0xff] %vm490, %v3212
      %3229 = vst.msk [vmem:[#allocation4 + $0x18] sm:$0xff] %vm490, %v3213
      %3230 = vst.msk [vmem:[#allocation4 + $0x20] sm:$0xff] %vm490, %v3214
      %3231 = vst.msk [vmem:[#allocation4 + $0x28] sm:$0xff] %vm490, %v3215
      %3232 = vst.msk [vmem:[#allocation4 + $0x30] sm:$0xff] %vm490, %v3216
      %3233 = vst.msk [vmem:[#allocation4 + $0x38] sm:$0xff] %vm490, %v3217
      %3234 = vst.msk [vmem:[#allocation4 + $0x40] sm:$0xff] %vm490, %v3218
      %3235 = vst.msk [vmem:[#allocation4 + $0x48] sm:$0xff] %vm490, %v3219
      %3236 = vst.msk [vmem:[#allocation4 + $0x50] sm:$0xff] %vm490, %v3220
      %3237 = vst.msk [vmem:[#allocation4 + $0x58] sm:$0xff] %vm490, %v3221
      %3238 = vst.msk [vmem:[#allocation4 + $0x60] sm:$0xff] %vm490, %v3222
      %3239 = vst.msk [vmem:[#allocation4 + $0x68] sm:$0xff] %vm490, %v3223
      %3240 = vst.msk [vmem:[#allocation4 + $0x70] sm:$0xff] %vm490, %v3224
      %3241 = vst.msk [vmem:[#allocation4 + $0x78] sm:$0xff] %vm490, %v3225
      %v3242 = vld [vmem:[#allocation2] sm:$0xfe]
      %v3243 = vld [vmem:[#allocation2 + $0x8] sm:$0xff]
      %v3244 = vld [vmem:[#allocation2 + $0x10] sm:$0xff]
      %v3245 = vld [vmem:[#allocation2 + $0x18] sm:$0xff]
      %v3246 = vld [vmem:[#allocation2 + $0x20] sm:$0xff]
      %v3247 = vld [vmem:[#allocation2 + $0x28] sm:$0xff]
      %v3248 = vld [vmem:[#allocation2 + $0x30] sm:$0xff]
      %v3249 = vld [vmem:[#allocation2 + $0x38] sm:$0xff]
      %v3250 = vld [vmem:[#allocation2 + $0x40] sm:$0x1]
      %s3251 = scalar_lea.vmem %s3, 8
      %v3252 = vld [vmem:[%s3251] sm:$0xf]
      %vm3262 = vcmask 1046528
      %v3263 = vrot.slane %v3242, 1
      %v3264 = vrot.slane %v3243, 1
      %v3265 = vsel %vm3262, %v3263, %v3264
      %v3266 = vrot.slane %v3244, 1
      %v3267 = vsel %vm3262, %v3264, %v3266
      %v3268 = vrot.slane %v3245, 1
      %v3269 = vsel %vm3262, %v3266, %v3268
      %v3270 = vrot.slane %v3246, 1
      %v3271 = vsel %vm3262, %v3268, %v3270
      %v3272 = vrot.slane %v3247, 1
      %v3273 = vsel %vm3262, %v3270, %v3272
      %v3274 = vrot.slane %v3248, 1
      %v3275 = vsel %vm3262, %v3272, %v3274
      %v3276 = vrot.slane %v3249, 1
      %v3277 = vsel %vm3262, %v3274, %v3276
      %v3278 = vrot.slane %v3250, 1
      %v3279 = vsel %vm3262, %v3276, %v3278
      %v3281 = vsel %vm490, %v3265, 0
      %v3284 = vsel %vm490, %v3267, 0
      %v3287 = vsel %vm490, %v3269, 0
      %v3290 = vsel %vm490, %v3271, 0
      %v3293 = vsel %vm490, %v3273, 0
      %v3296 = vsel %vm490, %v3275, 0
      %v3299 = vsel %vm490, %v3277, 0
      %v3302 = vsel %vm490, %v3279, 0
      %v3305 = vsel %vm2874, %v3252, 0
      %3307 = vmatprep.subr.bf16.mxu0 0
      %3308 = vmatpush1.bf16.msra.mxu0 %v3305
      %3309 = vmatprep.subr.bf16.mxu0 0
      %3310 = vmatpush1.bf16.msra.mxu0 0
      %3311 = vmatprep.subr.bf16.mxu0 0
      %3312 = vmatpush1.bf16.msra.mxu0 0
      %3313 = vmatprep.subr.bf16.mxu0 0
      %3314 = vmatpush1.bf16.msra.mxu0 0
      %3315 = vmatprep.subr.bf16.mxu0 0
      %3316 = vmatpush1.bf16.msra.mxu0 0
      %3317 = vmatprep.subr.bf16.mxu0 0
      %3318 = vmatpush1.bf16.msra.mxu0 0
      %3319 = vmatprep.subr.bf16.mxu0 0
      %3320 = vmatpush1.bf16.msra.mxu0 0
      %3321 = vmatprep.subr.bf16.mxu0 0
      %3322 = vmatpush1.bf16.msra.mxu0 0
      %3323 = vmatprep.subr.bf16.mxu0 0
      %3324 = vmatpush1.bf16.msra.mxu0 0
      %3325 = vmatprep.subr.bf16.mxu0 0
      %3326 = vmatpush1.bf16.msra.mxu0 0
      %3327 = vmatprep.subr.bf16.mxu0 0
      %3328 = vmatpush1.bf16.msra.mxu0 0
      %3329 = vmatprep.subr.bf16.mxu0 0
      %3330 = vmatpush1.bf16.msra.mxu0 0
      %3331 = vmatprep.subr.bf16.mxu0 0
      %3332 = vmatpush1.bf16.msra.mxu0 0
      %3333 = vmatprep.subr.bf16.mxu0 0
      %3334 = vmatpush1.bf16.msra.mxu0 0
      %3335 = vmatprep.subr.bf16.mxu0 0
      %3336 = vmatpush1.bf16.msra.mxu0 0
      %3337 = vmatprep.subr.bf16.mxu0 0
      %3338 = vmatpush1.bf16.msra.mxu0 0
      %3339 = vmatprep.mubr.bf16.mxu0 0
      %3340 = vmatmul.mubr.bf16.gmra.mrb[0].mxu0 %v3281
      %v3341 = vpop.f32.mrb[0].mxu0
      %v3342 = vadd.f32 0.0, %v3341
      %v3343 = vpop.f32.mrb[0].mxu0
      %v3344 = vpop.f32.mrb[0].mxu0
      %v3345 = vadd.f32 0.0, %v3344
      %v3346 = vpop.f32.mrb[0].mxu0
      %3347 = vmatprep.mubr.bf16.mxu0 0
      %3348 = vmatmul.mubr.bf16.gmra.mrb[0].mxu0 %v3284
      %v3349 = vpop.f32.mrb[0].mxu0
      %v3350 = vadd.f32 0.0, %v3349
      %v3351 = vpop.f32.mrb[0].mxu0
      %v3352 = vpop.f32.mrb[0].mxu0
      %v3353 = vadd.f32 0.0, %v3352
      %v3354 = vpop.f32.mrb[0].mxu0
      %3355 = vmatprep.mubr.bf16.mxu0 0
      %3356 = vmatmul.mubr.bf16.gmra.mrb[0].mxu0 %v3287
      %v3357 = vpop.f32.mrb[0].mxu0
      %v3358 = vadd.f32 0.0, %v3357
      %v3359 = vpop.f32.mrb[0].mxu0
      %v3360 = vpop.f32.mrb[0].mxu0
      %v3361 = vadd.f32 0.0, %v3360
      %v3362 = vpop.f32.mrb[0].mxu0
      %3363 = vmatprep.mubr.bf16.mxu0 0
      %3364 = vmatmul.mubr.bf16.gmra.mrb[0].mxu0 %v3290
      %v3365 = vpop.f32.mrb[0].mxu0
      %v3366 = vadd.f32 0.0, %v3365
      %v3367 = vpop.f32.mrb[0].mxu0
      %v3368 = vpop.f32.mrb[0].mxu0
      %v3369 = vadd.f32 0.0, %v3368
      %v3370 = vpop.f32.mrb[0].mxu0
      %3371 = vmatprep.mubr.bf16.mxu0 0
      %3372 = vmatmul.mubr.bf16.gmra.mrb[0].mxu0 %v3293
      %v3373 = vpop.f32.mrb[0].mxu0
      %v3374 = vadd.f32 0.0, %v3373
      %v3375 = vpop.f32.mrb[0].mxu0
      %v3376 = vpop.f32.mrb[0].mxu0
      %v3377 = vadd.f32 0.0, %v3376
      %v3378 = vpop.f32.mrb[0].mxu0
      %3379 = vmatprep.mubr.bf16.mxu0 0
      %3380 = vmatmul.mubr.bf16.gmra.mrb[0].mxu0 %v3296
      %v3381 = vpop.f32.mrb[0].mxu0
      %v3382 = vadd.f32 0.0, %v3381
      %v3383 = vpop.f32.mrb[0].mxu0
      %v3384 = vpop.f32.mrb[0].mxu0
      %v3385 = vadd.f32 0.0, %v3384
      %v3386 = vpop.f32.mrb[0].mxu0
      %3387 = vmatprep.mubr.bf16.mxu0 0
      %3388 = vmatmul.mubr.bf16.gmra.mrb[0].mxu0 %v3299
      %v3389 = vpop.f32.mrb[0].mxu0
      %v3390 = vadd.f32 0.0, %v3389
      %v3391 = vpop.f32.mrb[0].mxu0
      %v3392 = vpop.f32.mrb[0].mxu0
      %v3393 = vadd.f32 0.0, %v3392
      %v3394 = vpop.f32.mrb[0].mxu0
      %3395 = vmatprep.mubr.bf16.mxu0 0
      %3396 = vmatmul.mubr.bf16.gmra.mrb[0].mxu0 %v3302
      %v3397 = vpop.f32.mrb[0].mxu0
      %v3398 = vadd.f32 0.0, %v3397
      %v3399 = vpop.f32.mrb[0].mxu0
      %v3400 = vpop.f32.mrb[0].mxu0
      %v3401 = vadd.f32 0.0, %v3400
      %v3402 = vpop.f32.mrb[0].mxu0
      %3403 = vdwg.mxu0
      %v3404 = vld [vmem:[#allocation4] sm:$0xff]
      %v3405 = vld [vmem:[#allocation4 + $0x8] sm:$0xff]
      %v3406 = vld [vmem:[#allocation4 + $0x10] sm:$0xff]
      %v3407 = vld [vmem:[#allocation4 + $0x18] sm:$0xff]
      %v3408 = vld [vmem:[#allocation4 + $0x20] sm:$0xff]
      %v3409 = vld [vmem:[#allocation4 + $0x28] sm:$0xff]
      %v3410 = vld [vmem:[#allocation4 + $0x30] sm:$0xff]
      %v3411 = vld [vmem:[#allocation4 + $0x38] sm:$0xff]
      %v3412 = vld [vmem:[#allocation4 + $0x40] sm:$0xff]
      %v3413 = vld [vmem:[#allocation4 + $0x48] sm:$0xff]
      %v3414 = vld [vmem:[#allocation4 + $0x50] sm:$0xff]
      %v3415 = vld [vmem:[#allocation4 + $0x58] sm:$0xff]
      %v3416 = vld [vmem:[#allocation4 + $0x60] sm:$0xff]
      %v3417 = vld [vmem:[#allocation4 + $0x68] sm:$0xff]
      %v3418 = vld [vmem:[#allocation4 + $0x70] sm:$0xff]
      %v3419 = vld [vmem:[#allocation4 + $0x78] sm:$0xff]
      %v3420 = vadd.f32 %v3404, %v3342
      %v3421 = vadd.f32 %v3405, %v3345
      %v3422 = vadd.f32 %v3406, %v3350
      %v3423 = vadd.f32 %v3407, %v3353
      %v3424 = vadd.f32 %v3408, %v3358
      %v3425 = vadd.f32 %v3409, %v3361
      %v3426 = vadd.f32 %v3410, %v3366
      %v3427 = vadd.f32 %v3411, %v3369
      %v3428 = vadd.f32 %v3412, %v3374
      %v3429 = vadd.f32 %v3413, %v3377
      %v3430 = vadd.f32 %v3414, %v3382
      %v3431 = vadd.f32 %v3415, %v3385
      %v3432 = vadd.f32 %v3416, %v3390
      %v3433 = vadd.f32 %v3417, %v3393
      %v3434 = vadd.f32 %v3418, %v3398
      %v3435 = vadd.f32 %v3419, %v3401
      %3436 = vst.msk [vmem:[#allocation4] sm:$0xff] %vm490, %v3420
      %3437 = vst.msk [vmem:[#allocation4 + $0x8] sm:$0xff] %vm490, %v3421
      %3438 = vst.msk [vmem:[#allocation4 + $0x10] sm:$0xff] %vm490, %v3422
      %3439 = vst.msk [vmem:[#allocation4 + $0x18] sm:$0xff] %vm490, %v3423
      %3440 = vst.msk [vmem:[#allocation4 + $0x20] sm:$0xff] %vm490, %v3424
      %3441 = vst.msk [vmem:[#allocation4 + $0x28] sm:$0xff] %vm490, %v3425
      %3442 = vst.msk [vmem:[#allocation4 + $0x30] sm:$0xff] %vm490, %v3426
      %3443 = vst.msk [vmem:[#allocation4 + $0x38] sm:$0xff] %vm490, %v3427
      %3444 = vst.msk [vmem:[#allocation4 + $0x40] sm:$0xff] %vm490, %v3428
      %3445 = vst.msk [vmem:[#allocation4 + $0x48] sm:$0xff] %vm490, %v3429
      %3446 = vst.msk [vmem:[#allocation4 + $0x50] sm:$0xff] %vm490, %v3430
      %3447 = vst.msk [vmem:[#allocation4 + $0x58] sm:$0xff] %vm490, %v3431
      %3448 = vst.msk [vmem:[#allocation4 + $0x60] sm:$0xff] %vm490, %v3432
      %3449 = vst.msk [vmem:[#allocation4 + $0x68] sm:$0xff] %vm490, %v3433
      %3450 = vst.msk [vmem:[#allocation4 + $0x70] sm:$0xff] %vm490, %v3434
      %3451 = vst.msk [vmem:[#allocation4 + $0x78] sm:$0xff] %vm490, %v3435
      %v3452 = vld [vmem:[#allocation2 + $0x8] sm:$0xff]
      %v3453 = vld [vmem:[#allocation2 + $0x10] sm:$0xff]
      %v3454 = vld [vmem:[#allocation2 + $0x18] sm:$0xff]
      %v3455 = vld [vmem:[#allocation2 + $0x20] sm:$0xff]
      %v3456 = vld [vmem:[#allocation2 + $0x28] sm:$0xff]
      %v3457 = vld [vmem:[#allocation2 + $0x30] sm:$0xff]
      %v3458 = vld [vmem:[#allocation2 + $0x38] sm:$0xff]
      %v3459 = vld [vmem:[#allocation2 + $0x40] sm:$0xff]
      %s3460 = scalar_lea.vmem %s3, 12
      %v3461 = vld [vmem:[%s3460] sm:$0xf]
      %v3463 = vsel %vm490, %v3452, 0
      %v3466 = vsel %vm490, %v3453, 0
      %v3469 = vsel %vm490, %v3454, 0
      %v3472 = vsel %vm490, %v3455, 0
      %v3475 = vsel %vm490, %v3456, 0
      %v3478 = vsel %vm490, %v3457, 0
      %v3481 = vsel %vm490, %v3458, 0
      %v3484 = vsel %vm490, %v3459, 0
      %v3487 = vsel %vm2874, %v3461, 0
      %3489 = vmatprep.subr.bf16.mxu0 0
      %3490 = vmatpush1.bf16.msra.mxu0 %v3487
      %3491 = vmatprep.subr.bf16.mxu0 0
      %3492 = vmatpush1.bf16.msra.mxu0 0
      %3493 = vmatprep.subr.bf16.mxu0 0
      %3494 = vmatpush1.bf16.msra.mxu0 0
      %3495 = vmatprep.subr.bf16.mxu0 0
      %3496 = vmatpush1.bf16.msra.mxu0 0
      %3497 = vmatprep.subr.bf16.mxu0 0
      %3498 = vmatpush1.bf16.msra.mxu0 0
      %3499 = vmatprep.subr.bf16.mxu0 0
      %3500 = vmatpush1.bf16.msra.mxu0 0
      %3501 = vmatprep.subr.bf16.mxu0 0
      %3502 = vmatpush1.bf16.msra.mxu0 0
      %3503 = vmatprep.subr.bf16.mxu0 0
      %3504 = vmatpush1.bf16.msra.mxu0 0
      %3505 = vmatprep.subr.bf16.mxu0 0
      %3506 = vmatpush1.bf16.msra.mxu0 0
      %3507 = vmatprep.subr.bf16.mxu0 0
      %3508 = vmatpush1.bf16.msra.mxu0 0
      %3509 = vmatprep.subr.bf16.mxu0 0
      %3510 = vmatpush1.bf16.msra.mxu0 0
      %3511 = vmatprep.subr.bf16.mxu0 0
      %3512 = vmatpush1.bf16.msra.mxu0 0
      %3513 = vmatprep.subr.bf16.mxu0 0
      %3514 = vmatpush1.bf16.msra.mxu0 0
      %3515 = vmatprep.subr.bf16.mxu0 0
      %3516 = vmatpush1.bf16.msra.mxu0 0
      %3517 = vmatprep.subr.bf16.mxu0 0
      %3518 = vmatpush1.bf16.msra.mxu0 0
      %3519 = vmatprep.subr.bf16.mxu0 0
      %3520 = vmatpush1.bf16.msra.mxu0 0
      %3521 = vmatprep.mubr.bf16.mxu0 0
      %3522 = vmatmul.mubr.bf16.gmra.mrb[0].mxu0 %v3463
      %v3523 = vpop.f32.mrb[0].mxu0
      %v3524 = vadd.f32 0.0, %v3523
      %v3525 = vpop.f32.mrb[0].mxu0
      %v3526 = vpop.f32.mrb[0].mxu0
      %v3527 = vadd.f32 0.0, %v3526
      %v3528 = vpop.f32.mrb[0].mxu0
      %3529 = vmatprep.mubr.bf16.mxu0 0
      %3530 = vmatmul.mubr.bf16.gmra.mrb[0].mxu0 %v3466
      %v3531 = vpop.f32.mrb[0].mxu0
      %v3532 = vadd.f32 0.0, %v3531
      %v3533 = vpop.f32.mrb[0].mxu0
      %v3534 = vpop.f32.mrb[0].mxu0
      %v3535 = vadd.f32 0.0, %v3534
      %v3536 = vpop.f32.mrb[0].mxu0
      %3537 = vmatprep.mubr.bf16.mxu0 0
      %3538 = vmatmul.mubr.bf16.gmra.mrb[0].mxu0 %v3469
      %v3539 = vpop.f32.mrb[0].mxu0
      %v3540 = vadd.f32 0.0, %v3539
      %v3541 = vpop.f32.mrb[0].mxu0
      %v3542 = vpop.f32.mrb[0].mxu0
      %v3543 = vadd.f32 0.0, %v3542
      %v3544 = vpop.f32.mrb[0].mxu0
      %3545 = vmatprep.mubr.bf16.mxu0 0
      %3546 = vmatmul.mubr.bf16.gmra.mrb[0].mxu0 %v3472
      %v3547 = vpop.f32.mrb[0].mxu0
      %v3548 = vadd.f32 0.0, %v3547
      %v3549 = vpop.f32.mrb[0].mxu0
      %v3550 = vpop.f32.mrb[0].mxu0
      %v3551 = vadd.f32 0.0, %v3550
      %v3552 = vpop.f32.mrb[0].mxu0
      %3553 = vmatprep.mubr.bf16.mxu0 0
      %3554 = vmatmul.mubr.bf16.gmra.mrb[0].mxu0 %v3475
      %v3555 = vpop.f32.mrb[0].mxu0
      %v3556 = vadd.f32 0.0, %v3555
      %v3557 = vpop.f32.mrb[0].mxu0
      %v3558 = vpop.f32.mrb[0].mxu0
      %v3559 = vadd.f32 0.0, %v3558
      %v3560 = vpop.f32.mrb[0].mxu0
      %3561 = vmatprep.mubr.bf16.mxu0 0
      %3562 = vmatmul.mubr.bf16.gmra.mrb[0].mxu0 %v3478
      %v3563 = vpop.f32.mrb[0].mxu0
      %v3564 = vadd.f32 0.0, %v3563
      %v3565 = vpop.f32.mrb[0].mxu0
      %v3566 = vpop.f32.mrb[0].mxu0
      %v3567 = vadd.f32 0.0, %v3566
      %v3568 = vpop.f32.mrb[0].mxu0
      %3569 = vmatprep.mubr.bf16.mxu0 0
      %3570 = vmatmul.mubr.bf16.gmra.mrb[0].mxu0 %v3481
      %v3571 = vpop.f32.mrb[0].mxu0
      %v3572 = vadd.f32 0.0, %v3571
      %v3573 = vpop.f32.mrb[0].mxu0
      %v3574 = vpop.f32.mrb[0].mxu0
      %v3575 = vadd.f32 0.0, %v3574
      %v3576 = vpop.f32.mrb[0].mxu0
      %3577 = vmatprep.mubr.bf16.mxu0 0
      %3578 = vmatmul.mubr.bf16.gmra.mrb[0].mxu0 %v3484
      %v3579 = vpop.f32.mrb[0].mxu0
      %v3580 = vadd.f32 0.0, %v3579
      %v3581 = vpop.f32.mrb[0].mxu0
      %v3582 = vpop.f32.mrb[0].mxu0
      %v3583 = vadd.f32 0.0, %v3582
      %v3584 = vpop.f32.mrb[0].mxu0
      %3585 = vdwg.mxu0
      %v3586 = vld [vmem:[#allocation4] sm:$0xff]
      %v3587 = vld [vmem:[#allocation4 + $0x8] sm:$0xff]
      %v3588 = vld [vmem:[#allocation4 + $0x10] sm:$0xff]
      %v3589 = vld [vmem:[#allocation4 + $0x18] sm:$0xff]
      %v3590 = vld [vmem:[#allocation4 + $0x20] sm:$0xff]
      %v3591 = vld [vmem:[#allocation4 + $0x28] sm:$0xff]
      %v3592 = vld [vmem:[#allocation4 + $0x30] sm:$0xff]
      %v3593 = vld [vmem:[#allocation4 + $0x38] sm:$0xff]
      %v3594 = vld [vmem:[#allocation4 + $0x40] sm:$0xff]
      %v3595 = vld [vmem:[#allocation4 + $0x48] sm:$0xff]
      %v3596 = vld [vmem:[#allocation4 + $0x50] sm:$0xff]
      %v3597 = vld [vmem:[#allocation4 + $0x58] sm:$0xff]
      %v3598 = vld [vmem:[#allocation4 + $0x60] sm:$0xff]
      %v3599 = vld [vmem:[#allocation4 + $0x68] sm:$0xff]
      %v3600 = vld [vmem:[#allocation4 + $0x70] sm:$0xff]
      %v3601 = vld [vmem:[#allocation4 + $0x78] sm:$0xff]
      %v3602 = vadd.f32 %v3586, %v3524
      %v3603 = vadd.f32 %v3587, %v3527
      %v3604 = vadd.f32 %v3588, %v3532
      %v3605 = vadd.f32 %v3589, %v3535
      %v3606 = vadd.f32 %v3590, %v3540
      %v3607 = vadd.f32 %v3591, %v3543
      %v3608 = vadd.f32 %v3592, %v3548
      %v3609 = vadd.f32 %v3593, %v3551
      %v3610 = vadd.f32 %v3594, %v3556
      %v3611 = vadd.f32 %v3595, %v3559
      %v3612 = vadd.f32 %v3596, %v3564
      %v3613 = vadd.f32 %v3597, %v3567
      %v3614 = vadd.f32 %v3598, %v3572
      %v3615 = vadd.f32 %v3599, %v3575
      %v3616 = vadd.f32 %v3600, %v3580
      %v3617 = vadd.f32 %v3601, %v3583
      %3618 = vst.msk [vmem:[#allocation4] sm:$0xff] %vm490, %v3602
      %3619 = vst.msk [vmem:[#allocation4 + $0x8] sm:$0xff] %vm490, %v3603
      %3620 = vst.msk [vmem:[#allocation4 + $0x10] sm:$0xff] %vm490, %v3604
      %3621 = vst.msk [vmem:[#allocation4 + $0x18] sm:$0xff] %vm490, %v3605
      %3622 = vst.msk [vmem:[#allocation4 + $0x20] sm:$0xff] %vm490, %v3606
      %3623 = vst.msk [vmem:[#allocation4 + $0x28] sm:$0xff] %vm490, %v3607
      %3624 = vst.msk [vmem:[#allocation4 + $0x30] sm:$0xff] %vm490, %v3608
      %3625 = vst.msk [vmem:[#allocation4 + $0x38] sm:$0xff] %vm490, %v3609
      %3626 = vst.msk [vmem:[#allocation4 + $0x40] sm:$0xff] %vm490, %v3610
      %3627 = vst.msk [vmem:[#allocation4 + $0x48] sm:$0xff] %vm490, %v3611
      %3628 = vst.msk [vmem:[#allocation4 + $0x50] sm:$0xff] %vm490, %v3612
      %3629 = vst.msk [vmem:[#allocation4 + $0x58] sm:$0xff] %vm490, %v3613
      %3630 = vst.msk [vmem:[#allocation4 + $0x60] sm:$0xff] %vm490, %v3614
      %3631 = vst.msk [vmem:[#allocation4 + $0x68] sm:$0xff] %vm490, %v3615
      %3632 = vst.msk [vmem:[#allocation4 + $0x70] sm:$0xff] %vm490, %v3616
      %3633 = vst.msk [vmem:[#allocation4 + $0x78] sm:$0xff] %vm490, %v3617
      %v3634 = vld [vmem:[#allocation2 + $0x8] sm:$0xff]
      %v3635 = vld [vmem:[#allocation2 + $0x10] sm:$0xff]
      %v3636 = vld [vmem:[#allocation2 + $0x18] sm:$0xff]
      %v3637 = vld [vmem:[#allocation2 + $0x20] sm:$0xff]
      %v3638 = vld [vmem:[#allocation2 + $0x28] sm:$0xff]
      %v3639 = vld [vmem:[#allocation2 + $0x30] sm:$0xff]
      %v3640 = vld [vmem:[#allocation2 + $0x38] sm:$0xff]
      %v3641 = vld [vmem:[#allocation2 + $0x40] sm:$0xff]
      %v3642 = vld [vmem:[#allocation2 + $0x48] sm:$0x1]
      %s3643 = scalar_lea.vmem %s3, 16
      %v3644 = vld [vmem:[%s3643] sm:$0xf]
      %v3646 = vshrl.u32 %v3634, 16
      %v3648 = vshll.u32 %v3634, 16
      %v3650 = vrot.slane %v3648, 1
      %v3651 = vor.u32 %v3646, %v3650
      %v3653 = vshll.u32 %v3635, 16
      %v3655 = vrot.slane %v3653, 1
      %v3656 = vsel %vm800, %v3651, %v3655
      %v3657 = vshrl.u32 %v3635, 16
      %v3659 = vor.u32 %v3657, %v3655
      %v3661 = vshll.u32 %v3636, 16
      %v3663 = vrot.slane %v3661, 1
      %v3664 = vsel %vm800, %v3659, %v3663
      %v3665 = vshrl.u32 %v3636, 16
      %v3667 = vor.u32 %v3665, %v3663
      %v3669 = vshll.u32 %v3637, 16
      %v3671 = vrot.slane %v3669, 1
      %v3672 = vsel %vm800, %v3667, %v3671
      %v3673 = vshrl.u32 %v3637, 16
      %v3675 = vor.u32 %v3673, %v3671
      %v3677 = vshll.u32 %v3638, 16
      %v3679 = vrot.slane %v3677, 1
      %v3680 = vsel %vm800, %v3675, %v3679
      %v3681 = vshrl.u32 %v3638, 16
      %v3683 = vor.u32 %v3681, %v3679
      %v3685 = vshll.u32 %v3639, 16
      %v3687 = vrot.slane %v3685, 1
      %v3688 = vsel %vm800, %v3683, %v3687
      %v3689 = vshrl.u32 %v3639, 16
      %v3691 = vor.u32 %v3689, %v3687
      %v3693 = vshll.u32 %v3640, 16
      %v3695 = vrot.slane %v3693, 1
      %v3696 = vsel %vm800, %v3691, %v3695
      %v3697 = vshrl.u32 %v3640, 16
      %v3699 = vor.u32 %v3697, %v3695
      %v3701 = vshll.u32 %v3641, 16
      %v3703 = vrot.slane %v3701, 1
      %v3704 = vsel %vm800, %v3699, %v3703
      %v3705 = vshrl.u32 %v3641, 16
      %v3707 = vor.u32 %v3705, %v3703
      %v3709 = vshll.u32 %v3642, 16
      %v3711 = vrot.slane %v3709, 1
      %v3712 = vsel %vm800, %v3707, %v3711
      %v3714 = vsel %vm490, %v3656, 0
      %v3717 = vsel %vm490, %v3664, 0
      %v3720 = vsel %vm490, %v3672, 0
      %v3723 = vsel %vm490, %v3680, 0
      %v3726 = vsel %vm490, %v3688, 0
      %v3729 = vsel %vm490, %v3696, 0
      %v3732 = vsel %vm490, %v3704, 0
      %v3735 = vsel %vm490, %v3712, 0
      %v3738 = vsel %vm2874, %v3644, 0
      %3740 = vmatprep.subr.bf16.mxu0 0
      %3741 = vmatpush1.bf16.msra.mxu0 %v3738
      %3742 = vmatprep.subr.bf16.mxu0 0
      %3743 = vmatpush1.bf16.msra.mxu0 0
      %3744 = vmatprep.subr.bf16.mxu0 0
      %3745 = vmatpush1.bf16.msra.mxu0 0
      %3746 = vmatprep.subr.bf16.mxu0 0
      %3747 = vmatpush1.bf16.msra.mxu0 0
      %3748 = vmatprep.subr.bf16.mxu0 0
      %3749 = vmatpush1.bf16.msra.mxu0 0
      %3750 = vmatprep.subr.bf16.mxu0 0
      %3751 = vmatpush1.bf16.msra.mxu0 0
      %3752 = vmatprep.subr.bf16.mxu0 0
      %3753 = vmatpush1.bf16.msra.mxu0 0
      %3754 = vmatprep.subr.bf16.mxu0 0
      %3755 = vmatpush1.bf16.msra.mxu0 0
      %3756 = vmatprep.subr.bf16.mxu0 0
      %3757 = vmatpush1.bf16.msra.mxu0 0
      %3758 = vmatprep.subr.bf16.mxu0 0
      %3759 = vmatpush1.bf16.msra.mxu0 0
      %3760 = vmatprep.subr.bf16.mxu0 0
      %3761 = vmatpush1.bf16.msra.mxu0 0
      %3762 = vmatprep.subr.bf16.mxu0 0
      %3763 = vmatpush1.bf16.msra.mxu0 0
      %3764 = vmatprep.subr.bf16.mxu0 0
      %3765 = vmatpush1.bf16.msra.mxu0 0
      %3766 = vmatprep.subr.bf16.mxu0 0
      %3767 = vmatpush1.bf16.msra.mxu0 0
      %3768 = vmatprep.subr.bf16.mxu0 0
      %3769 = vmatpush1.bf16.msra.mxu0 0
      %3770 = vmatprep.subr.bf16.mxu0 0
      %3771 = vmatpush1.bf16.msra.mxu0 0
      %3772 = vmatprep.mubr.bf16.mxu0 0
      %3773 = vmatmul.mubr.bf16.gmra.mrb[0].mxu0 %v3714
      %v3774 = vpop.f32.mrb[0].mxu0
      %v3775 = vadd.f32 0.0, %v3774
      %v3776 = vpop.f32.mrb[0].mxu0
      %v3777 = vpop.f32.mrb[0].mxu0
      %v3778 = vadd.f32 0.0, %v3777
      %v3779 = vpop.f32.mrb[0].mxu0
      %3780 = vmatprep.mubr.bf16.mxu0 0
      %3781 = vmatmul.mubr.bf16.gmra.mrb[0].mxu0 %v3717
      %v3782 = vpop.f32.mrb[0].mxu0
      %v3783 = vadd.f32 0.0, %v3782
      %v3784 = vpop.f32.mrb[0].mxu0
      %v3785 = vpop.f32.mrb[0].mxu0
      %v3786 = vadd.f32 0.0, %v3785
      %v3787 = vpop.f32.mrb[0].mxu0
      %3788 = vmatprep.mubr.bf16.mxu0 0
      %3789 = vmatmul.mubr.bf16.gmra.mrb[0].mxu0 %v3720
      %v3790 = vpop.f32.mrb[0].mxu0
      %v3791 = vadd.f32 0.0, %v3790
      %v3792 = vpop.f32.mrb[0].mxu0
      %v3793 = vpop.f32.mrb[0].mxu0
      %v3794 = vadd.f32 0.0, %v3793
      %v3795 = vpop.f32.mrb[0].mxu0
      %3796 = vmatprep.mubr.bf16.mxu0 0
      %3797 = vmatmul.mubr.bf16.gmra.mrb[0].mxu0 %v3723
      %v3798 = vpop.f32.mrb[0].mxu0
      %v3799 = vadd.f32 0.0, %v3798
      %v3800 = vpop.f32.mrb[0].mxu0
      %v3801 = vpop.f32.mrb[0].mxu0
      %v3802 = vadd.f32 0.0, %v3801
      %v3803 = vpop.f32.mrb[0].mxu0
      %3804 = vmatprep.mubr.bf16.mxu0 0
      %3805 = vmatmul.mubr.bf16.gmra.mrb[0].mxu0 %v3726
      %v3806 = vpop.f32.mrb[0].mxu0
      %v3807 = vadd.f32 0.0, %v3806
      %v3808 = vpop.f32.mrb[0].mxu0
      %v3809 = vpop.f32.mrb[0].mxu0
      %v3810 = vadd.f32 0.0, %v3809
      %v3811 = vpop.f32.mrb[0].mxu0
      %3812 = vmatprep.mubr.bf16.mxu0 0
      %3813 = vmatmul.mubr.bf16.gmra.mrb[0].mxu0 %v3729
      %v3814 = vpop.f32.mrb[0].mxu0
      %v3815 = vadd.f32 0.0, %v3814
      %v3816 = vpop.f32.mrb[0].mxu0
      %v3817 = vpop.f32.mrb[0].mxu0
      %v3818 = vadd.f32 0.0, %v3817
      %v3819 = vpop.f32.mrb[0].mxu0
      %3820 = vmatprep.mubr.bf16.mxu0 0
      %3821 = vmatmul.mubr.bf16.gmra.mrb[0].mxu0 %v3732
      %v3822 = vpop.f32.mrb[0].mxu0
      %v3823 = vadd.f32 0.0, %v3822
      %v3824 = vpop.f32.mrb[0].mxu0
      %v3825 = vpop.f32.mrb[0].mxu0
      %v3826 = vadd.f32 0.0, %v3825
      %v3827 = vpop.f32.mrb[0].mxu0
      %3828 = vmatprep.mubr.bf16.mxu0 0
      %3829 = vmatmul.mubr.bf16.gmra.mrb[0].mxu0 %v3735
      %v3830 = vpop.f32.mrb[0].mxu0
      %v3831 = vadd.f32 0.0, %v3830
      %v3832 = vpop.f32.mrb[0].mxu0
      %v3833 = vpop.f32.mrb[0].mxu0
      %v3834 = vadd.f32 0.0, %v3833
      %v3835 = vpop.f32.mrb[0].mxu0
      %3836 = vdwg.mxu0
      %v3837 = vld [vmem:[#allocation4] sm:$0xff]
      %v3838 = vld [vmem:[#allocation4 + $0x8] sm:$0xff]
      %v3839 = vld [vmem:[#allocation4 + $0x10] sm:$0xff]
      %v3840 = vld [vmem:[#allocation4 + $0x18] sm:$0xff]
      %v3841 = vld [vmem:[#allocation4 + $0x20] sm:$0xff]
      %v3842 = vld [vmem:[#allocation4 + $0x28] sm:$0xff]
      %v3843 = vld [vmem:[#allocation4 + $0x30] sm:$0xff]
      %v3844 = vld [vmem:[#allocation4 + $0x38] sm:$0xff]
      %v3845 = vld [vmem:[#allocation4 + $0x40] sm:$0xff]
      %v3846 = vld [vmem:[#allocation4 + $0x48] sm:$0xff]
      %v3847 = vld [vmem:[#allocation4 + $0x50] sm:$0xff]
      %v3848 = vld [vmem:[#allocation4 + $0x58] sm:$0xff]
      %v3849 = vld [vmem:[#allocation4 + $0x60] sm:$0xff]
      %v3850 = vld [vmem:[#allocation4 + $0x68] sm:$0xff]
      %v3851 = vld [vmem:[#allocation4 + $0x70] sm:$0xff]
      %v3852 = vld [vmem:[#allocation4 + $0x78] sm:$0xff]
      %v3853 = vadd.f32 %v3837, %v3775
      %v3854 = vadd.f32 %v3838, %v3778
      %v3855 = vadd.f32 %v3839, %v3783
      %v3856 = vadd.f32 %v3840, %v3786
      %v3857 = vadd.f32 %v3841, %v3791
      %v3858 = vadd.f32 %v3842, %v3794
      %v3859 = vadd.f32 %v3843, %v3799
      %v3860 = vadd.f32 %v3844, %v3802
      %v3861 = vadd.f32 %v3845, %v3807
      %v3862 = vadd.f32 %v3846, %v3810
      %v3863 = vadd.f32 %v3847, %v3815
      %v3864 = vadd.f32 %v3848, %v3818
      %v3865 = vadd.f32 %v3849, %v3823
      %v3866 = vadd.f32 %v3850, %v3826
      %v3867 = vadd.f32 %v3851, %v3831
      %v3868 = vadd.f32 %v3852, %v3834
      %3869 = vst.msk [vmem:[#allocation4] sm:$0xff] %vm490, %v3853
      %3870 = vst.msk [vmem:[#allocation4 + $0x8] sm:$0xff] %vm490, %v3854
      %3871 = vst.msk [vmem:[#allocation4 + $0x10] sm:$0xff] %vm490, %v3855
      %3872 = vst.msk [vmem:[#allocation4 + $0x18] sm:$0xff] %vm490, %v3856
      %3873 = vst.msk [vmem:[#allocation4 + $0x20] sm:$0xff] %vm490, %v3857
      %3874 = vst.msk [vmem:[#allocation4 + $0x28] sm:$0xff] %vm490, %v3858
      %3875 = vst.msk [vmem:[#allocation4 + $0x30] sm:$0xff] %vm490, %v3859
      %3876 = vst.msk [vmem:[#allocation4 + $0x38] sm:$0xff] %vm490, %v3860
      %3877 = vst.msk [vmem:[#allocation4 + $0x40] sm:$0xff] %vm490, %v3861
      %3878 = vst.msk [vmem:[#allocation4 + $0x48] sm:$0xff] %vm490, %v3862
      %3879 = vst.msk [vmem:[#allocation4 + $0x50] sm:$0xff] %vm490, %v3863
      %3880 = vst.msk [vmem:[#allocation4 + $0x58] sm:$0xff] %vm490, %v3864
      %3881 = vst.msk [vmem:[#allocation4 + $0x60] sm:$0xff] %vm490, %v3865
      %3882 = vst.msk [vmem:[#allocation4 + $0x68] sm:$0xff] %vm490, %v3866
      %3883 = vst.msk [vmem:[#allocation4 + $0x70] sm:$0xff] %vm490, %v3867
      %3884 = vst.msk [vmem:[#allocation4 + $0x78] sm:$0xff] %vm490, %v3868
      %v3885 = vld [vmem:[#allocation2 + $0x8] sm:$0xfe]
      %v3886 = vld [vmem:[#allocation2 + $0x10] sm:$0xff]
      %v3887 = vld [vmem:[#allocation2 + $0x18] sm:$0xff]
      %v3888 = vld [vmem:[#allocation2 + $0x20] sm:$0xff]
      %v3889 = vld [vmem:[#allocation2 + $0x28] sm:$0xff]
      %v3890 = vld [vmem:[#allocation2 + $0x30] sm:$0xff]
      %v3891 = vld [vmem:[#allocation2 + $0x38] sm:$0xff]
      %v3892 = vld [vmem:[#allocation2 + $0x40] sm:$0xff]
      %v3893 = vld [vmem:[#allocation2 + $0x48] sm:$0x1]
      %s3894 = scalar_lea.vmem %s3, 20
      %v3895 = vld [vmem:[%s3894] sm:$0xf]
      %v3905 = vrot.slane %v3885, 1
      %v3906 = vrot.slane %v3886, 1
      %v3907 = vsel %vm3262, %v3905, %v3906
      %v3908 = vrot.slane %v3887, 1
      %v3909 = vsel %vm3262, %v3906, %v3908
      %v3910 = vrot.slane %v3888, 1
      %v3911 = vsel %vm3262, %v3908, %v3910
      %v3912 = vrot.slane %v3889, 1
      %v3913 = vsel %vm3262, %v3910, %v3912
      %v3914 = vrot.slane %v3890, 1
      %v3915 = vsel %vm3262, %v3912, %v3914
      %v3916 = vrot.slane %v3891, 1
      %v3917 = vsel %vm3262, %v3914, %v3916
      %v3918 = vrot.slane %v3892, 1
      %v3919 = vsel %vm3262, %v3916, %v3918
      %v3920 = vrot.slane %v3893, 1
      %v3921 = vsel %vm3262, %v3918, %v3920
      %v3923 = vsel %vm490, %v3907, 0
      %v3926 = vsel %vm490, %v3909, 0
      %v3929 = vsel %vm490, %v3911, 0
      %v3932 = vsel %vm490, %v3913, 0
      %v3935 = vsel %vm490, %v3915, 0
      %v3938 = vsel %vm490, %v3917, 0
      %v3941 = vsel %vm490, %v3919, 0
      %v3944 = vsel %vm490, %v3921, 0
      %v3947 = vsel %vm2874, %v3895, 0
      %3949 = vmatprep.subr.bf16.mxu0 0
      %3950 = vmatpush1.bf16.msra.mxu0 %v3947
      %3951 = vmatprep.subr.bf16.mxu0 0
      %3952 = vmatpush1.bf16.msra.mxu0 0
      %3953 = vmatprep.subr.bf16.mxu0 0
      %3954 = vmatpush1.bf16.msra.mxu0 0
      %3955 = vmatprep.subr.bf16.mxu0 0
      %3956 = vmatpush1.bf16.msra.mxu0 0
      %3957 = vmatprep.subr.bf16.mxu0 0
      %3958 = vmatpush1.bf16.msra.mxu0 0
      %3959 = vmatprep.subr.bf16.mxu0 0
      %3960 = vmatpush1.bf16.msra.mxu0 0
      %3961 = vmatprep.subr.bf16.mxu0 0
      %3962 = vmatpush1.bf16.msra.mxu0 0
      %3963 = vmatprep.subr.bf16.mxu0 0
      %3964 = vmatpush1.bf16.msra.mxu0 0
      %3965 = vmatprep.subr.bf16.mxu0 0
      %3966 = vmatpush1.bf16.msra.mxu0 0
      %3967 = vmatprep.subr.bf16.mxu0 0
      %3968 = vmatpush1.bf16.msra.mxu0 0
      %3969 = vmatprep.subr.bf16.mxu0 0
      %3970 = vmatpush1.bf16.msra.mxu0 0
      %3971 = vmatprep.subr.bf16.mxu0 0
      %3972 = vmatpush1.bf16.msra.mxu0 0
      %3973 = vmatprep.subr.bf16.mxu0 0
      %3974 = vmatpush1.bf16.msra.mxu0 0
      %3975 = vmatprep.subr.bf16.mxu0 0
      %3976 = vmatpush1.bf16.msra.mxu0 0
      %3977 = vmatprep.subr.bf16.mxu0 0
      %3978 = vmatpush1.bf16.msra.mxu0 0
      %3979 = vmatprep.subr.bf16.mxu0 0
      %3980 = vmatpush1.bf16.msra.mxu0 0
      %3981 = vmatprep.mubr.bf16.mxu0 0
      %3982 = vmatmul.mubr.bf16.gmra.mrb[0].mxu0 %v3923
      %v3983 = vpop.f32.mrb[0].mxu0
      %v3984 = vadd.f32 0.0, %v3983
      %v3985 = vpop.f32.mrb[0].mxu0
      %v3986 = vpop.f32.mrb[0].mxu0
      %v3987 = vadd.f32 0.0, %v3986
      %v3988 = vpop.f32.mrb[0].mxu0
      %3989 = vmatprep.mubr.bf16.mxu0 0
      %3990 = vmatmul.mubr.bf16.gmra.mrb[0].mxu0 %v3926
      %v3991 = vpop.f32.mrb[0].mxu0
      %v3992 = vadd.f32 0.0, %v3991
      %v3993 = vpop.f32.mrb[0].mxu0
      %v3994 = vpop.f32.mrb[0].mxu0
      %v3995 = vadd.f32 0.0, %v3994
      %v3996 = vpop.f32.mrb[0].mxu0
      %3997 = vmatprep.mubr.bf16.mxu0 0
      %3998 = vmatmul.mubr.bf16.gmra.mrb[0].mxu0 %v3929
      %v3999 = vpop.f32.mrb[0].mxu0
      %v4000 = vadd.f32 0.0, %v3999
      %v4001 = vpop.f32.mrb[0].mxu0
      %v4002 = vpop.f32.mrb[0].mxu0
      %v4003 = vadd.f32 0.0, %v4002
      %v4004 = vpop.f32.mrb[0].mxu0
      %4005 = vmatprep.mubr.bf16.mxu0 0
      %4006 = vmatmul.mubr.bf16.gmra.mrb[0].mxu0 %v3932
      %v4007 = vpop.f32.mrb[0].mxu0
      %v4008 = vadd.f32 0.0, %v4007
      %v4009 = vpop.f32.mrb[0].mxu0
      %v4010 = vpop.f32.mrb[0].mxu0
      %v4011 = vadd.f32 0.0, %v4010
      %v4012 = vpop.f32.mrb[0].mxu0
      %4013 = vmatprep.mubr.bf16.mxu0 0
      %4014 = vmatmul.mubr.bf16.gmra.mrb[0].mxu0 %v3935
      %v4015 = vpop.f32.mrb[0].mxu0
      %v4016 = vadd.f32 0.0, %v4015
      %v4017 = vpop.f32.mrb[0].mxu0
      %v4018 = vpop.f32.mrb[0].mxu0
      %v4019 = vadd.f32 0.0, %v4018
      %v4020 = vpop.f32.mrb[0].mxu0
      %4021 = vmatprep.mubr.bf16.mxu0 0
      %4022 = vmatmul.mubr.bf16.gmra.mrb[0].mxu0 %v3938
      %v4023 = vpop.f32.mrb[0].mxu0
      %v4024 = vadd.f32 0.0, %v4023
      %v4025 = vpop.f32.mrb[0].mxu0
      %v4026 = vpop.f32.mrb[0].mxu0
      %v4027 = vadd.f32 0.0, %v4026
      %v4028 = vpop.f32.mrb[0].mxu0
      %4029 = vmatprep.mubr.bf16.mxu0 0
      %4030 = vmatmul.mubr.bf16.gmra.mrb[0].mxu0 %v3941
      %v4031 = vpop.f32.mrb[0].mxu0
      %v4032 = vadd.f32 0.0, %v4031
      %v4033 = vpop.f32.mrb[0].mxu0
      %v4034 = vpop.f32.mrb[0].mxu0
      %v4035 = vadd.f32 0.0, %v4034
      %v4036 = vpop.f32.mrb[0].mxu0
      %4037 = vmatprep.mubr.bf16.mxu0 0
      %4038 = vmatmul.mubr.bf16.gmra.mrb[0].mxu0 %v3944
      %v4039 = vpop.f32.mrb[0].mxu0
      %v4040 = vadd.f32 0.0, %v4039
      %v4041 = vpop.f32.mrb[0].mxu0
      %v4042 = vpop.f32.mrb[0].mxu0
      %v4043 = vadd.f32 0.0, %v4042
      %v4044 = vpop.f32.mrb[0].mxu0
      %4045 = vdwg.mxu0
      %v4046 = vld [vmem:[#allocation4] sm:$0xff]
      %v4047 = vld [vmem:[#allocation4 + $0x8] sm:$0xff]
      %v4048 = vld [vmem:[#allocation4 + $0x10] sm:$0xff]
      %v4049 = vld [vmem:[#allocation4 + $0x18] sm:$0xff]
      %v4050 = vld [vmem:[#allocation4 + $0x20] sm:$0xff]
      %v4051 = vld [vmem:[#allocation4 + $0x28] sm:$0xff]
      %v4052 = vld [vmem:[#allocation4 + $0x30] sm:$0xff]
      %v4053 = vld [vmem:[#allocation4 + $0x38] sm:$0xff]
      %v4054 = vld [vmem:[#allocation4 + $0x40] sm:$0xff]
      %v4055 = vld [vmem:[#allocation4 + $0x48] sm:$0xff]
      %v4056 = vld [vmem:[#allocation4 + $0x50] sm:$0xff]
      %v4057 = vld [vmem:[#allocation4 + $0x58] sm:$0xff]
      %v4058 = vld [vmem:[#allocation4 + $0x60] sm:$0xff]
      %v4059 = vld [vmem:[#allocation4 + $0x68] sm:$0xff]
      %v4060 = vld [vmem:[#allocation4 + $0x70] sm:$0xff]
      %v4061 = vld [vmem:[#allocation4 + $0x78] sm:$0xff]
      %v4062 = vadd.f32 %v4046, %v3984
      %v4063 = vadd.f32 %v4047, %v3987
      %v4064 = vadd.f32 %v4048, %v3992
      %v4065 = vadd.f32 %v4049, %v3995
      %v4066 = vadd.f32 %v4050, %v4000
      %v4067 = vadd.f32 %v4051, %v4003
      %v4068 = vadd.f32 %v4052, %v4008
      %v4069 = vadd.f32 %v4053, %v4011
      %v4070 = vadd.f32 %v4054, %v4016
      %v4071 = vadd.f32 %v4055, %v4019
      %v4072 = vadd.f32 %v4056, %v4024
      %v4073 = vadd.f32 %v4057, %v4027
      %v4074 = vadd.f32 %v4058, %v4032
      %v4075 = vadd.f32 %v4059, %v4035
      %v4076 = vadd.f32 %v4060, %v4040
      %v4077 = vadd.f32 %v4061, %v4043
      %4078 = vst.msk [vmem:[#allocation4] sm:$0xff] %vm490, %v4062
      %4079 = vst.msk [vmem:[#allocation4 + $0x8] sm:$0xff] %vm490, %v4063
      %4080 = vst.msk [vmem:[#allocation4 + $0x10] sm:$0xff] %vm490, %v4064
      %4081 = vst.msk [vmem:[#allocation4 + $0x18] sm:$0xff] %vm490, %v4065
      %4082 = vst.msk [vmem:[#allocation4 + $0x20] sm:$0xff] %vm490, %v4066
      %4083 = vst.msk [vmem:[#allocation4 + $0x28] sm:$0xff] %vm490, %v4067
      %4084 = vst.msk [vmem:[#allocation4 + $0x30] sm:$0xff] %vm490, %v4068
      %4085 = vst.msk [vmem:[#allocation4 + $0x38] sm:$0xff] %vm490, %v4069
      %4086 = vst.msk [vmem:[#allocation4 + $0x40] sm:$0xff] %vm490, %v4070
      %4087 = vst.msk [vmem:[#allocation4 + $0x48] sm:$0xff] %vm490, %v4071
      %4088 = vst.msk [vmem:[#allocation4 + $0x50] sm:$0xff] %vm490, %v4072
      %4089 = vst.msk [vmem:[#allocation4 + $0x58] sm:$0xff] %vm490, %v4073
      %4090 = vst.msk [vmem:[#allocation4 + $0x60] sm:$0xff] %vm490, %v4074
      %4091 = vst.msk [vmem:[#allocation4 + $0x68] sm:$0xff] %vm490, %v4075
      %4092 = vst.msk [vmem:[#allocation4 + $0x70] sm:$0xff] %vm490, %v4076
      %4093 = vst.msk [vmem:[#allocation4 + $0x78] sm:$0xff] %vm490, %v4077
      %v4094 = vld [vmem:[#allocation2 + $0x10] sm:$0xff]
      %v4095 = vld [vmem:[#allocation2 + $0x18] sm:$0xff]
      %v4096 = vld [vmem:[#allocation2 + $0x20] sm:$0xff]
      %v4097 = vld [vmem:[#allocation2 + $0x28] sm:$0xff]
      %v4098 = vld [vmem:[#allocation2 + $0x30] sm:$0xff]
      %v4099 = vld [vmem:[#allocation2 + $0x38] sm:$0xff]
      %v4100 = vld [vmem:[#allocation2 + $0x40] sm:$0xff]
      %v4101 = vld [vmem:[#allocation2 + $0x48] sm:$0xff]
      %s4102 = scalar_lea.vmem %s3, 24
      %v4103 = vld [vmem:[%s4102] sm:$0xf]
      %v4105 = vsel %vm490, %v4094, 0
      %v4108 = vsel %vm490, %v4095, 0
      %v4111 = vsel %vm490, %v4096, 0
      %v4114 = vsel %vm490, %v4097, 0
      %v4117 = vsel %vm490, %v4098, 0
      %v4120 = vsel %vm490, %v4099, 0
      %v4123 = vsel %vm490, %v4100, 0
      %v4126 = vsel %vm490, %v4101, 0
      %v4129 = vsel %vm2874, %v4103, 0
      %4131 = vmatprep.subr.bf16.mxu0 0
      %4132 = vmatpush1.bf16.msra.mxu0 %v4129
      %4133 = vmatprep.subr.bf16.mxu0 0
      %4134 = vmatpush1.bf16.msra.mxu0 0
      %4135 = vmatprep.subr.bf16.mxu0 0
      %4136 = vmatpush1.bf16.msra.mxu0 0
      %4137 = vmatprep.subr.bf16.mxu0 0
      %4138 = vmatpush1.bf16.msra.mxu0 0
      %4139 = vmatprep.subr.bf16.mxu0 0
      %4140 = vmatpush1.bf16.msra.mxu0 0
      %4141 = vmatprep.subr.bf16.mxu0 0
      %4142 = vmatpush1.bf16.msra.mxu0 0
      %4143 = vmatprep.subr.bf16.mxu0 0
      %4144 = vmatpush1.bf16.msra.mxu0 0
      %4145 = vmatprep.subr.bf16.mxu0 0
      %4146 = vmatpush1.bf16.msra.mxu0 0
      %4147 = vmatprep.subr.bf16.mxu0 0
      %4148 = vmatpush1.bf16.msra.mxu0 0
      %4149 = vmatprep.subr.bf16.mxu0 0
      %4150 = vmatpush1.bf16.msra.mxu0 0
      %4151 = vmatprep.subr.bf16.mxu0 0
      %4152 = vmatpush1.bf16.msra.mxu0 0
      %4153 = vmatprep.subr.bf16.mxu0 0
      %4154 = vmatpush1.bf16.msra.mxu0 0
      %4155 = vmatprep.subr.bf16.mxu0 0
      %4156 = vmatpush1.bf16.msra.mxu0 0
      %4157 = vmatprep.subr.bf16.mxu0 0
      %4158 = vmatpush1.bf16.msra.mxu0 0
      %4159 = vmatprep.subr.bf16.mxu0 0
      %4160 = vmatpush1.bf16.msra.mxu0 0
      %4161 = vmatprep.subr.bf16.mxu0 0
      %4162 = vmatpush1.bf16.msra.mxu0 0
      %4163 = vmatprep.mubr.bf16.mxu0 0
      %4164 = vmatmul.mubr.bf16.gmra.mrb[0].mxu0 %v4105
      %v4165 = vpop.f32.mrb[0].mxu0
      %v4166 = vadd.f32 0.0, %v4165
      %v4167 = vpop.f32.mrb[0].mxu0
      %v4168 = vpop.f32.mrb[0].mxu0
      %v4169 = vadd.f32 0.0, %v4168
      %v4170 = vpop.f32.mrb[0].mxu0
      %4171 = vmatprep.mubr.bf16.mxu0 0
      %4172 = vmatmul.mubr.bf16.gmra.mrb[0].mxu0 %v4108
      %v4173 = vpop.f32.mrb[0].mxu0
      %v4174 = vadd.f32 0.0, %v4173
      %v4175 = vpop.f32.mrb[0].mxu0
      %v4176 = vpop.f32.mrb[0].mxu0
      %v4177 = vadd.f32 0.0, %v4176
      %v4178 = vpop.f32.mrb[0].mxu0
      %4179 = vmatprep.mubr.bf16.mxu0 0
      %4180 = vmatmul.mubr.bf16.gmra.mrb[0].mxu0 %v4111
      %v4181 = vpop.f32.mrb[0].mxu0
      %v4182 = vadd.f32 0.0, %v4181
      %v4183 = vpop.f32.mrb[0].mxu0
      %v4184 = vpop.f32.mrb[0].mxu0
      %v4185 = vadd.f32 0.0, %v4184
      %v4186 = vpop.f32.mrb[0].mxu0
      %4187 = vmatprep.mubr.bf16.mxu0 0
      %4188 = vmatmul.mubr.bf16.gmra.mrb[0].mxu0 %v4114
      %v4189 = vpop.f32.mrb[0].mxu0
      %v4190 = vadd.f32 0.0, %v4189
      %v4191 = vpop.f32.mrb[0].mxu0
      %v4192 = vpop.f32.mrb[0].mxu0
      %v4193 = vadd.f32 0.0, %v4192
      %v4194 = vpop.f32.mrb[0].mxu0
      %4195 = vmatprep.mubr.bf16.mxu0 0
      %4196 = vmatmul.mubr.bf16.gmra.mrb[0].mxu0 %v4117
      %v4197 = vpop.f32.mrb[0].mxu0
      %v4198 = vadd.f32 0.0, %v4197
      %v4199 = vpop.f32.mrb[0].mxu0
      %v4200 = vpop.f32.mrb[0].mxu0
      %v4201 = vadd.f32 0.0, %v4200
      %v4202 = vpop.f32.mrb[0].mxu0
      %4203 = vmatprep.mubr.bf16.mxu0 0
      %4204 = vmatmul.mubr.bf16.gmra.mrb[0].mxu0 %v4120
      %v4205 = vpop.f32.mrb[0].mxu0
      %v4206 = vadd.f32 0.0, %v4205
      %v4207 = vpop.f32.mrb[0].mxu0
      %v4208 = vpop.f32.mrb[0].mxu0
      %v4209 = vadd.f32 0.0, %v4208
      %v4210 = vpop.f32.mrb[0].mxu0
      %4211 = vmatprep.mubr.bf16.mxu0 0
      %4212 = vmatmul.mubr.bf16.gmra.mrb[0].mxu0 %v4123
      %v4213 = vpop.f32.mrb[0].mxu0
      %v4214 = vadd.f32 0.0, %v4213
      %v4215 = vpop.f32.mrb[0].mxu0
      %v4216 = vpop.f32.mrb[0].mxu0
      %v4217 = vadd.f32 0.0, %v4216
      %v4218 = vpop.f32.mrb[0].mxu0
      %4219 = vmatprep.mubr.bf16.mxu0 0
      %4220 = vmatmul.mubr.bf16.gmra.mrb[0].mxu0 %v4126
      %v4221 = vpop.f32.mrb[0].mxu0
      %v4222 = vadd.f32 0.0, %v4221
      %v4223 = vpop.f32.mrb[0].mxu0
      %v4224 = vpop.f32.mrb[0].mxu0
      %v4225 = vadd.f32 0.0, %v4224
      %v4226 = vpop.f32.mrb[0].mxu0
      %4227 = vdwg.mxu0
      %v4228 = vld [vmem:[#allocation4] sm:$0xff]
      %v4229 = vld [vmem:[#allocation4 + $0x8] sm:$0xff]
      %v4230 = vld [vmem:[#allocation4 + $0x10] sm:$0xff]
      %v4231 = vld [vmem:[#allocation4 + $0x18] sm:$0xff]
      %v4232 = vld [vmem:[#allocation4 + $0x20] sm:$0xff]
      %v4233 = vld [vmem:[#allocation4 + $0x28] sm:$0xff]
      %v4234 = vld [vmem:[#allocation4 + $0x30] sm:$0xff]
      %v4235 = vld [vmem:[#allocation4 + $0x38] sm:$0xff]
      %v4236 = vld [vmem:[#allocation4 + $0x40] sm:$0xff]
      %v4237 = vld [vmem:[#allocation4 + $0x48] sm:$0xff]
      %v4238 = vld [vmem:[#allocation4 + $0x50] sm:$0xff]
      %v4239 = vld [vmem:[#allocation4 + $0x58] sm:$0xff]
      %v4240 = vld [vmem:[#allocation4 + $0x60] sm:$0xff]
      %v4241 = vld [vmem:[#allocation4 + $0x68] sm:$0xff]
      %v4242 = vld [vmem:[#allocation4 + $0x70] sm:$0xff]
      %v4243 = vld [vmem:[#allocation4 + $0x78] sm:$0xff]
      %v4244 = vadd.f32 %v4228, %v4166
      %v4245 = vadd.f32 %v4229, %v4169
      %v4246 = vadd.f32 %v4230, %v4174
      %v4247 = vadd.f32 %v4231, %v4177
      %v4248 = vadd.f32 %v4232, %v4182
      %v4249 = vadd.f32 %v4233, %v4185
      %v4250 = vadd.f32 %v4234, %v4190
      %v4251 = vadd.f32 %v4235, %v4193
      %v4252 = vadd.f32 %v4236, %v4198
      %v4253 = vadd.f32 %v4237, %v4201
      %v4254 = vadd.f32 %v4238, %v4206
      %v4255 = vadd.f32 %v4239, %v4209
      %v4256 = vadd.f32 %v4240, %v4214
      %v4257 = vadd.f32 %v4241, %v4217
      %v4258 = vadd.f32 %v4242, %v4222
      %v4259 = vadd.f32 %v4243, %v4225
      %4260 = vst.msk [vmem:[#allocation4] sm:$0xff] %vm490, %v4244
      %4261 = vst.msk [vmem:[#allocation4 + $0x8] sm:$0xff] %vm490, %v4245
      %4262 = vst.msk [vmem:[#allocation4 + $0x10] sm:$0xff] %vm490, %v4246
      %4263 = vst.msk [vmem:[#allocation4 + $0x18] sm:$0xff] %vm490, %v4247
      %4264 = vst.msk [vmem:[#allocation4 + $0x20] sm:$0xff] %vm490, %v4248
      %4265 = vst.msk [vmem:[#allocation4 + $0x28] sm:$0xff] %vm490, %v4249
      %4266 = vst.msk [vmem:[#allocation4 + $0x30] sm:$0xff] %vm490, %v4250
      %4267 = vst.msk [vmem:[#allocation4 + $0x38] sm:$0xff] %vm490, %v4251
      %4268 = vst.msk [vmem:[#allocation4 + $0x40] sm:$0xff] %vm490, %v4252
      %4269 = vst.msk [vmem:[#allocation4 + $0x48] sm:$0xff] %vm490, %v4253
      %4270 = vst.msk [vmem:[#allocation4 + $0x50] sm:$0xff] %vm490, %v4254
      %4271 = vst.msk [vmem:[#allocation4 + $0x58] sm:$0xff] %vm490, %v4255
      %4272 = vst.msk [vmem:[#allocation4 + $0x60] sm:$0xff] %vm490, %v4256
      %4273 = vst.msk [vmem:[#allocation4 + $0x68] sm:$0xff] %vm490, %v4257
      %4274 = vst.msk [vmem:[#allocation4 + $0x70] sm:$0xff] %vm490, %v4258
      %4275 = vst.msk [vmem:[#allocation4 + $0x78] sm:$0xff] %vm490, %v4259
      %v4276 = vld [vmem:[#allocation2 + $0x10] sm:$0xff]
      %v4277 = vld [vmem:[#allocation2 + $0x18] sm:$0xff]
      %v4278 = vld [vmem:[#allocation2 + $0x20] sm:$0xff]
      %v4279 = vld [vmem:[#allocation2 + $0x28] sm:$0xff]
      %v4280 = vld [vmem:[#allocation2 + $0x30] sm:$0xff]
      %v4281 = vld [vmem:[#allocation2 + $0x38] sm:$0xff]
      %v4282 = vld [vmem:[#allocation2 + $0x40] sm:$0xff]
      %v4283 = vld [vmem:[#allocation2 + $0x48] sm:$0xff]
      %v4284 = vld [vmem:[#allocation2 + $0x50] sm:$0x1]
      %s4285 = scalar_lea.vmem %s3, 28
      %v4286 = vld [vmem:[%s4285] sm:$0xf]
      %v4288 = vshrl.u32 %v4276, 16
      %v4290 = vshll.u32 %v4276, 16
      %v4292 = vrot.slane %v4290, 1
      %v4293 = vor.u32 %v4288, %v4292
      %v4295 = vshll.u32 %v4277, 16
      %v4297 = vrot.slane %v4295, 1
      %v4298 = vsel %vm800, %v4293, %v4297
      %v4299 = vshrl.u32 %v4277, 16
      %v4301 = vor.u32 %v4299, %v4297
      %v4303 = vshll.u32 %v4278, 16
      %v4305 = vrot.slane %v4303, 1
      %v4306 = vsel %vm800, %v4301, %v4305
      %v4307 = vshrl.u32 %v4278, 16
      %v4309 = vor.u32 %v4307, %v4305
      %v4311 = vshll.u32 %v4279, 16
      %v4313 = vrot.slane %v4311, 1
      %v4314 = vsel %vm800, %v4309, %v4313
      %v4315 = vshrl.u32 %v4279, 16
      %v4317 = vor.u32 %v4315, %v4313
      %v4319 = vshll.u32 %v4280, 16
      %v4321 = vrot.slane %v4319, 1
      %v4322 = vsel %vm800, %v4317, %v4321
      %v4323 = vshrl.u32 %v4280, 16
      %v4325 = vor.u32 %v4323, %v4321
      %v4327 = vshll.u32 %v4281, 16
      %v4329 = vrot.slane %v4327, 1
      %v4330 = vsel %vm800, %v4325, %v4329
      %v4331 = vshrl.u32 %v4281, 16
      %v4333 = vor.u32 %v4331, %v4329
      %v4335 = vshll.u32 %v4282, 16
      %v4337 = vrot.slane %v4335, 1
      %v4338 = vsel %vm800, %v4333, %v4337
      %v4339 = vshrl.u32 %v4282, 16
      %v4341 = vor.u32 %v4339, %v4337
      %v4343 = vshll.u32 %v4283, 16
      %v4345 = vrot.slane %v4343, 1
      %v4346 = vsel %vm800, %v4341, %v4345
      %v4347 = vshrl.u32 %v4283, 16
      %v4349 = vor.u32 %v4347, %v4345
      %v4351 = vshll.u32 %v4284, 16
      %v4353 = vrot.slane %v4351, 1
      %v4354 = vsel %vm800, %v4349, %v4353
      %v4356 = vsel %vm490, %v4298, 0
      %v4359 = vsel %vm490, %v4306, 0
      %v4362 = vsel %vm490, %v4314, 0
      %v4365 = vsel %vm490, %v4322, 0
      %v4368 = vsel %vm490, %v4330, 0
      %v4371 = vsel %vm490, %v4338, 0
      %v4374 = vsel %vm490, %v4346, 0
      %v4377 = vsel %vm490, %v4354, 0
      %v4380 = vsel %vm2874, %v4286, 0
      %4382 = vmatprep.subr.bf16.mxu0 0
      %4383 = vmatpush1.bf16.msra.mxu0 %v4380
      %4384 = vmatprep.subr.bf16.mxu0 0
      %4385 = vmatpush1.bf16.msra.mxu0 0
      %4386 = vmatprep.subr.bf16.mxu0 0
      %4387 = vmatpush1.bf16.msra.mxu0 0
      %4388 = vmatprep.subr.bf16.mxu0 0
      %4389 = vmatpush1.bf16.msra.mxu0 0
      %4390 = vmatprep.subr.bf16.mxu0 0
      %4391 = vmatpush1.bf16.msra.mxu0 0
      %4392 = vmatprep.subr.bf16.mxu0 0
      %4393 = vmatpush1.bf16.msra.mxu0 0
      %4394 = vmatprep.subr.bf16.mxu0 0
      %4395 = vmatpush1.bf16.msra.mxu0 0
      %4396 = vmatprep.subr.bf16.mxu0 0
      %4397 = vmatpush1.bf16.msra.mxu0 0
      %4398 = vmatprep.subr.bf16.mxu0 0
      %4399 = vmatpush1.bf16.msra.mxu0 0
      %4400 = vmatprep.subr.bf16.mxu0 0
      %4401 = vmatpush1.bf16.msra.mxu0 0
      %4402 = vmatprep.subr.bf16.mxu0 0
      %4403 = vmatpush1.bf16.msra.mxu0 0
      %4404 = vmatprep.subr.bf16.mxu0 0
      %4405 = vmatpush1.bf16.msra.mxu0 0
      %4406 = vmatprep.subr.bf16.mxu0 0
      %4407 = vmatpush1.bf16.msra.mxu0 0
      %4408 = vmatprep.subr.bf16.mxu0 0
      %4409 = vmatpush1.bf16.msra.mxu0 0
      %4410 = vmatprep.subr.bf16.mxu0 0
      %4411 = vmatpush1.bf16.msra.mxu0 0
      %4412 = vmatprep.subr.bf16.mxu0 0
      %4413 = vmatpush1.bf16.msra.mxu0 0
      %4414 = vmatprep.mubr.bf16.mxu0 0
      %4415 = vmatmul.mubr.bf16.gmra.mrb[0].mxu0 %v4356
      %v4416 = vpop.f32.mrb[0].mxu0
      %v4417 = vadd.f32 0.0, %v4416
      %v4418 = vpop.f32.mrb[0].mxu0
      %v4419 = vpop.f32.mrb[0].mxu0
      %v4420 = vadd.f32 0.0, %v4419
      %v4421 = vpop.f32.mrb[0].mxu0
      %4422 = vmatprep.mubr.bf16.mxu0 0
      %4423 = vmatmul.mubr.bf16.gmra.mrb[0].mxu0 %v4359
      %v4424 = vpop.f32.mrb[0].mxu0
      %v4425 = vadd.f32 0.0, %v4424
      %v4426 = vpop.f32.mrb[0].mxu0
      %v4427 = vpop.f32.mrb[0].mxu0
      %v4428 = vadd.f32 0.0, %v4427
      %v4429 = vpop.f32.mrb[0].mxu0
      %4430 = vmatprep.mubr.bf16.mxu0 0
      %4431 = vmatmul.mubr.bf16.gmra.mrb[0].mxu0 %v4362
      %v4432 = vpop.f32.mrb[0].mxu0
      %v4433 = vadd.f32 0.0, %v4432
      %v4434 = vpop.f32.mrb[0].mxu0
      %v4435 = vpop.f32.mrb[0].mxu0
      %v4436 = vadd.f32 0.0, %v4435
      %v4437 = vpop.f32.mrb[0].mxu0
      %4438 = vmatprep.mubr.bf16.mxu0 0
      %4439 = vmatmul.mubr.bf16.gmra.mrb[0].mxu0 %v4365
      %v4440 = vpop.f32.mrb[0].mxu0
      %v4441 = vadd.f32 0.0, %v4440
      %v4442 = vpop.f32.mrb[0].mxu0
      %v4443 = vpop.f32.mrb[0].mxu0
      %v4444 = vadd.f32 0.0, %v4443
      %v4445 = vpop.f32.mrb[0].mxu0
      %4446 = vmatprep.mubr.bf16.mxu0 0
      %4447 = vmatmul.mubr.bf16.gmra.mrb[0].mxu0 %v4368
      %v4448 = vpop.f32.mrb[0].mxu0
      %v4449 = vadd.f32 0.0, %v4448
      %v4450 = vpop.f32.mrb[0].mxu0
      %v4451 = vpop.f32.mrb[0].mxu0
      %v4452 = vadd.f32 0.0, %v4451
      %v4453 = vpop.f32.mrb[0].mxu0
      %4454 = vmatprep.mubr.bf16.mxu0 0
      %4455 = vmatmul.mubr.bf16.gmra.mrb[0].mxu0 %v4371
      %v4456 = vpop.f32.mrb[0].mxu0
      %v4457 = vadd.f32 0.0, %v4456
      %v4458 = vpop.f32.mrb[0].mxu0
      %v4459 = vpop.f32.mrb[0].mxu0
      %v4460 = vadd.f32 0.0, %v4459
      %v4461 = vpop.f32.mrb[0].mxu0
      %4462 = vmatprep.mubr.bf16.mxu0 0
      %4463 = vmatmul.mubr.bf16.gmra.mrb[0].mxu0 %v4374
      %v4464 = vpop.f32.mrb[0].mxu0
      %v4465 = vadd.f32 0.0, %v4464
      %v4466 = vpop.f32.mrb[0].mxu0
      %v4467 = vpop.f32.mrb[0].mxu0
      %v4468 = vadd.f32 0.0, %v4467
      %v4469 = vpop.f32.mrb[0].mxu0
      %4470 = vmatprep.mubr.bf16.mxu0 0
      %4471 = vmatmul.mubr.bf16.gmra.mrb[0].mxu0 %v4377
      %v4472 = vpop.f32.mrb[0].mxu0
      %v4473 = vadd.f32 0.0, %v4472
      %v4474 = vpop.f32.mrb[0].mxu0
      %v4475 = vpop.f32.mrb[0].mxu0
      %v4476 = vadd.f32 0.0, %v4475
      %v4477 = vpop.f32.mrb[0].mxu0
      %4478 = vdwg.mxu0
      %v4479 = vld [vmem:[#allocation4] sm:$0xff]
      %v4480 = vld [vmem:[#allocation4 + $0x8] sm:$0xff]
      %v4481 = vld [vmem:[#allocation4 + $0x10] sm:$0xff]
      %v4482 = vld [vmem:[#allocation4 + $0x18] sm:$0xff]
      %v4483 = vld [vmem:[#allocation4 + $0x20] sm:$0xff]
      %v4484 = vld [vmem:[#allocation4 + $0x28] sm:$0xff]
      %v4485 = vld [vmem:[#allocation4 + $0x30] sm:$0xff]
      %v4486 = vld [vmem:[#allocation4 + $0x38] sm:$0xff]
      %v4487 = vld [vmem:[#allocation4 + $0x40] sm:$0xff]
      %v4488 = vld [vmem:[#allocation4 + $0x48] sm:$0xff]
      %v4489 = vld [vmem:[#allocation4 + $0x50] sm:$0xff]
      %v4490 = vld [vmem:[#allocation4 + $0x58] sm:$0xff]
      %v4491 = vld [vmem:[#allocation4 + $0x60] sm:$0xff]
      %v4492 = vld [vmem:[#allocation4 + $0x68] sm:$0xff]
      %v4493 = vld [vmem:[#allocation4 + $0x70] sm:$0xff]
      %v4494 = vld [vmem:[#allocation4 + $0x78] sm:$0xff]
      %v4495 = vadd.f32 %v4479, %v4417
      %v4496 = vadd.f32 %v4480, %v4420
      %v4497 = vadd.f32 %v4481, %v4425
      %v4498 = vadd.f32 %v4482, %v4428
      %v4499 = vadd.f32 %v4483, %v4433
      %v4500 = vadd.f32 %v4484, %v4436
      %v4501 = vadd.f32 %v4485, %v4441
      %v4502 = vadd.f32 %v4486, %v4444
      %v4503 = vadd.f32 %v4487, %v4449
      %v4504 = vadd.f32 %v4488, %v4452
      %v4505 = vadd.f32 %v4489, %v4457
      %v4506 = vadd.f32 %v4490, %v4460
      %v4507 = vadd.f32 %v4491, %v4465
      %v4508 = vadd.f32 %v4492, %v4468
      %v4509 = vadd.f32 %v4493, %v4473
      %v4510 = vadd.f32 %v4494, %v4476
      %4511 = vst.msk [vmem:[#allocation4] sm:$0xff] %vm490, %v4495
      %4512 = vst.msk [vmem:[#allocation4 + $0x8] sm:$0xff] %vm490, %v4496
      %4513 = vst.msk [vmem:[#allocation4 + $0x10] sm:$0xff] %vm490, %v4497
      %4514 = vst.msk [vmem:[#allocation4 + $0x18] sm:$0xff] %vm490, %v4498
      %4515 = vst.msk [vmem:[#allocation4 + $0x20] sm:$0xff] %vm490, %v4499
      %4516 = vst.msk [vmem:[#allocation4 + $0x28] sm:$0xff] %vm490, %v4500
      %4517 = vst.msk [vmem:[#allocation4 + $0x30] sm:$0xff] %vm490, %v4501
      %4518 = vst.msk [vmem:[#allocation4 + $0x38] sm:$0xff] %vm490, %v4502
      %4519 = vst.msk [vmem:[#allocation4 + $0x40] sm:$0xff] %vm490, %v4503
      %4520 = vst.msk [vmem:[#allocation4 + $0x48] sm:$0xff] %vm490, %v4504
      %4521 = vst.msk [vmem:[#allocation4 + $0x50] sm:$0xff] %vm490, %v4505
      %4522 = vst.msk [vmem:[#allocation4 + $0x58] sm:$0xff] %vm490, %v4506
      %4523 = vst.msk [vmem:[#allocation4 + $0x60] sm:$0xff] %vm490, %v4507
      %4524 = vst.msk [vmem:[#allocation4 + $0x68] sm:$0xff] %vm490, %v4508
      %4525 = vst.msk [vmem:[#allocation4 + $0x70] sm:$0xff] %vm490, %v4509
      %4526 = vst.msk [vmem:[#allocation4 + $0x78] sm:$0xff] %vm490, %v4510
      %v4527 = vld [vmem:[#allocation2 + $0x10] sm:$0xfe]
      %v4528 = vld [vmem:[#allocation2 + $0x18] sm:$0xff]
      %v4529 = vld [vmem:[#allocation2 + $0x20] sm:$0xff]
      %v4530 = vld [vmem:[#allocation2 + $0x28] sm:$0xff]
      %v4531 = vld [vmem:[#allocation2 + $0x30] sm:$0xff]
      %v4532 = vld [vmem:[#allocation2 + $0x38] sm:$0xff]
      %v4533 = vld [vmem:[#allocation2 + $0x40] sm:$0xff]
      %v4534 = vld [vmem:[#allocation2 + $0x48] sm:$0xff]
      %v4535 = vld [vmem:[#allocation2 + $0x50] sm:$0x1]
      %s4536 = scalar_lea.vmem %s3, 32
      %v4537 = vld [vmem:[%s4536] sm:$0xf]
      %v4547 = vrot.slane %v4527, 1
      %v4548 = vrot.slane %v4528, 1
      %v4549 = vsel %vm3262, %v4547, %v4548
      %v4550 = vrot.slane %v4529, 1
      %v4551 = vsel %vm3262, %v4548, %v4550
      %v4552 = vrot.slane %v4530, 1
      %v4553 = vsel %vm3262, %v4550, %v4552
      %v4554 = vrot.slane %v4531, 1
      %v4555 = vsel %vm3262, %v4552, %v4554
      %v4556 = vrot.slane %v4532, 1
      %v4557 = vsel %vm3262, %v4554, %v4556
      %v4558 = vrot.slane %v4533, 1
      %v4559 = vsel %vm3262, %v4556, %v4558
      %v4560 = vrot.slane %v4534, 1
      %v4561 = vsel %vm3262, %v4558, %v4560
      %v4562 = vrot.slane %v4535, 1
      %v4563 = vsel %vm3262, %v4560, %v4562
      %v4565 = vsel %vm490, %v4549, 0
      %v4568 = vsel %vm490, %v4551, 0
      %v4571 = vsel %vm490, %v4553, 0
      %v4574 = vsel %vm490, %v4555, 0
      %v4577 = vsel %vm490, %v4557, 0
      %v4580 = vsel %vm490, %v4559, 0
      %v4583 = vsel %vm490, %v4561, 0
      %v4586 = vsel %vm490, %v4563, 0
      %v4589 = vsel %vm2874, %v4537, 0
      %4591 = vmatprep.subr.bf16.mxu0 0
      %4592 = vmatpush1.bf16.msra.mxu0 %v4589
      %4593 = vmatprep.subr.bf16.mxu0 0
      %4594 = vmatpush1.bf16.msra.mxu0 0
      %4595 = vmatprep.subr.bf16.mxu0 0
      %4596 = vmatpush1.bf16.msra.mxu0 0
      %4597 = vmatprep.subr.bf16.mxu0 0
      %4598 = vmatpush1.bf16.msra.mxu0 0
      %4599 = vmatprep.subr.bf16.mxu0 0
      %4600 = vmatpush1.bf16.msra.mxu0 0
      %4601 = vmatprep.subr.bf16.mxu0 0
      %4602 = vmatpush1.bf16.msra.mxu0 0
      %4603 = vmatprep.subr.bf16.mxu0 0
      %4604 = vmatpush1.bf16.msra.mxu0 0
      %4605 = vmatprep.subr.bf16.mxu0 0
      %4606 = vmatpush1.bf16.msra.mxu0 0
      %4607 = vmatprep.subr.bf16.mxu0 0
      %4608 = vmatpush1.bf16.msra.mxu0 0
      %4609 = vmatprep.subr.bf16.mxu0 0
      %4610 = vmatpush1.bf16.msra.mxu0 0
      %4611 = vmatprep.subr.bf16.mxu0 0
      %4612 = vmatpush1.bf16.msra.mxu0 0
      %4613 = vmatprep.subr.bf16.mxu0 0
      %4614 = vmatpush1.bf16.msra.mxu0 0
      %4615 = vmatprep.subr.bf16.mxu0 0
      %4616 = vmatpush1.bf16.msra.mxu0 0
      %4617 = vmatprep.subr.bf16.mxu0 0
      %4618 = vmatpush1.bf16.msra.mxu0 0
      %4619 = vmatprep.subr.bf16.mxu0 0
      %4620 = vmatpush1.bf16.msra.mxu0 0
      %4621 = vmatprep.subr.bf16.mxu0 0
      %4622 = vmatpush1.bf16.msra.mxu0 0
      %4623 = vmatprep.mubr.bf16.mxu0 0
      %4624 = vmatmul.mubr.bf16.gmra.mrb[0].mxu0 %v4565
      %v4625 = vpop.f32.mrb[0].mxu0
      %v4626 = vadd.f32 0.0, %v4625
      %v4627 = vpop.f32.mrb[0].mxu0
      %v4628 = vpop.f32.mrb[0].mxu0
      %v4629 = vadd.f32 0.0, %v4628
      %v4630 = vpop.f32.mrb[0].mxu0
      %4631 = vmatprep.mubr.bf16.mxu0 0
      %4632 = vmatmul.mubr.bf16.gmra.mrb[0].mxu0 %v4568
      %v4633 = vpop.f32.mrb[0].mxu0
      %v4634 = vadd.f32 0.0, %v4633
      %v4635 = vpop.f32.mrb[0].mxu0
      %v4636 = vpop.f32.mrb[0].mxu0
      %v4637 = vadd.f32 0.0, %v4636
      %v4638 = vpop.f32.mrb[0].mxu0
      %4639 = vmatprep.mubr.bf16.mxu0 0
      %4640 = vmatmul.mubr.bf16.gmra.mrb[0].mxu0 %v4571
      %v4641 = vpop.f32.mrb[0].mxu0
      %v4642 = vadd.f32 0.0, %v4641
      %v4643 = vpop.f32.mrb[0].mxu0
      %v4644 = vpop.f32.mrb[0].mxu0
      %v4645 = vadd.f32 0.0, %v4644
      %v4646 = vpop.f32.mrb[0].mxu0
      %4647 = vmatprep.mubr.bf16.mxu0 0
      %4648 = vmatmul.mubr.bf16.gmra.mrb[0].mxu0 %v4574
      %v4649 = vpop.f32.mrb[0].mxu0
      %v4650 = vadd.f32 0.0, %v4649
      %v4651 = vpop.f32.mrb[0].mxu0
      %v4652 = vpop.f32.mrb[0].mxu0
      %v4653 = vadd.f32 0.0, %v4652
      %v4654 = vpop.f32.mrb[0].mxu0
      %4655 = vmatprep.mubr.bf16.mxu0 0
      %4656 = vmatmul.mubr.bf16.gmra.mrb[0].mxu0 %v4577
      %v4657 = vpop.f32.mrb[0].mxu0
      %v4658 = vadd.f32 0.0, %v4657
      %v4659 = vpop.f32.mrb[0].mxu0
      %v4660 = vpop.f32.mrb[0].mxu0
      %v4661 = vadd.f32 0.0, %v4660
      %v4662 = vpop.f32.mrb[0].mxu0
      %4663 = vmatprep.mubr.bf16.mxu0 0
      %4664 = vmatmul.mubr.bf16.gmra.mrb[0].mxu0 %v4580
      %v4665 = vpop.f32.mrb[0].mxu0
      %v4666 = vadd.f32 0.0, %v4665
      %v4667 = vpop.f32.mrb[0].mxu0
      %v4668 = vpop.f32.mrb[0].mxu0
      %v4669 = vadd.f32 0.0, %v4668
      %v4670 = vpop.f32.mrb[0].mxu0
      %4671 = vmatprep.mubr.bf16.mxu0 0
      %4672 = vmatmul.mubr.bf16.gmra.mrb[0].mxu0 %v4583
      %v4673 = vpop.f32.mrb[0].mxu0
      %v4674 = vadd.f32 0.0, %v4673
      %v4675 = vpop.f32.mrb[0].mxu0
      %v4676 = vpop.f32.mrb[0].mxu0
      %v4677 = vadd.f32 0.0, %v4676
      %v4678 = vpop.f32.mrb[0].mxu0
      %4679 = vmatprep.mubr.bf16.mxu0 0
      %4680 = vmatmul.mubr.bf16.gmra.mrb[0].mxu0 %v4586
      %v4681 = vpop.f32.mrb[0].mxu0
      %v4682 = vadd.f32 0.0, %v4681
      %v4683 = vpop.f32.mrb[0].mxu0
      %v4684 = vpop.f32.mrb[0].mxu0
      %v4685 = vadd.f32 0.0, %v4684
      %v4686 = vpop.f32.mrb[0].mxu0
      %4687 = vdwg.mxu0
      %v4688 = vld [vmem:[#allocation4] sm:$0xff]
      %v4689 = vld [vmem:[#allocation4 + $0x8] sm:$0xff]
      %v4690 = vld [vmem:[#allocation4 + $0x10] sm:$0xff]
      %v4691 = vld [vmem:[#allocation4 + $0x18] sm:$0xff]
      %v4692 = vld [vmem:[#allocation4 + $0x20] sm:$0xff]
      %v4693 = vld [vmem:[#allocation4 + $0x28] sm:$0xff]
      %v4694 = vld [vmem:[#allocation4 + $0x30] sm:$0xff]
      %v4695 = vld [vmem:[#allocation4 + $0x38] sm:$0xff]
      %v4696 = vld [vmem:[#allocation4 + $0x40] sm:$0xff]
      %v4697 = vld [vmem:[#allocation4 + $0x48] sm:$0xff]
      %v4698 = vld [vmem:[#allocation4 + $0x50] sm:$0xff]
      %v4699 = vld [vmem:[#allocation4 + $0x58] sm:$0xff]
      %v4700 = vld [vmem:[#allocation4 + $0x60] sm:$0xff]
      %v4701 = vld [vmem:[#allocation4 + $0x68] sm:$0xff]
      %v4702 = vld [vmem:[#allocation4 + $0x70] sm:$0xff]
      %v4703 = vld [vmem:[#allocation4 + $0x78] sm:$0xff]
      %v4704 = vadd.f32 %v4688, %v4626
      %v4705 = vadd.f32 %v4689, %v4629
      %v4706 = vadd.f32 %v4690, %v4634
      %v4707 = vadd.f32 %v4691, %v4637
      %v4708 = vadd.f32 %v4692, %v4642
      %v4709 = vadd.f32 %v4693, %v4645
      %v4710 = vadd.f32 %v4694, %v4650
      %v4711 = vadd.f32 %v4695, %v4653
      %v4712 = vadd.f32 %v4696, %v4658
      %v4713 = vadd.f32 %v4697, %v4661
      %v4714 = vadd.f32 %v4698, %v4666
      %v4715 = vadd.f32 %v4699, %v4669
      %v4716 = vadd.f32 %v4700, %v4674
      %v4717 = vadd.f32 %v4701, %v4677
      %v4718 = vadd.f32 %v4702, %v4682
      %v4719 = vadd.f32 %v4703, %v4685
      %4720 = vst.msk [vmem:[#allocation4] sm:$0xff] %vm490, %v4704
      %4721 = vst.msk [vmem:[#allocation4 + $0x8] sm:$0xff] %vm490, %v4705
      %4722 = vst.msk [vmem:[#allocation4 + $0x10] sm:$0xff] %vm490, %v4706
      %4723 = vst.msk [vmem:[#allocation4 + $0x18] sm:$0xff] %vm490, %v4707
      %4724 = vst.msk [vmem:[#allocation4 + $0x20] sm:$0xff] %vm490, %v4708
      %4725 = vst.msk [vmem:[#allocation4 + $0x28] sm:$0xff] %vm490, %v4709
      %4726 = vst.msk [vmem:[#allocation4 + $0x30] sm:$0xff] %vm490, %v4710
      %4727 = vst.msk [vmem:[#allocation4 + $0x38] sm:$0xff] %vm490, %v4711
      %4728 = vst.msk [vmem:[#allocation4 + $0x40] sm:$0xff] %vm490, %v4712
      %4729 = vst.msk [vmem:[#allocation4 + $0x48] sm:$0xff] %vm490, %v4713
      %4730 = vst.msk [vmem:[#allocation4 + $0x50] sm:$0xff] %vm490, %v4714
      %4731 = vst.msk [vmem:[#allocation4 + $0x58] sm:$0xff] %vm490, %v4715
      %4732 = vst.msk [vmem:[#allocation4 + $0x60] sm:$0xff] %vm490, %v4716
      %4733 = vst.msk [vmem:[#allocation4 + $0x68] sm:$0xff] %vm490, %v4717
      %4734 = vst.msk [vmem:[#allocation4 + $0x70] sm:$0xff] %vm490, %v4718
      %4735 = vst.msk [vmem:[#allocation4 + $0x78] sm:$0xff] %vm490, %v4719
      %v4736 = vld [vmem:[#allocation4] sm:$0xff]
      %v4737 = vld [vmem:[#allocation4 + $0x8] sm:$0xff]
      %v4738 = vld [vmem:[#allocation4 + $0x10] sm:$0xff]
      %v4739 = vld [vmem:[#allocation4 + $0x18] sm:$0xff]
      %v4740 = vld [vmem:[#allocation4 + $0x20] sm:$0xff]
      %v4741 = vld [vmem:[#allocation4 + $0x28] sm:$0xff]
      %v4742 = vld [vmem:[#allocation4 + $0x30] sm:$0xff]
      %v4743 = vld [vmem:[#allocation4 + $0x38] sm:$0xff]
      %v4744 = vld [vmem:[#allocation4 + $0x40] sm:$0xff]
      %v4745 = vld [vmem:[#allocation4 + $0x48] sm:$0xff]
      %v4746 = vld [vmem:[#allocation4 + $0x50] sm:$0xff]
      %v4747 = vld [vmem:[#allocation4 + $0x58] sm:$0xff]
      %v4748 = vld [vmem:[#allocation4 + $0x60] sm:$0xff]
      %v4749 = vld [vmem:[#allocation4 + $0x68] sm:$0xff]
      %v4750 = vld [vmem:[#allocation4 + $0x70] sm:$0xff]
      %v4751 = vld [vmem:[#allocation4 + $0x78] sm:$0xff]
      %v4752 = vld [vmem:[%s4] sm:$0x1]
      %v4754 = vlaneseq
      %v4755 = vshrl.u32 %v4754, 7
      %v4756 = vsub.s32 0, %v4755
      %v4757 = vrot.slane %v4752, %v4756
      %v4759 = vadd.f32 %v4736, %v4757
      %v4760 = vadd.f32 %v4737, %v4757
      %v4761 = vadd.f32 %v4738, %v4757
      %v4762 = vadd.f32 %v4739, %v4757
      %v4763 = vadd.f32 %v4740, %v4757
      %v4764 = vadd.f32 %v4741, %v4757
      %v4765 = vadd.f32 %v4742, %v4757
      %v4766 = vadd.f32 %v4743, %v4757
      %v4767 = vadd.f32 %v4744, %v4757
      %v4768 = vadd.f32 %v4745, %v4757
      %v4769 = vadd.f32 %v4746, %v4757
      %v4770 = vadd.f32 %v4747, %v4757
      %v4771 = vadd.f32 %v4748, %v4757
      %v4772 = vadd.f32 %v4749, %v4757
      %v4773 = vadd.f32 %v4750, %v4757
      %v4774 = vadd.f32 %v4751, %v4757
      %v4775 = vld [vmem:[%s1272] sm:$0xf]
      %v4776 = vld [vmem:[%s1272 + $0x4] sm:$0xf]
      %v4777 = vld [vmem:[%s1272 + $0x8] sm:$0xf]
      %v4778 = vld [vmem:[%s1272 + $0xc] sm:$0xf]
      %v4779 = vld [vmem:[%s1272 + $0x10] sm:$0xf]
      %v4780 = vld [vmem:[%s1272 + $0x14] sm:$0xf]
      %v4781 = vld [vmem:[%s1272 + $0x18] sm:$0xf]
      %v4782 = vld [vmem:[%s1272 + $0x1c] sm:$0xf]
      %v4783 = vld [vmem:[%s1272 + $0x20] sm:$0xf]
      %v4784 = vld [vmem:[%s1272 + $0x24] sm:$0xf]
      %v4785 = vld [vmem:[%s1272 + $0x28] sm:$0xf]
      %v4786 = vld [vmem:[%s1272 + $0x2c] sm:$0xf]
      %v4787 = vld [vmem:[%s1272 + $0x30] sm:$0xf]
      %v4788 = vld [vmem:[%s1272 + $0x34] sm:$0xf]
      %v4789 = vld [vmem:[%s1272 + $0x38] sm:$0xf]
      %v4790 = vld [vmem:[%s1272 + $0x3c] sm:$0xf]
      %v4791 = vld [vmem:[%s6] sm:$0x3]
      %v4808 = vunpack.c.l.b16 %v4775
      %v4809 = vunpack.c.l.b16 %v4776
      %v4810 = vunpack.c.l.b16 %v4777
      %v4811 = vunpack.c.l.b16 %v4778
      %v4812 = vunpack.c.l.b16 %v4779
      %v4813 = vunpack.c.l.b16 %v4780
      %v4814 = vunpack.c.l.b16 %v4781
      %v4815 = vunpack.c.l.b16 %v4782
      %v4816 = vunpack.c.l.b16 %v4783
      %v4817 = vunpack.c.l.b16 %v4784
      %v4818 = vunpack.c.l.b16 %v4785
      %v4819 = vunpack.c.l.b16 %v4786
      %v4820 = vunpack.c.l.b16 %v4787
      %v4821 = vunpack.c.l.b16 %v4788
      %v4822 = vunpack.c.l.b16 %v4789
      %v4823 = vunpack.c.l.b16 %v4790
      %v4824 = vpack.c.b16 %v4809, %v4808
      %v4825 = vpack.c.b16 %v4811, %v4810
      %v4826 = vpack.c.b16 %v4813, %v4812
      %v4827 = vpack.c.b16 %v4815, %v4814
      %v4828 = vpack.c.b16 %v4817, %v4816
      %v4829 = vpack.c.b16 %v4819, %v4818
      %v4830 = vpack.c.b16 %v4821, %v4820
      %v4831 = vpack.c.b16 %v4823, %v4822
      %v4833 = vsel %vm364, %v4824, 0
      %v4836 = vsel %vm364, %v4825, 0
      %v4839 = vsel %vm364, %v4826, 0
      %v4842 = vsel %vm364, %v4827, 0
      %v4845 = vsel %vm364, %v4828, 0
      %v4848 = vsel %vm364, %v4829, 0
      %v4851 = vsel %vm364, %v4830, 0
      %v4854 = vsel %vm364, %v4831, 0
      %v4857 = vsel %vm389, %v4791, 0
      %4859 = vmatprep.subr.bf16.mxu0 0
      %4860 = vmatpush1.bf16.msra.mxu0 %v4857
      %4861 = vmatprep.subr.bf16.mxu0 0
      %4862 = vmatpush1.bf16.msra.mxu0 0
      %4863 = vmatprep.subr.bf16.mxu0 0
      %4864 = vmatpush1.bf16.msra.mxu0 0
      %4865 = vmatprep.subr.bf16.mxu0 0
      %4866 = vmatpush1.bf16.msra.mxu0 0
      %4867 = vmatprep.subr.bf16.mxu0 0
      %4868 = vmatpush1.bf16.msra.mxu0 0
      %4869 = vmatprep.subr.bf16.mxu0 0
      %4870 = vmatpush1.bf16.msra.mxu0 0
      %4871 = vmatprep.subr.bf16.mxu0 0
      %4872 = vmatpush1.bf16.msra.mxu0 0
      %4873 = vmatprep.subr.bf16.mxu0 0
      %4874 = vmatpush1.bf16.msra.mxu0 0
      %4875 = vmatprep.subr.bf16.mxu0 0
      %4876 = vmatpush1.bf16.msra.mxu0 0
      %4877 = vmatprep.subr.bf16.mxu0 0
      %4878 = vmatpush1.bf16.msra.mxu0 0
      %4879 = vmatprep.subr.bf16.mxu0 0
      %4880 = vmatpush1.bf16.msra.mxu0 0
      %4881 = vmatprep.subr.bf16.mxu0 0
      %4882 = vmatpush1.bf16.msra.mxu0 0
      %4883 = vmatprep.subr.bf16.mxu0 0
      %4884 = vmatpush1.bf16.msra.mxu0 0
      %4885 = vmatprep.subr.bf16.mxu0 0
      %4886 = vmatpush1.bf16.msra.mxu0 0
      %4887 = vmatprep.subr.bf16.mxu0 0
      %4888 = vmatpush1.bf16.msra.mxu0 0
      %4889 = vmatprep.subr.bf16.mxu0 0
      %4890 = vmatpush1.bf16.msra.mxu0 0
      %4891 = vmatprep.mubr.bf16.mxu0 0
      %4892 = vmatmul.mubr.bf16.gmra.mrb[0].mxu0 %v4833
      %v4893 = vpop.f32.mrb[0].mxu0
      %v4894 = vadd.f32 0.0, %v4893
      %v4895 = vpop.f32.mrb[0].mxu0
      %v4896 = vpop.f32.mrb[0].mxu0
      %v4897 = vadd.f32 0.0, %v4896
      %v4898 = vpop.f32.mrb[0].mxu0
      %4899 = vmatprep.mubr.bf16.mxu0 0
      %4900 = vmatmul.mubr.bf16.gmra.mrb[0].mxu0 %v4836
      %v4901 = vpop.f32.mrb[0].mxu0
      %v4902 = vadd.f32 0.0, %v4901
      %v4903 = vpop.f32.mrb[0].mxu0
      %v4904 = vpop.f32.mrb[0].mxu0
      %v4905 = vadd.f32 0.0, %v4904
      %v4906 = vpop.f32.mrb[0].mxu0
      %4907 = vmatprep.mubr.bf16.mxu0 0
      %4908 = vmatmul.mubr.bf16.gmra.mrb[0].mxu0 %v4839
      %v4909 = vpop.f32.mrb[0].mxu0
      %v4910 = vadd.f32 0.0, %v4909
      %v4911 = vpop.f32.mrb[0].mxu0
      %v4912 = vpop.f32.mrb[0].mxu0
      %v4913 = vadd.f32 0.0, %v4912
      %v4914 = vpop.f32.mrb[0].mxu0
      %4915 = vmatprep.mubr.bf16.mxu0 0
      %4916 = vmatmul.mubr.bf16.gmra.mrb[0].mxu0 %v4842
      %v4917 = vpop.f32.mrb[0].mxu0
      %v4918 = vadd.f32 0.0, %v4917
      %v4919 = vpop.f32.mrb[0].mxu0
      %v4920 = vpop.f32.mrb[0].mxu0
      %v4921 = vadd.f32 0.0, %v4920
      %v4922 = vpop.f32.mrb[0].mxu0
      %4923 = vmatprep.mubr.bf16.mxu0 0
      %4924 = vmatmul.mubr.bf16.gmra.mrb[0].mxu0 %v4845
      %v4925 = vpop.f32.mrb[0].mxu0
      %v4926 = vadd.f32 0.0, %v4925
      %v4927 = vpop.f32.mrb[0].mxu0
      %v4928 = vpop.f32.mrb[0].mxu0
      %v4929 = vadd.f32 0.0, %v4928
      %v4930 = vpop.f32.mrb[0].mxu0
      %4931 = vmatprep.mubr.bf16.mxu0 0
      %4932 = vmatmul.mubr.bf16.gmra.mrb[0].mxu0 %v4848
      %v4933 = vpop.f32.mrb[0].mxu0
      %v4934 = vadd.f32 0.0, %v4933
      %v4935 = vpop.f32.mrb[0].mxu0
      %v4936 = vpop.f32.mrb[0].mxu0
      %v4937 = vadd.f32 0.0, %v4936
      %v4938 = vpop.f32.mrb[0].mxu0
      %4939 = vmatprep.mubr.bf16.mxu0 0
      %4940 = vmatmul.mubr.bf16.gmra.mrb[0].mxu0 %v4851
      %v4941 = vpop.f32.mrb[0].mxu0
      %v4942 = vadd.f32 0.0, %v4941
      %v4943 = vpop.f32.mrb[0].mxu0
      %v4944 = vpop.f32.mrb[0].mxu0
      %v4945 = vadd.f32 0.0, %v4944
      %v4946 = vpop.f32.mrb[0].mxu0
      %4947 = vmatprep.mubr.bf16.mxu0 0
      %4948 = vmatmul.mubr.bf16.gmra.mrb[0].mxu0 %v4854
      %v4949 = vpop.f32.mrb[0].mxu0
      %v4950 = vadd.f32 0.0, %v4949
      %v4951 = vpop.f32.mrb[0].mxu0
      %v4952 = vpop.f32.mrb[0].mxu0
      %v4953 = vadd.f32 0.0, %v4952
      %v4954 = vpop.f32.mrb[0].mxu0
      %4955 = vdwg.mxu0
      %v4956 = vadd.f32 %v4759, %v4894
      %v4957 = vadd.f32 %v4760, %v4897
      %v4958 = vadd.f32 %v4761, %v4902
      %v4959 = vadd.f32 %v4762, %v4905
      %v4960 = vadd.f32 %v4763, %v4910
      %v4961 = vadd.f32 %v4764, %v4913
      %v4962 = vadd.f32 %v4765, %v4918
      %v4963 = vadd.f32 %v4766, %v4921
      %v4964 = vadd.f32 %v4767, %v4926
      %v4965 = vadd.f32 %v4768, %v4929
      %v4966 = vadd.f32 %v4769, %v4934
      %v4967 = vadd.f32 %v4770, %v4937
      %v4968 = vadd.f32 %v4771, %v4942
      %v4969 = vadd.f32 %v4772, %v4945
      %v4970 = vadd.f32 %v4773, %v4950
      %v4971 = vadd.f32 %v4774, %v4953
      %v4972 = vld [vmem:[%s7] sm:$0x1]
      %v4974 = vlaneseq
      %v4975 = vshrl.u32 %v4974, 7
      %v4976 = vsub.s32 0, %v4975
      %v4977 = vrot.slane %v4972, %v4976
      %v4979 = vadd.f32 %v4956, %v4977
      %v4980 = vadd.f32 %v4957, %v4977
      %v4981 = vadd.f32 %v4958, %v4977
      %v4982 = vadd.f32 %v4959, %v4977
      %v4983 = vadd.f32 %v4960, %v4977
      %v4984 = vadd.f32 %v4961, %v4977
      %v4985 = vadd.f32 %v4962, %v4977
      %v4986 = vadd.f32 %v4963, %v4977
      %v4987 = vadd.f32 %v4964, %v4977
      %v4988 = vadd.f32 %v4965, %v4977
      %v4989 = vadd.f32 %v4966, %v4977
      %v4990 = vadd.f32 %v4967, %v4977
      %v4991 = vadd.f32 %v4968, %v4977
      %v4992 = vadd.f32 %v4969, %v4977
      %v4993 = vadd.f32 %v4970, %v4977
      %v4994 = vadd.f32 %v4971, %v4977
      %v4995 = vmax.f32 %v4979, 0.0
      %v4996 = vmax.f32 %v4980, 0.0
      %v4997 = vmax.f32 %v4981, 0.0
      %v4998 = vmax.f32 %v4982, 0.0
      %v4999 = vmax.f32 %v4983, 0.0
      %v5000 = vmax.f32 %v4984, 0.0
      %v5001 = vmax.f32 %v4985, 0.0
      %v5002 = vmax.f32 %v4986, 0.0
      %v5003 = vmax.f32 %v4987, 0.0
      %v5004 = vmax.f32 %v4988, 0.0
      %v5005 = vmax.f32 %v4989, 0.0
      %v5006 = vmax.f32 %v4990, 0.0
      %v5007 = vmax.f32 %v4991, 0.0
      %v5008 = vmax.f32 %v4992, 0.0
      %v5009 = vmax.f32 %v4993, 0.0
      %v5010 = vmax.f32 %v4994, 0.0
      %5011 = vst.msk [vmem:[%s305] sm:$0xff] %vm490, %v4995
      %5012 = vst.msk [vmem:[%s305 + $0x8] sm:$0xff] %vm490, %v4996
      %5013 = vst.msk [vmem:[%s305 + $0x10] sm:$0xff] %vm490, %v4997
      %5014 = vst.msk [vmem:[%s305 + $0x18] sm:$0xff] %vm490, %v4998
      %5015 = vst.msk [vmem:[%s305 + $0x20] sm:$0xff] %vm490, %v4999
      %5016 = vst.msk [vmem:[%s305 + $0x28] sm:$0xff] %vm490, %v5000
      %5017 = vst.msk [vmem:[%s305 + $0x30] sm:$0xff] %vm490, %v5001
      %5018 = vst.msk [vmem:[%s305 + $0x38] sm:$0xff] %vm490, %v5002
      %5019 = vst.msk [vmem:[%s305 + $0x40] sm:$0xff] %vm490, %v5003
      %5020 = vst.msk [vmem:[%s305 + $0x48] sm:$0xff] %vm490, %v5004
      %5021 = vst.msk [vmem:[%s305 + $0x50] sm:$0xff] %vm490, %v5005
      %5022 = vst.msk [vmem:[%s305 + $0x58] sm:$0xff] %vm490, %v5006
      %5023 = vst.msk [vmem:[%s305 + $0x60] sm:$0xff] %vm490, %v5007
      %5024 = vst.msk [vmem:[%s305 + $0x68] sm:$0xff] %vm490, %v5008
      %5025 = vst.msk [vmem:[%s305 + $0x70] sm:$0xff] %vm490, %v5009
      %5026 = vst.msk [vmem:[%s305 + $0x78] sm:$0xff] %vm490, %v5010
      %p5027 = scmp.lt.s32.totalorder %s19, 1
      %s5028 = scalar_select %p5027, %s19, 1
      %s5029 = smul.addr %s5028, 16
      %s5030 = smul.addr %s5029, 8
      %s5031 = scalar_lea.vmem %s8, %s5030
      // Predicated region
      $region53: #{tpu_custom_call.1} parent=51 // pred_check
        %p5032 = pneg %p210
      $region54: #{tpu_custom_call.1} parent=51 // pred_check_branch
        %5034 = sbr.rel (%p5032) target = $region56
      $region55: #{tpu_custom_call.1} parent=51 // pred_region
        _
      $region56: #{tpu_custom_call.1} parent=51 // pred_fallthru
        _
    $region52: #{tpu_custom_call.1} parent=5 // pred_fallthru
      _
    %p5035 = scmp.le.s32.totalorder 2, %s14
    // Predicated region
    $region57: #{tpu_custom_call.1} parent=5 // pred_check
      %p5036 = pneg %p5035
    $region58: #{tpu_custom_call.1} parent=5 // pred_check_branch
      %5038 = sbr.rel (%p5036) target = $region60
    $region59: #{tpu_custom_call.1} parent=5 // pred_region
      %s5039 = ssub.s32 %s14, 2
      // Predicated region
      $region61: #{tpu_custom_call.1} parent=59 // pred_check
        %p5040 = pneg %p216
      $region62: #{tpu_custom_call.1} parent=59 // pred_check_branch
        %5042 = sbr.rel (%p5040) target = $region64
      $region63: #{tpu_custom_call.1} parent=59 // pred_region
        %p5043 = scmp.lt.s32.totalorder %s20, 1
        %s5044 = scalar_select %p5043, %s20, 1
        %s5045 = smul.addr %s5044, 16
        %s5046 = smul.addr %s5045, 8
        %s5047 = scalar_lea.vmem %s8, %s5046
      $region64: #{tpu_custom_call.1} parent=59 // pred_fallthru
        _
    $region60: #{tpu_custom_call.1} parent=5 // pred_fallthru
      _
  $region6: #{tpu_custom_call.1} parent=0 // loop_footer
    %s18 = sadd.s32 1, %s14
  $region7: #{tpu_custom_call.1} parent=0 // loop_footer_branch
    %13 = sbr.rel target = $region3
  $region8: #{tpu_custom_call.1} parent=0 // loop_exit
    _

</llo_original>
